<compile_context>
chip_gen: v7x
topology: tpu7x:2x2x1
jax: 0.10.0
libtpu: 0.0.40
codegen_flags: <defaults>
</compile_context>

<pallas_src>
import functools
import math

import jax
import jax.numpy as jnp
from jax.experimental import pallas as pl
from jax.experimental.pallas import tpu as pltpu

NEG_INF = -1e9


# ------------------------------- small helpers ------------------------------

def _layer_norm(x, g, b, eps):
    mu = jnp.mean(x, axis=-1, keepdims=True)
    var = jnp.mean((x - mu) ** 2, axis=-1, keepdims=True)
    return (x - mu) * jax.lax.rsqrt(var + eps) * g + b


def _mha(x_q, x_kv, bias, wq, bq, wkv, bkv, wo, bo, *, num_heads, scale):
    """Multi-head attention for one batch element (inside a Pallas kernel).

    x_q: (Sq, H), x_kv: (Sk, H); bias broadcastable to (Sq, Sk) f32 (shared by heads).
    wq: (H, H) bf16, bq: (1, H) f32, wkv: (H, 2H) bf16, bkv: (1, 2H) f32,
    wo: (H, H) bf16, bo: (1, H) f32.  Returns (Sq, H) f32.

    Projections are head-fused and lane-dense; heads are only viewed (static lane
    slices) for the small SxS score / PV matmuls.
    """
    Sq, H = x_q.shape
    dh = H // num_heads

    # Lane-dense projections (bf16 MXU, f32 accumulate); 1/sqrt(dh) folded into q.
    q = (jnp.dot(x_q.astype(jnp.bfloat16), wq,
                 preferred_element_type=jnp.float32) + bq) * scale
    kv = jnp.dot(x_kv.astype(jnp.bfloat16), wkv,
                 preferred_element_type=jnp.float32) + bkv
    qb = q.astype(jnp.bfloat16)
    kb = kv[:, :H].astype(jnp.bfloat16)
    vb = kv[:, H:].astype(jnp.bfloat16)

    # Per-head score / softmax / PV (static unroll; slices are lane views only).
    ctx_heads = []
    for h in range(num_heads):
        lo, hi = h * dh, (h + 1) * dh
        s = jax.lax.dot_general(qb[:, lo:hi], kb[:, lo:hi],
                                (((1,), (1,)), ((), ())),
                                preferred_element_type=jnp.float32) + bias
        p = jnp.exp(s - jnp.max(s, axis=-1, keepdims=True))
        p = p * pl.reciprocal(jnp.sum(p, axis=-1, keepdims=True), approx=True)
        ctx_heads.append(jnp.dot(p.astype(jnp.bfloat16), vb[:, lo:hi],
                                 preferred_element_type=jnp.float32))
    ctx = jnp.concatenate(ctx_heads, axis=-1)            # (Sq, H) f32, lane-dense

    return jnp.dot(ctx.astype(jnp.bfloat16), wo,
                   preferred_element_type=jnp.float32) + bo


def _ffn(x, w1, b1, w2, b2):
    h = jnp.dot(x.astype(jnp.bfloat16), w1, preferred_element_type=jnp.float32) + b1
    h = jax.nn.gelu(h)                                   # PreSumm uses the tanh approx
    return jnp.dot(h.astype(jnp.bfloat16), w2, preferred_element_type=jnp.float32) + b2


# ----------------------------- Pallas kernels -------------------------------

def enc_stack_kernel(x_ref, bias_ref,
                     wq, bq, wkv, bkv, wo, bo, ln1g, ln1b,
                     w1, b1, w2, b2, ln2g, ln2b,
                     o_ref, state, *, num_heads):
    """Full BERT encoder stack: grid=(B, n_layers); hidden state lives in VMEM scratch."""
    l = pl.program_id(1)

    @pl.when(l == 0)
    def _():
        state[...] = x_ref[0].astype(jnp.float32)

    x = state[...]                              # (S, H) f32, carried across layers
    bias = bias_ref[0]                          # (1, S) additive src-padding bias
    H = x.shape[-1]
    scale = 1.0 / math.sqrt(H // num_heads)

    attn = _mha(x, x, bias, wq[0], bq[0], wkv[0], bkv[0], wo[0], bo[0],
                num_heads=num_heads, scale=scale)
    h = _layer_norm(x + attn, ln1g[0], ln1b[0], 1e-12)
    y = _ffn(h, w1[0], b1[0], w2[0], b2[0])
    out = _layer_norm(h + y, ln2g[0], ln2b[0], 1e-12)

    state[...] = out

    @pl.when(l == pl.num_programs(1) - 1)
    def _():
        o_ref[0] = out.astype(o_ref.dtype)      # top_vec written once, in bf16


def dec_stack_kernel(x_ref, mem_ref, tpad_ref, spad_ref,
                     swq, sbq, swkv, sbkv, swo, sbo, ln1g, ln1b,
                     cwq, cbq, cwkv, cbkv, cwo, cbo, ln2g, ln2b,
                     w1, b1, w2, b2, ln3g, ln3b,
                     o_ref, state, *, num_heads):
    """Full Transformer decoder stack (pre-LN, PreSumm style), grid=(B, n_layers)."""
    l = pl.program_id(1)

    @pl.when(l == 0)
    def _():
        state[...] = x_ref[0].astype(jnp.float32)

    x = state[...]                              # (T, H) f32 decoder state
    mem = mem_ref[0]                            # (S, H) bf16 encoder memory
    T, H = x.shape
    scale = 1.0 / math.sqrt(H // num_heads)

    # Causal + tgt-padding bias built in-kernel (VPU iota/compare, no (B,T,T) DMA).
    ii = jax.lax.broadcasted_iota(jnp.int32, (T, T), 0)
    jj = jax.lax.broadcasted_iota(jnp.int32, (T, T), 1)
    causal = jnp.where(jj <= ii, 0.0, NEG_INF).astype(jnp.float32)
    sbias = jnp.minimum(causal, tpad_ref[0])    # (T, T)

    # Self attention.
    xn = _layer_norm(x, ln1g[0], ln1b[0], 1e-6)
    q = x + _mha(xn, xn, sbias, swq[0], sbq[0], swkv[0], sbkv[0], swo[0], sbo[0],
                 num_heads=num_heads, scale=scale)

    # Cross attention over encoder memory.
    qn = _layer_norm(q, ln2g[0], ln2b[0], 1e-6)
    y = q + _mha(qn, mem, spad_ref[0], cwq[0], cbq[0], cwkv[0], cbkv[0], cwo[0], cbo[0],
                 num_heads=num_heads, scale=scale)

    # Position-wise FFN (pre-LN + residual).
    yn = _layer_norm(y, ln3g[0], ln3b[0], 1e-6)
    out = y + _ffn(yn, w1[0], b1[0], w2[0], b2[0])

    state[...] = out

    @pl.when(l == pl.num_programs(1) - 1)
    def _():
        o_ref[0] = out.astype(o_ref.dtype)


# ------------------------------ JAX wrappers ---------------------------------

ENC_KEYS = ("wq", "bq", "wkv", "bkv", "wo", "bo", "ln1_g", "ln1_b",
            "w1", "b1", "w2", "b2", "ln2_g", "ln2_b")

DEC_KEYS = ("s_wq", "s_bq", "s_wkv", "s_bkv", "s_wo", "s_bo", "ln1_g", "ln1_b",
            "c_wq", "c_bq", "c_wkv", "c_bkv", "c_wo", "c_bo", "ln2_g", "ln2_b",
            "w1", "b1", "w2", "b2", "ln3_g", "ln3_b")


def _weight_spec(w):
    """BlockSpec for a layer-stacked weight: one layer slice per inner grid step.

    The index varies along the layer axis, so default double-buffering prefetches
    layer l+1's weights while layer l computes (no Buffered(1) wanted here)."""
    zeros = (0,) * (w.ndim - 1)
    return pl.BlockSpec((1,) + tuple(w.shape[1:]), lambda b, l: (l,) + zeros)


def _vmem_limit_bytes():
    """~52 MiB on v7x (64 MiB/TC), ~100 MiB on v5e/v6e (128 MiB); safe fallback."""
    mib = 1024 * 1024
    try:
        cap = int(pltpu.get_tpu_info().vmem_capacity_bytes)
    except Exception:
        cap = 64 * mib
    return int(min(max(cap - 12 * mib, 32 * mib), 100 * mib))


def bert_encoder(hid, src_pad_bias, enc_params, *, num_heads):
    B, S, H = hid.shape
    weights = [enc_params[k] for k in ENC_KEYS]
    n_layers = weights[0].shape[0]
    return pl.pallas_call(
        functools.partial(enc_stack_kernel, num_heads=num_heads),
        out_shape=jax.ShapeDtypeStruct((B, S, H), jnp.bfloat16),
        grid=(B, n_layers),
        in_specs=[pl.BlockSpec((1, S, H), lambda b, l: (b, 0, 0)),
                  pl.BlockSpec((1, 1, S), lambda b, l: (b, 0, 0))]
                 + [_weight_spec(w) for w in weights],
        out_specs=pl.BlockSpec((1, S, H), lambda b, l: (b, 0, 0)),
        scratch_shapes=[pltpu.VMEM((S, H), jnp.float32)],
        compiler_params=pltpu.CompilerParams(
            dimension_semantics=("parallel", "arbitrary"),
            vmem_limit_bytes=_vmem_limit_bytes()),
    )(hid, src_pad_bias, *weights)


def transformer_decoder(hid, mem, tgt_pad_bias, src_pad_bias, dec_params, *, num_heads):
    B, T, H = hid.shape
    S = mem.shape[1]
    weights = [dec_params[k] for k in DEC_KEYS]
    n_layers = weights[0].shape[0]
    return pl.pallas_call(
        functools.partial(dec_stack_kernel, num_heads=num_heads),
        out_shape=jax.ShapeDtypeStruct((B, T, H), jnp.float32),
        grid=(B, n_layers),
        in_specs=[pl.BlockSpec((1, T, H), lambda b, l: (b, 0, 0)),
                  pl.BlockSpec((1, S, H), lambda b, l: (b, 0, 0)),
                  pl.BlockSpec((1, 1, T), lambda b, l: (b, 0, 0)),
                  pl.BlockSpec((1, 1, S), lambda b, l: (b, 0, 0))]
                 + [_weight_spec(w) for w in weights],
        out_specs=pl.BlockSpec((1, T, H), lambda b, l: (b, 0, 0)),
        scratch_shapes=[pltpu.VMEM((T, H), jnp.float32)],
        compiler_params=pltpu.CompilerParams(
            dimension_semantics=("parallel", "arbitrary"),
            vmem_limit_bytes=_vmem_limit_bytes()),
    )(hid, mem, tgt_pad_bias, src_pad_bias, *weights)


# ------------------------------ parameters -----------------------------------

class _KeyGen:
    def __init__(self, key):
        self._key = key

    def __call__(self):
        self._key, sub = jax.random.split(self._key)
        return sub


def init_params(key, *, vocab, max_src, H, F, num_heads, n_enc, n_dec):
    kg = _KeyGen(key)

    def w(shape, dtype=jnp.float32):
        return (0.02 * jax.random.normal(kg(), shape)).astype(dtype)

    def ones(shape):
        return jnp.ones(shape, jnp.float32)

    def zeros(shape):
        return jnp.zeros(shape, jnp.float32)

    def attn_block(L, prefix):
        return {
            prefix + "wq": w((L, H, H), jnp.bfloat16),
            prefix + "bq": zeros((L, 1, H)),
            prefix + "wkv": w((L, H, 2 * H), jnp.bfloat16),
            prefix + "bkv": zeros((L, 1, 2 * H)),
            prefix + "wo": w((L, H, H), jnp.bfloat16),
            prefix + "bo": zeros((L, 1, H)),
        }

    enc = {}
    enc.update(attn_block(n_enc, ""))
    enc.update({
        "ln1_g": ones((n_enc, 1, H)), "ln1_b": zeros((n_enc, 1, H)),
        "w1": w((n_enc, H, F), jnp.bfloat16), "b1": zeros((n_enc, 1, F)),
        "w2": w((n_enc, F, H), jnp.bfloat16), "b2": zeros((n_enc, 1, H)),
        "ln2_g": ones((n_enc, 1, H)), "ln2_b": zeros((n_enc, 1, H)),
    })

    dec = {}
    dec.update(attn_block(n_dec, "s_"))
    dec.update(attn_block(n_dec, "c_"))
    dec.update({
        "ln1_g": ones((n_dec, 1, H)), "ln1_b": zeros((n_dec, 1, H)),
        "ln2_g": ones((n_dec, 1, H)), "ln2_b": zeros((n_dec, 1, H)),
        "w1": w((n_dec, H, F), jnp.bfloat16), "b1": zeros((n_dec, 1, F)),
        "w2": w((n_dec, F, H), jnp.bfloat16), "b2": zeros((n_dec, 1, H)),
        "ln3_g": ones((n_dec, 1, H)), "ln3_b": zeros((n_dec, 1, H)),
    })

    return {
        "word_emb": w((vocab, H)),            # shared: BERT + decoder embeddings
        "pos_emb": w((max_src, H)),
        "emb_ln_g": ones((H,)), "emb_ln_b": zeros((H,)),
        "dec_ln_g": ones((H,)), "dec_ln_b": zeros((H,)),
        "enc": enc, "dec": dec,
    }


# ------------------------------ forward pass ----------------------------------

def _sinusoidal_pe(length, dim):
    pos = jnp.arange(length, dtype=jnp.float32)[:, None]
    div = jnp.exp(jnp.arange(0, dim, 2, dtype=jnp.float32) * (-math.log(10000.0) / dim))
    pe = jnp.zeros((length, dim), jnp.float32)
    pe = pe.at[:, 0::2].set(jnp.sin(pos * div))
    pe = pe.at[:, 1::2].set(jnp.cos(pos * div))
    return pe


def abs_summarizer_forward(src, tgt, mask_src, mask_tgt, params, *, num_heads):
    """src/tgt: (B,S)/(B,St) int32; mask_*: 1=token, 0=pad.
    Returns (decoder_outputs (B, St-1, H), None) like the PyTorch module."""
    B, S = src.shape
    H = params["word_emb"].shape[1]

    # ---------------- BERT encoder -> top_vec (bf16) ----------------
    h = params["word_emb"][src] + params["pos_emb"][:S][None, :, :]
    h = _layer_norm(h, params["emb_ln_g"], params["emb_ln_b"], 1e-12).astype(jnp.float32)
    src_pad_bias = ((1.0 - mask_src.astype(jnp.float32)) * NEG_INF)[:, None, :]  # (B,1,S)
    top_vec = bert_encoder(h, src_pad_bias, params["enc"], num_heads=num_heads)

    # ---------------- Transformer decoder ----------------
    tgt_in = tgt[:, :-1]
    mask_tgt_in = mask_tgt[:, :-1].astype(jnp.float32)
    T = tgt_in.shape[1]
    d = params["word_emb"][tgt_in] * jnp.sqrt(jnp.float32(H))
    d = (d + _sinusoidal_pe(T, H)[None, :, :]).astype(jnp.float32)

    tgt_pad_bias = ((1.0 - mask_tgt_in) * NEG_INF)[:, None, :]                   # (B,1,T)
    dec = transformer_decoder(d, top_vec, tgt_pad_bias, src_pad_bias,
                              params["dec"], num_heads=num_heads)
    dec_out = _layer_norm(dec, params["dec_ln_g"], params["dec_ln_b"], 1e-6)
    return dec_out, None


if __name__ == "__main__":
    B, S_SRC, S_TGT = 2, 16, 9          # decoder consumes tgt[:, :-1] -> 8 positions
    H, F, NUM_HEADS = 256, 512, 2       # dh=128 -> vreg-aligned head views; all matmul
    VOCAB, N_ENC, N_DEC = 128, 2, 2     # output widths are multiples of 256 (MXU tile)

    key = jax.random.PRNGKey(0)
    k_src, k_tgt, k_params = jax.random.split(key, 3)

    src = jax.random.randint(k_src, (B, S_SRC), 1, VOCAB, dtype=jnp.int32)
    tgt = jax.random.randint(k_tgt, (B, S_TGT), 1, VOCAB, dtype=jnp.int32)
    mask_src = jnp.ones((B, S_SRC), jnp.float32).at[1, S_SRC - 4:].set(0.0)
    mask_tgt = jnp.ones((B, S_TGT), jnp.float32).at[1, S_TGT - 2:].set(0.0)

    params = init_params(k_params, vocab=VOCAB, max_src=S_SRC, H=H, F=F,
                         num_heads=NUM_HEADS, n_enc=N_ENC, n_dec=N_DEC)

    dec_out, _ = abs_summarizer_forward(src, tgt, mask_src, mask_tgt, params,
                                        num_heads=NUM_HEADS)
    jax.block_until_ready(dec_out)
    assert dec_out.shape == (B, S_TGT - 1, H)
    print("KERNEL_OK")
</pallas_src>

<mosaic_0001>
module attributes {stable_mosaic.version = 11 : i64} {
  func.func @enc_stack_kernel(%arg0: i32, %arg1: i32, %arg2: memref<1x16x256xf32, #tpu.memory_space<vmem>>, %arg3: memref<1x1x16xf32, #tpu.memory_space<vmem>>, %arg4: memref<1x256x256xbf16, #tpu.memory_space<vmem>>, %arg5: memref<1x1x256xf32, #tpu.memory_space<vmem>>, %arg6: memref<1x256x512xbf16, #tpu.memory_space<vmem>>, %arg7: memref<1x1x512xf32, #tpu.memory_space<vmem>>, %arg8: memref<1x256x256xbf16, #tpu.memory_space<vmem>>, %arg9: memref<1x1x256xf32, #tpu.memory_space<vmem>>, %arg10: memref<1x1x256xf32, #tpu.memory_space<vmem>>, %arg11: memref<1x1x256xf32, #tpu.memory_space<vmem>>, %arg12: memref<1x256x512xbf16, #tpu.memory_space<vmem>>, %arg13: memref<1x1x512xf32, #tpu.memory_space<vmem>>, %arg14: memref<1x512x256xbf16, #tpu.memory_space<vmem>>, %arg15: memref<1x1x256xf32, #tpu.memory_space<vmem>>, %arg16: memref<1x1x256xf32, #tpu.memory_space<vmem>>, %arg17: memref<1x1x256xf32, #tpu.memory_space<vmem>>, %arg18: memref<1x16x256xbf16, #tpu.memory_space<vmem>>, %arg19: memref<16x256xf32, #tpu.memory_space<vmem>>) attributes {dimension_semantics = [#tpu.dimension_semantics<parallel>, #tpu.dimension_semantics<arbitrary>], iteration_bounds = array<i64: 2, 2>, scalar_prefetch = 0 : i64, scratch_operands = 1 : i64, tpu.core_type = #tpu.core_type<tc>, window_params = [{transform_indices = @transform_0, window_bounds = array<i64: 1, 16, 256>}, {transform_indices = @transform_1, window_bounds = array<i64: 1, 1, 16>}, {transform_indices = @transform_2, window_bounds = array<i64: 1, 256, 256>}, {transform_indices = @transform_3, window_bounds = array<i64: 1, 1, 256>}, {transform_indices = @transform_4, window_bounds = array<i64: 1, 256, 512>}, {transform_indices = @transform_5, window_bounds = array<i64: 1, 1, 512>}, {transform_indices = @transform_6, window_bounds = array<i64: 1, 256, 256>}, {transform_indices = @transform_7, window_bounds = array<i64: 1, 1, 256>}, {transform_indices = @transform_8, window_bounds = array<i64: 1, 1, 256>}, {transform_indices = @transform_9, window_bounds = array<i64: 1, 1, 256>}, {transform_indices = @transform_10, window_bounds = array<i64: 1, 256, 512>}, {transform_indices = @transform_11, window_bounds = array<i64: 1, 1, 512>}, {transform_indices = @transform_12, window_bounds = array<i64: 1, 512, 256>}, {transform_indices = @transform_13, window_bounds = array<i64: 1, 1, 256>}, {transform_indices = @transform_14, window_bounds = array<i64: 1, 1, 256>}, {transform_indices = @transform_15, window_bounds = array<i64: 1, 1, 256>}, {transform_indices = @transform_16, window_bounds = array<i64: 1, 16, 256>}]} {
    %c0_i32 = arith.constant 0 : i32
    %0 = arith.cmpi eq, %arg1, %c0_i32 : i32
    %1 = arith.extui %0 : i1 to i32
    %c0_i32_0 = arith.constant 0 : i32
    %2 = arith.cmpi ne, %1, %c0_i32_0 : i32
    scf.if %2 {
      %c0_77 = arith.constant 0 : index
      %c0_78 = arith.constant 0 : index
      %c0_79 = arith.constant 0 : index
      %161 = vector.load %arg2[%c0_77, %c0_78, %c0_79] : memref<1x16x256xf32, #tpu.memory_space<vmem>>, vector<1x16x256xf32>
      %162 = vector.shape_cast %161 : vector<1x16x256xf32> to vector<16x256xf32>
      %c0_80 = arith.constant 0 : index
      %c0_81 = arith.constant 0 : index
      %163 = vector.load %arg19[%c0_80, %c0_81] : memref<16x256xf32, #tpu.memory_space<vmem>>, vector<16x256xf32>
      tpu.vector_store %arg19[%c0_80, %c0_81], %162 {strides = array<i32>} : memref<16x256xf32, #tpu.memory_space<vmem>>, vector<16x256xf32>,
    } else {
    }
    %c0 = arith.constant 0 : index
    %c0_1 = arith.constant 0 : index
    %3 = vector.load %arg19[%c0, %c0_1] : memref<16x256xf32, #tpu.memory_space<vmem>>, vector<16x256xf32>
    %c0_2 = arith.constant 0 : index
    %c0_3 = arith.constant 0 : index
    %c0_4 = arith.constant 0 : index
    %4 = vector.load %arg3[%c0_2, %c0_3, %c0_4] : memref<1x1x16xf32, #tpu.memory_space<vmem>>, vector<1x1x16xf32>
    %5 = vector.shape_cast %4 : vector<1x1x16xf32> to vector<1x16xf32>
    %c0_5 = arith.constant 0 : index
    %c0_6 = arith.constant 0 : index
    %c0_7 = arith.constant 0 : index
    %6 = vector.load %arg4[%c0_5, %c0_6, %c0_7] : memref<1x256x256xbf16, #tpu.memory_space<vmem>>, vector<1x256x256xbf16>
    %7 = vector.shape_cast %6 : vector<1x256x256xbf16> to vector<256x256xbf16>
    %c0_8 = arith.constant 0 : index
    %c0_9 = arith.constant 0 : index
    %c0_10 = arith.constant 0 : index
    %8 = vector.load %arg5[%c0_8, %c0_9, %c0_10] : memref<1x1x256xf32, #tpu.memory_space<vmem>>, vector<1x1x256xf32>
    %9 = vector.shape_cast %8 : vector<1x1x256xf32> to vector<1x256xf32>
    %c0_11 = arith.constant 0 : index
    %c0_12 = arith.constant 0 : index
    %c0_13 = arith.constant 0 : index
    %10 = vector.load %arg6[%c0_11, %c0_12, %c0_13] : memref<1x256x512xbf16, #tpu.memory_space<vmem>>, vector<1x256x512xbf16>
    %11 = vector.shape_cast %10 : vector<1x256x512xbf16> to vector<256x512xbf16>
    %c0_14 = arith.constant 0 : index
    %c0_15 = arith.constant 0 : index
    %c0_16 = arith.constant 0 : index
    %12 = vector.load %arg7[%c0_14, %c0_15, %c0_16] : memref<1x1x512xf32, #tpu.memory_space<vmem>>, vector<1x1x512xf32>
    %13 = vector.shape_cast %12 : vector<1x1x512xf32> to vector<1x512xf32>
    %c0_17 = arith.constant 0 : index
    %c0_18 = arith.constant 0 : index
    %c0_19 = arith.constant 0 : index
    %14 = vector.load %arg8[%c0_17, %c0_18, %c0_19] : memref<1x256x256xbf16, #tpu.memory_space<vmem>>, vector<1x256x256xbf16>
    %15 = vector.shape_cast %14 : vector<1x256x256xbf16> to vector<256x256xbf16>
    %c0_20 = arith.constant 0 : index
    %c0_21 = arith.constant 0 : index
    %c0_22 = arith.constant 0 : index
    %16 = vector.load %arg9[%c0_20, %c0_21, %c0_22] : memref<1x1x256xf32, #tpu.memory_space<vmem>>, vector<1x1x256xf32>
    %17 = vector.shape_cast %16 : vector<1x1x256xf32> to vector<1x256xf32>
    %18 = arith.truncf %3 : vector<16x256xf32> to vector<16x256xbf16>
    %cst = arith.constant dense<0.000000e+00> : vector<16x256xf32>
    %19 = tpu.matmul %18, %7, %cst {dimension_numbers = #tpu.dot_dimension_numbers<[1], [0], [0], [1], [0, 0, 1, 1], [], []>} : vector<16x256xbf16>, vector<256x256xbf16>, vector<16x256xf32> -> vector<16x256xf32>
    %20 = vector.broadcast %9 : vector<1x256xf32> to vector<16x256xf32>
    %21 = arith.addf %19, %20 : vector<16x256xf32>
    %cst_23 = arith.constant 0.0883883461 : f32
    %22 = vector.broadcast %cst_23 : f32 to vector<16x256xf32>
    %23 = arith.mulf %21, %22 : vector<16x256xf32>
    %24 = arith.truncf %3 : vector<16x256xf32> to vector<16x256xbf16>
    %cst_24 = arith.constant dense<0.000000e+00> : vector<16x512xf32>
    %25 = tpu.matmul %24, %11, %cst_24 {dimension_numbers = #tpu.dot_dimension_numbers<[1], [0], [0], [1], [0, 0, 1, 1], [], []>} : vector<16x256xbf16>, vector<256x512xbf16>, vector<16x512xf32> -> vector<16x512xf32>
    %26 = vector.broadcast %13 : vector<1x512xf32> to vector<16x512xf32>
    %27 = arith.addf %25, %26 : vector<16x512xf32>
    %28 = arith.truncf %23 : vector<16x256xf32> to vector<16x256xbf16>
    %29 = vector.extract_strided_slice %27 {offsets = [0, 0], sizes = [16, 256], strides = [1, 1]} : vector<16x512xf32> to vector<16x256xf32>
    %30 = arith.truncf %29 : vector<16x256xf32> to vector<16x256xbf16>
    %31 = vector.extract_strided_slice %27 {offsets = [0, 256], sizes = [16, 256], strides = [1, 1]} : vector<16x512xf32> to vector<16x256xf32>
    %32 = arith.truncf %31 : vector<16x256xf32> to vector<16x256xbf16>
    %33 = vector.extract_strided_slice %28 {offsets = [0, 0], sizes = [16, 128], strides = [1, 1]} : vector<16x256xbf16> to vector<16x128xbf16>
    %34 = vector.extract_strided_slice %30 {offsets = [0, 0], sizes = [16, 128], strides = [1, 1]} : vector<16x256xbf16> to vector<16x128xbf16>
    %cst_25 = arith.constant dense<0.000000e+00> : vector<16x16xf32>
    %35 = tpu.matmul %33, %34, %cst_25 {dimension_numbers = #tpu.dot_dimension_numbers<[1], [1], [0], [0], [0, 0, 1, 0], [], []>} : vector<16x128xbf16>, vector<16x128xbf16>, vector<16x16xf32> -> vector<16x16xf32>
    %36 = vector.broadcast %5 : vector<1x16xf32> to vector<16x16xf32>
    %37 = arith.addf %35, %36 : vector<16x16xf32>
    %cst_26 = arith.constant dense<0xFF800000> : vector<16xf32>
    %38 = vector.multi_reduction <maximumf>, %37, %cst_26 [1] : vector<16x16xf32> to vector<16xf32>
    %39 = vector.shape_cast %38 : vector<16xf32> to vector<16x1xf32>
    %40 = vector.broadcast %39 : vector<16x1xf32> to vector<16x16xf32>
    %41 = arith.subf %37, %40 : vector<16x16xf32>
    %42 = math.exp %41 : vector<16x16xf32>
    %cst_27 = arith.constant dense<0.000000e+00> : vector<16xf32>
    %43 = vector.multi_reduction <add>, %42, %cst_27 [1] : vector<16x16xf32> to vector<16xf32>
    %44 = vector.shape_cast %43 : vector<16xf32> to vector<16x1xf32>
    %45 = tpu.reciprocal %44 {approx = true} : vector<16x1xf32> -> vector<16x1xf32>
    %46 = vector.broadcast %45 : vector<16x1xf32> to vector<16x16xf32>
    %47 = arith.mulf %42, %46 : vector<16x16xf32>
    %48 = arith.truncf %47 : vector<16x16xf32> to vector<16x16xbf16>
    %49 = vector.extract_strided_slice %32 {offsets = [0, 0], sizes = [16, 128], strides = [1, 1]} : vector<16x256xbf16> to vector<16x128xbf16>
    %cst_28 = arith.constant dense<0.000000e+00> : vector<16x128xf32>
    %50 = tpu.matmul %48, %49, %cst_28 {dimension_numbers = #tpu.dot_dimension_numbers<[1], [0], [0], [1], [0, 0, 1, 1], [], []>} : vector<16x16xbf16>, vector<16x128xbf16>, vector<16x128xf32> -> vector<16x128xf32>
    %51 = vector.extract_strided_slice %28 {offsets = [0, 128], sizes = [16, 128], strides = [1, 1]} : vector<16x256xbf16> to vector<16x128xbf16>
    %52 = vector.extract_strided_slice %30 {offsets = [0, 128], sizes = [16, 128], strides = [1, 1]} : vector<16x256xbf16> to vector<16x128xbf16>
    %cst_29 = arith.constant dense<0.000000e+00> : vector<16x16xf32>
    %53 = tpu.matmul %51, %52, %cst_29 {dimension_numbers = #tpu.dot_dimension_numbers<[1], [1], [0], [0], [0, 0, 1, 0], [], []>} : vector<16x128xbf16>, vector<16x128xbf16>, vector<16x16xf32> -> vector<16x16xf32>
    %54 = vector.broadcast %5 : vector<1x16xf32> to vector<16x16xf32>
    %55 = arith.addf %53, %54 : vector<16x16xf32>
    %cst_30 = arith.constant dense<0xFF800000> : vector<16xf32>
    %56 = vector.multi_reduction <maximumf>, %55, %cst_30 [1] : vector<16x16xf32> to vector<16xf32>
    %57 = vector.shape_cast %56 : vector<16xf32> to vector<16x1xf32>
    %58 = vector.broadcast %57 : vector<16x1xf32> to vector<16x16xf32>
    %59 = arith.subf %55, %58 : vector<16x16xf32>
    %60 = math.exp %59 : vector<16x16xf32>
    %cst_31 = arith.constant dense<0.000000e+00> : vector<16xf32>
    %61 = vector.multi_reduction <add>, %60, %cst_31 [1] : vector<16x16xf32> to vector<16xf32>
    %62 = vector.shape_cast %61 : vector<16xf32> to vector<16x1xf32>
    %63 = tpu.reciprocal %62 {approx = true} : vector<16x1xf32> -> vector<16x1xf32>
    %64 = vector.broadcast %63 : vector<16x1xf32> to vector<16x16xf32>
    %65 = arith.mulf %60, %64 : vector<16x16xf32>
    %66 = arith.truncf %65 : vector<16x16xf32> to vector<16x16xbf16>
    %67 = vector.extract_strided_slice %32 {offsets = [0, 128], sizes = [16, 128], strides = [1, 1]} : vector<16x256xbf16> to vector<16x128xbf16>
    %cst_32 = arith.constant dense<0.000000e+00> : vector<16x128xf32>
    %68 = tpu.matmul %66, %67, %cst_32 {dimension_numbers = #tpu.dot_dimension_numbers<[1], [0], [0], [1], [0, 0, 1, 1], [], []>} : vector<16x16xbf16>, vector<16x128xbf16>, vector<16x128xf32> -> vector<16x128xf32>
    %69 = tpu.concatenate %50, %68 in 1 : vector<16x128xf32>, vector<16x128xf32> -> vector<16x256xf32>
    %70 = arith.truncf %69 : vector<16x256xf32> to vector<16x256xbf16>
    %cst_33 = arith.constant dense<0.000000e+00> : vector<16x256xf32>
    %71 = tpu.matmul %70, %15, %cst_33 {dimension_numbers = #tpu.dot_dimension_numbers<[1], [0], [0], [1], [0, 0, 1, 1], [], []>} : vector<16x256xbf16>, vector<256x256xbf16>, vector<16x256xf32> -> vector<16x256xf32>
    %72 = vector.broadcast %17 : vector<1x256xf32> to vector<16x256xf32>
    %73 = arith.addf %71, %72 : vector<16x256xf32>
    %74 = arith.addf %3, %73 : vector<16x256xf32>
    %c0_34 = arith.constant 0 : index
    %c0_35 = arith.constant 0 : index
    %c0_36 = arith.constant 0 : index
    %75 = vector.load %arg10[%c0_34, %c0_35, %c0_36] : memref<1x1x256xf32, #tpu.memory_space<vmem>>, vector<1x1x256xf32>
    %76 = vector.shape_cast %75 : vector<1x1x256xf32> to vector<1x256xf32>
    %c0_37 = arith.constant 0 : index
    %c0_38 = arith.constant 0 : index
    %c0_39 = arith.constant 0 : index
    %77 = vector.load %arg11[%c0_37, %c0_38, %c0_39] : memref<1x1x256xf32, #tpu.memory_space<vmem>>, vector<1x1x256xf32>
    %78 = vector.shape_cast %77 : vector<1x1x256xf32> to vector<1x256xf32>
    %cst_40 = arith.constant dense<0.000000e+00> : vector<16xf32>
    %79 = vector.multi_reduction <add>, %74, %cst_40 [1] : vector<16x256xf32> to vector<16xf32>
    %80 = vector.shape_cast %79 : vector<16xf32> to vector<16x1xf32>
    %cst_41 = arith.constant 2.560000e+02 : f32
    %81 = vector.broadcast %cst_41 : f32 to vector<16x1xf32>
    %82 = arith.divf %80, %81 : vector<16x1xf32>
    %83 = vector.broadcast %82 : vector<16x1xf32> to vector<16x256xf32>
    %84 = arith.subf %74, %83 : vector<16x256xf32>
    %85 = arith.mulf %84, %84 : vector<16x256xf32>
    %cst_42 = arith.constant dense<0.000000e+00> : vector<16xf32>
    %86 = vector.multi_reduction <add>, %85, %cst_42 [1] : vector<16x256xf32> to vector<16xf32>
    %87 = vector.shape_cast %86 : vector<16xf32> to vector<16x1xf32>
    %cst_43 = arith.constant 2.560000e+02 : f32
    %88 = vector.broadcast %cst_43 : f32 to vector<16x1xf32>
    %89 = arith.divf %87, %88 : vector<16x1xf32>
    %90 = vector.broadcast %82 : vector<16x1xf32> to vector<16x256xf32>
    %91 = arith.subf %74, %90 : vector<16x256xf32>
    %cst_44 = arith.constant 9.99999996E-13 : f32
    %92 = vector.broadcast %cst_44 : f32 to vector<16x1xf32>
    %93 = arith.addf %89, %92 : vector<16x1xf32>
    %94 = math.rsqrt %93 : vector<16x1xf32>
    %95 = vector.broadcast %94 : vector<16x1xf32> to vector<16x256xf32>
    %96 = arith.mulf %91, %95 : vector<16x256xf32>
    %97 = vector.broadcast %76 : vector<1x256xf32> to vector<16x256xf32>
    %98 = arith.mulf %96, %97 : vector<16x256xf32>
    %99 = vector.broadcast %78 : vector<1x256xf32> to vector<16x256xf32>
    %100 = arith.addf %98, %99 : vector<16x256xf32>
    %c0_45 = arith.constant 0 : index
    %c0_46 = arith.constant 0 : index
    %c0_47 = arith.constant 0 : index
    %101 = vector.load %arg12[%c0_45, %c0_46, %c0_47] : memref<1x256x512xbf16, #tpu.memory_space<vmem>>, vector<1x256x512xbf16>
    %102 = vector.shape_cast %101 : vector<1x256x512xbf16> to vector<256x512xbf16>
    %c0_48 = arith.constant 0 : index
    %c0_49 = arith.constant 0 : index
    %c0_50 = arith.constant 0 : index
    %103 = vector.load %arg13[%c0_48, %c0_49, %c0_50] : memref<1x1x512xf32, #tpu.memory_space<vmem>>, vector<1x1x512xf32>
    %104 = vector.shape_cast %103 : vector<1x1x512xf32> to vector<1x512xf32>
    %c0_51 = arith.constant 0 : index
    %c0_52 = arith.constant 0 : index
    %c0_53 = arith.constant 0 : index
    %105 = vector.load %arg14[%c0_51, %c0_52, %c0_53] : memref<1x512x256xbf16, #tpu.memory_space<vmem>>, vector<1x512x256xbf16>
    %106 = vector.shape_cast %105 : vector<1x512x256xbf16> to vector<512x256xbf16>
    %c0_54 = arith.constant 0 : index
    %c0_55 = arith.constant 0 : index
    %c0_56 = arith.constant 0 : index
    %107 = vector.load %arg15[%c0_54, %c0_55, %c0_56] : memref<1x1x256xf32, #tpu.memory_space<vmem>>, vector<1x1x256xf32>
    %108 = vector.shape_cast %107 : vector<1x1x256xf32> to vector<1x256xf32>
    %109 = arith.truncf %100 : vector<16x256xf32> to vector<16x256xbf16>
    %cst_57 = arith.constant dense<0.000000e+00> : vector<16x512xf32>
    %110 = tpu.matmul %109, %102, %cst_57 {dimension_numbers = #tpu.dot_dimension_numbers<[1], [0], [0], [1], [0, 0, 1, 1], [], []>} : vector<16x256xbf16>, vector<256x512xbf16>, vector<16x512xf32> -> vector<16x512xf32>
    %111 = vector.broadcast %104 : vector<1x512xf32> to vector<16x512xf32>
    %112 = arith.addf %110, %111 : vector<16x512xf32>
    %113 = arith.mulf %112, %112 : vector<16x512xf32>
    %114 = arith.mulf %112, %113 : vector<16x512xf32>
    %cst_58 = arith.constant 4.471500e-02 : f32
    %115 = vector.broadcast %cst_58 : f32 to vector<16x512xf32>
    %116 = arith.mulf %115, %114 : vector<16x512xf32>
    %117 = arith.addf %112, %116 : vector<16x512xf32>
    %cst_59 = arith.constant 0.797884583 : f32
    %118 = vector.broadcast %cst_59 : f32 to vector<16x512xf32>
    %119 = arith.mulf %118, %117 : vector<16x512xf32>
    %120 = math.tanh %119 : vector<16x512xf32>
    %cst_60 = arith.constant 1.000000e+00 : f32
    %121 = vector.broadcast %cst_60 : f32 to vector<16x512xf32>
    %122 = arith.addf %121, %120 : vector<16x512xf32>
    %cst_61 = arith.constant 5.000000e-01 : f32
    %123 = vector.broadcast %cst_61 : f32 to vector<16x512xf32>
    %124 = arith.mulf %123, %122 : vector<16x512xf32>
    %125 = arith.mulf %112, %124 : vector<16x512xf32>
    %126 = arith.truncf %125 : vector<16x512xf32> to vector<16x512xbf16>
    %cst_62 = arith.constant dense<0.000000e+00> : vector<16x256xf32>
    %127 = tpu.matmul %126, %106, %cst_62 {dimension_numbers = #tpu.dot_dimension_numbers<[1], [0], [0], [1], [0, 0, 1, 1], [], []>} : vector<16x512xbf16>, vector<512x256xbf16>, vector<16x256xf32> -> vector<16x256xf32>
    %128 = vector.broadcast %108 : vector<1x256xf32> to vector<16x256xf32>
    %129 = arith.addf %127, %128 : vector<16x256xf32>
    %130 = arith.addf %100, %129 : vector<16x256xf32>
    %c0_63 = arith.constant 0 : index
    %c0_64 = arith.constant 0 : index
    %c0_65 = arith.constant 0 : index
    %131 = vector.load %arg16[%c0_63, %c0_64, %c0_65] : memref<1x1x256xf32, #tpu.memory_space<vmem>>, vector<1x1x256xf32>
    %132 = vector.shape_cast %131 : vector<1x1x256xf32> to vector<1x256xf32>
    %c0_66 = arith.constant 0 : index
    %c0_67 = arith.constant 0 : index
    %c0_68 = arith.constant 0 : index
    %133 = vector.load %arg17[%c0_66, %c0_67, %c0_68] : memref<1x1x256xf32, #tpu.memory_space<vmem>>, vector<1x1x256xf32>
    %134 = vector.shape_cast %133 : vector<1x1x256xf32> to vector<1x256xf32>
    %cst_69 = arith.constant dense<0.000000e+00> : vector<16xf32>
    %135 = vector.multi_reduction <add>, %130, %cst_69 [1] : vector<16x256xf32> to vector<16xf32>
    %136 = vector.shape_cast %135 : vector<16xf32> to vector<16x1xf32>
    %cst_70 = arith.constant 2.560000e+02 : f32
    %137 = vector.broadcast %cst_70 : f32 to vector<16x1xf32>
    %138 = arith.divf %136, %137 : vector<16x1xf32>
    %139 = vector.broadcast %138 : vector<16x1xf32> to vector<16x256xf32>
    %140 = arith.subf %130, %139 : vector<16x256xf32>
    %141 = arith.mulf %140, %140 : vector<16x256xf32>
    %cst_71 = arith.constant dense<0.000000e+00> : vector<16xf32>
    %142 = vector.multi_reduction <add>, %141, %cst_71 [1] : vector<16x256xf32> to vector<16xf32>
    %143 = vector.shape_cast %142 : vector<16xf32> to vector<16x1xf32>
    %cst_72 = arith.constant 2.560000e+02 : f32
    %144 = vector.broadcast %cst_72 : f32 to vector<16x1xf32>
    %145 = arith.divf %143, %144 : vector<16x1xf32>
    %146 = vector.broadcast %138 : vector<16x1xf32> to vector<16x256xf32>
    %147 = arith.subf %130, %146 : vector<16x256xf32>
    %cst_73 = arith.constant 9.99999996E-13 : f32
    %148 = vector.broadcast %cst_73 : f32 to vector<16x1xf32>
    %149 = arith.addf %145, %148 : vector<16x1xf32>
    %150 = math.rsqrt %149 : vector<16x1xf32>
    %151 = vector.broadcast %150 : vector<16x1xf32> to vector<16x256xf32>
    %152 = arith.mulf %147, %151 : vector<16x256xf32>
    %153 = vector.broadcast %132 : vector<1x256xf32> to vector<16x256xf32>
    %154 = arith.mulf %152, %153 : vector<16x256xf32>
    %155 = vector.broadcast %134 : vector<1x256xf32> to vector<16x256xf32>
    %156 = arith.addf %154, %155 : vector<16x256xf32>
    %c0_74 = arith.constant 0 : index
    %c0_75 = arith.constant 0 : index
    %157 = vector.load %arg19[%c0_74, %c0_75] : memref<16x256xf32, #tpu.memory_space<vmem>>, vector<16x256xf32>
    tpu.vector_store %arg19[%c0_74, %c0_75], %156 {strides = array<i32>} : memref<16x256xf32, #tpu.memory_space<vmem>>, vector<16x256xf32>,
    %c1_i32 = arith.constant 1 : i32
    %158 = arith.cmpi eq, %arg1, %c1_i32 : i32
    %159 = arith.extui %158 : i1 to i32
    %c0_i32_76 = arith.constant 0 : i32
    %160 = arith.cmpi ne, %159, %c0_i32_76 : i32
    scf.if %160 {
      %161 = arith.truncf %156 : vector<16x256xf32> to vector<16x256xbf16>
      %c0_77 = arith.constant 0 : index
      %c0_78 = arith.constant 0 : index
      %c0_79 = arith.constant 0 : index
      %162 = vector.load %arg18[%c0_77, %c0_78, %c0_79] : memref<1x16x256xbf16, #tpu.memory_space<vmem>>, vector<1x16x256xbf16>
      %163 = vector.shape_cast %162 : vector<1x16x256xbf16> to vector<16x256xbf16>
      %164 = vector.shape_cast %161 : vector<16x256xbf16> to vector<1x16x256xbf16>
      tpu.vector_store %arg18[%c0_77, %c0_78, %c0_79], %164 {strides = array<i32>} : memref<1x16x256xbf16, #tpu.memory_space<vmem>>, vector<1x16x256xbf16>,
    } else {
    }
    return
  }
  func.func @transform_0(%arg0: i32, %arg1: i32) -> (i32, i32, i32) {
    %c0_i32 = arith.constant 0 : i32
    %c0_i32_0 = arith.constant 0 : i32
    %c0_i32_1 = arith.constant 0 : i32
    return %arg0, %c0_i32, %c0_i32_0 : i32, i32, i32
  }
  func.func @transform_1(%arg0: i32, %arg1: i32) -> (i32, i32, i32) {
    %c0_i32 = arith.constant 0 : i32
    %c0_i32_0 = arith.constant 0 : i32
    %c0_i32_1 = arith.constant 0 : i32
    return %arg0, %c0_i32, %c0_i32_0 : i32, i32, i32
  }
  func.func @transform_2(%arg0: i32, %arg1: i32) -> (i32, i32, i32) {
    %c0_i32 = arith.constant 0 : i32
    %c0_i32_0 = arith.constant 0 : i32
    %c0_i32_1 = arith.constant 0 : i32
    return %arg1, %c0_i32, %c0_i32_0 : i32, i32, i32
  }
  func.func @transform_3(%arg0: i32, %arg1: i32) -> (i32, i32, i32) {
    %c0_i32 = arith.constant 0 : i32
    %c0_i32_0 = arith.constant 0 : i32
    %c0_i32_1 = arith.constant 0 : i32
    return %arg1, %c0_i32, %c0_i32_0 : i32, i32, i32
  }
  func.func @transform_4(%arg0: i32, %arg1: i32) -> (i32, i32, i32) {
    %c0_i32 = arith.constant 0 : i32
    %c0_i32_0 = arith.constant 0 : i32
    %c0_i32_1 = arith.constant 0 : i32
    return %arg1, %c0_i32, %c0_i32_0 : i32, i32, i32
  }
  func.func @transform_5(%arg0: i32, %arg1: i32) -> (i32, i32, i32) {
    %c0_i32 = arith.constant 0 : i32
    %c0_i32_0 = arith.constant 0 : i32
    %c0_i32_1 = arith.constant 0 : i32
    return %arg1, %c0_i32, %c0_i32_0 : i32, i32, i32
  }
  func.func @transform_6(%arg0: i32, %arg1: i32) -> (i32, i32, i32) {
    %c0_i32 = arith.constant 0 : i32
    %c0_i32_0 = arith.constant 0 : i32
    %c0_i32_1 = arith.constant 0 : i32
    return %arg1, %c0_i32, %c0_i32_0 : i32, i32, i32
  }
  func.func @transform_7(%arg0: i32, %arg1: i32) -> (i32, i32, i32) {
    %c0_i32 = arith.constant 0 : i32
    %c0_i32_0 = arith.constant 0 : i32
    %c0_i32_1 = arith.constant 0 : i32
    return %arg1, %c0_i32, %c0_i32_0 : i32, i32, i32
  }
  func.func @transform_8(%arg0: i32, %arg1: i32) -> (i32, i32, i32) {
    %c0_i32 = arith.constant 0 : i32
    %c0_i32_0 = arith.constant 0 : i32
    %c0_i32_1 = arith.constant 0 : i32
    return %arg1, %c0_i32, %c0_i32_0 : i32, i32, i32
  }
  func.func @transform_9(%arg0: i32, %arg1: i32) -> (i32, i32, i32) {
    %c0_i32 = arith.constant 0 : i32
    %c0_i32_0 = arith.constant 0 : i32
    %c0_i32_1 = arith.constant 0 : i32
    return %arg1, %c0_i32, %c0_i32_0 : i32, i32, i32
  }
  func.func @transform_10(%arg0: i32, %arg1: i32) -> (i32, i32, i32) {
    %c0_i32 = arith.constant 0 : i32
    %c0_i32_0 = arith.constant 0 : i32
    %c0_i32_1 = arith.constant 0 : i32
    return %arg1, %c0_i32, %c0_i32_0 : i32, i32, i32
  }
  func.func @transform_11(%arg0: i32, %arg1: i32) -> (i32, i32, i32) {
    %c0_i32 = arith.constant 0 : i32
    %c0_i32_0 = arith.constant 0 : i32
    %c0_i32_1 = arith.constant 0 : i32
    return %arg1, %c0_i32, %c0_i32_0 : i32, i32, i32
  }
  func.func @transform_12(%arg0: i32, %arg1: i32) -> (i32, i32, i32) {
    %c0_i32 = arith.constant 0 : i32
    %c0_i32_0 = arith.constant 0 : i32
    %c0_i32_1 = arith.constant 0 : i32
    return %arg1, %c0_i32, %c0_i32_0 : i32, i32, i32
  }
  func.func @transform_13(%arg0: i32, %arg1: i32) -> (i32, i32, i32) {
    %c0_i32 = arith.constant 0 : i32
    %c0_i32_0 = arith.constant 0 : i32
    %c0_i32_1 = arith.constant 0 : i32
    return %arg1, %c0_i32, %c0_i32_0 : i32, i32, i32
  }
  func.func @transform_14(%arg0: i32, %arg1: i32) -> (i32, i32, i32) {
    %c0_i32 = arith.constant 0 : i32
    %c0_i32_0 = arith.constant 0 : i32
    %c0_i32_1 = arith.constant 0 : i32
    return %arg1, %c0_i32, %c0_i32_0 : i32, i32, i32
  }
  func.func @transform_15(%arg0: i32, %arg1: i32) -> (i32, i32, i32) {
    %c0_i32 = arith.constant 0 : i32
    %c0_i32_0 = arith.constant 0 : i32
    %c0_i32_1 = arith.constant 0 : i32
    return %arg1, %c0_i32, %c0_i32_0 : i32, i32, i32
  }
  func.func @transform_16(%arg0: i32, %arg1: i32) -> (i32, i32, i32) {
    %c0_i32 = arith.constant 0 : i32
    %c0_i32_0 = arith.constant 0 : i32
    %c0_i32_1 = arith.constant 0 : i32
    return %arg0, %c0_i32, %c0_i32_0 : i32, i32, i32
  }
}

</mosaic_0001>

<llo_original>
// kernel: tpu_custom_call.1
$region0: #{tpu_custom_call.1}
  #allocation0 [shape = 'u32[]', space=smem, size = 0x4, offset = 0x4, fixed_abs, tag = 'smem constant byte address 0x4 - core index']
  #allocation1 [shape = 'u32[144,128]{1,0:T(1,128)}', space=vmem, size = 0x12000, scoped, tag = 'internal scratch']
  #allocation2 [shape = 'f32[16,256]{1,0:T(8,128)}', space=vmem, size = 0x4000, scoped, tag = 'scratch operand']
  %s0 = inlined_call_operand.hbm [shape: f32[2,16,256], index: 0, kind: input, shape index: {}]
  %s1 = inlined_call_operand.hbm [shape: f32[2,1,16], index: 1, kind: input, shape index: {}]
  %s2 = inlined_call_operand.hbm [shape: bf16[2,256,256], index: 2, kind: input, shape index: {}]
  %s3 = inlined_call_operand.hbm [shape: f32[2,1,256], index: 3, kind: input, shape index: {}]
  %s4 = inlined_call_operand.hbm [shape: bf16[2,256,512], index: 4, kind: input, shape index: {}]
  %s5 = inlined_call_operand.vmem [shape: f32[2,1,512], index: 5, kind: input, shape index: {}]
  %s6 = inlined_call_operand.hbm [shape: bf16[2,256,256], index: 6, kind: input, shape index: {}]
  %s7 = inlined_call_operand.vmem [shape: f32[2,1,256], index: 7, kind: input, shape index: {}]
  %s8 = inlined_call_operand.vmem [shape: f32[2,1,256], index: 8, kind: input, shape index: {}]
  %s9 = inlined_call_operand.vmem [shape: f32[2,1,256], index: 9, kind: input, shape index: {}]
  %s10 = inlined_call_operand.hbm [shape: bf16[2,256,512], index: 10, kind: input, shape index: {}]
  %s11 = inlined_call_operand.vmem [shape: f32[2,1,512], index: 11, kind: input, shape index: {}]
  %s12 = inlined_call_operand.hbm [shape: bf16[2,512,256], index: 12, kind: input, shape index: {}]
  %s13 = inlined_call_operand.vmem [shape: f32[2,1,256], index: 13, kind: input, shape index: {}]
  %s14 = inlined_call_operand.vmem [shape: f32[2,1,256], index: 14, kind: input, shape index: {}]
  %s15 = inlined_call_operand.vmem [shape: f32[2,1,256], index: 15, kind: input, shape index: {}]
  %s16 = inlined_call_operand.hbm [shape: bf16[2,16,256], index: 16, kind: output, shape index: {}]
  %s17 = sld [smem:[#allocation0]]
  $region137: #{tpu_custom_call.1} parent=0
    _
  %s19 = ssub.s32 1, %s17
  %s20 = scalar_select 0, %s19, %s17
  $region1: #{tpu_custom_call.1} parent=0
    #allocation3 [shape = 'u8[32768]{0}', space=vmem, size = 0x8000, scoped, tag = 'input window, operand 0']
    #allocation4 [shape = 's32[2]{0}', space=sflag, size = 0x8, scoped, tag = 'scoped memory for tpu_custom_call.1']
    #allocation5 [shape = 's32[2]{0}', space=sflag, size = 0x8, scoped, tag = 'scoped memory for tpu_custom_call.1']
    #allocation6 [shape = 'u8[1024]{0}', space=vmem, size = 0x400, scoped, tag = 'input window, operand 1']
    #allocation7 [shape = 's32[2]{0}', space=sflag, size = 0x8, scoped, tag = 'scoped memory for tpu_custom_call.1']
    #allocation8 [shape = 'u8[262144]{0}', space=vmem, size = 0x40000, scoped, tag = 'input window, operand 2']
    #allocation9 [shape = 'u8[2048]{0}', space=vmem, size = 0x800, scoped, tag = 'input window, operand 3']
    #allocation10 [shape = 's32[2]{0}', space=sflag, size = 0x8, scoped, tag = 'scoped memory for tpu_custom_call.1']
    #allocation11 [shape = 'u8[524288]{0}', space=vmem, size = 0x80000, scoped, tag = 'input window, operand 4']
    #allocation12 [shape = 'u8[262144]{0}', space=vmem, size = 0x40000, scoped, tag = 'input window, operand 6']
    #allocation13 [shape = 's32[2]{0}', space=sflag, size = 0x8, scoped, tag = 'scoped memory for tpu_custom_call.1']
    #allocation14 [shape = 'u8[524288]{0}', space=vmem, size = 0x80000, scoped, tag = 'input window, operand 10']
    #allocation15 [shape = 'u8[524288]{0}', space=vmem, size = 0x80000, scoped, tag = 'input window, operand 12']
    #allocation16 [shape = 's32[2]{0}', space=sflag, size = 0x8, scoped, tag = 'scoped memory for tpu_custom_call.1']
    #allocation17 [shape = 'u8[16384]{0}', space=vmem, size = 0x4000, scoped, tag = 'output window, operand 0']
    %21 = vsyncpa [#allocation4], 0
    %s22 = scalar_lea.sflag [#allocation4], 1
    %23 = vsyncpa %s22, 0
    %24 = vsyncpa [#allocation7], 0
    %s25 = scalar_lea.sflag [#allocation7], 1
    %26 = vsyncpa %s25, 0
    %27 = vsyncpa [#allocation10], 0
    %s28 = scalar_lea.sflag [#allocation10], 1
    %29 = vsyncpa %s28, 0
    %30 = vsyncpa [#allocation13], 0
    %s31 = scalar_lea.sflag [#allocation13], 1
    %32 = vsyncpa %s31, 0
    %33 = vsyncpa [#allocation16], 0
    %s34 = scalar_lea.sflag [#allocation16], 1
    %35 = vsyncpa %s34, 0
    %36 = vsyncpa [#allocation5], 0
    %s37 = scalar_lea.sflag [#allocation5], 1
    %38 = vsyncpa %s37, 0
    loop: start=0, step=1, limit=6
    $region2: #{tpu_custom_call.1} parent=1 // loop_pre_header
      _
    $region3: #{tpu_custom_call.1} parent=1 // loop_header
      %s40 = sphi 0, %s44
      %p41 = scmp.ge.s32.totalorder %s40, 6
      %s47 = sphi 0, %s59
      %s48 = sphi 0, %s55
      %s49 = sphi 0, %s47
      %s50 = sphi 0, %s48
      %s51 = sphi 0, %s49
      %s52 = sphi 0, %s50
      %s62 = sphi 0, %s64
      %s65 = sphi 0, %s62
      %s66 = sphi 0, %s65
      %s82 = sphi 0, %s66
      %s88 = sphi 0, %s90
      %s91 = sphi 0, %s88
      %s92 = sphi 0, %s91
      %s108 = sphi 0, %s92
      %s114 = sphi 0, %s116
      %s117 = sphi 0, %s114
      %s118 = sphi 0, %s117
      %s134 = sphi 0, %s118
      %s140 = sphi 0, %s142
      %s143 = sphi 0, %s140
      %s144 = sphi 0, %s143
      %s160 = sphi 0, %s144
      %s166 = sphi 0, %s168
      %s169 = sphi 0, %s166
      %s170 = sphi 0, %s169
      %s186 = sphi 0, %s170
      %s192 = sphi 0, %s194
      %s195 = sphi 0, %s192
      %s196 = sphi 0, %s195
      %s212 = sphi 0, %s196
      %s218 = sphi 0, %s220
      %s221 = sphi 0, %s218
      %s222 = sphi 0, %s221
      %s238 = sphi 0, %s222
      %s244 = sphi 0, %s246
      %s247 = sphi 0, %s244
      %s248 = sphi 0, %s247
      %s264 = sphi 0, %s248
      %s270 = sphi 0, %s272
      %s273 = sphi 0, %s270
      %s274 = sphi 0, %s273
      %s290 = sphi 0, %s274
      %s296 = sphi 0, %s298
      %s299 = sphi 0, %s296
      %s300 = sphi 0, %s299
      %s316 = sphi 0, %s300
      %s322 = sphi 0, %s324
      %s325 = sphi 0, %s322
      %s326 = sphi 0, %s325
      %s342 = sphi 0, %s326
      %s348 = sphi 0, %s350
      %s351 = sphi 0, %s348
      %s352 = sphi 0, %s351
      %s368 = sphi 0, %s352
      %s374 = sphi 0, %s376
      %s377 = sphi 0, %s374
      %s378 = sphi 0, %s377
      %s394 = sphi 0, %s378
      %s400 = sphi 0, %s402
      %s403 = sphi 0, %s400
      %s404 = sphi 0, %s403
      %s420 = sphi 0, %s404
      %s426 = sphi 0, %s428
      %s429 = sphi 0, %s426
      %s430 = sphi 0, %s429
      %s446 = sphi 0, %s430
      %s452 = sphi 0, %s454
      %s455 = sphi 0, %s452
      %s456 = sphi 0, %s455
      %s472 = sphi 0, %s456
      %s478 = sphi 0, %s480
      %s481 = sphi 0, %s478
      %s482 = sphi 0, %s481
      %s498 = sphi 0, %s482
    $region4: #{tpu_custom_call.1} parent=1 // loop_header_branch
      %43 = sbr.rel (%p41) target = $region8
    $region5: #{tpu_custom_call.1} parent=1 // loop_body
      %s45 = ssub.s32 %s40, 1
      %s46 = ssub.s32 %s40, 2
      %s53 = sadd.s32 1, %s48
      %p54 = scmp.ge.s32.totalorder %s53, 2
      %s55 = scalar_select %p54, 0, %s53
      %s56 = sadd.s32 1, %s47
      %s57 = scalar_select %p54, %s56, %s47
      %p58 = scmp.ge.s32.totalorder %s57, 2
      %s59 = scalar_select %p58, 0, %s57
      %s60 = ssub.s32 %s47, %s59
      %p61 = scmp.eq.s32.totalorder %s60, 0
      %s63 = sadd.s32 %s62, 1
      %s64 = scalar_select %p61, %s62, %s63
      %p67 = pneg %p61
      %p68 = scmp.eq.s32.totalorder %s40, 3
      %p69 = por %p67, %p68
      %p70 = scmp.ne.s32.totalorder %s62, %s65
      %p71 = scmp.eq.s32.totalorder %s40, 0
      %p72 = por %p70, %p71
      %p73 = scmp.ne.s32.totalorder %s62, %s65
      %p74 = scmp.eq.s32.totalorder %s45, 3
      %p75 = por %p73, %p74
      %p76 = scmp.ne.s32.totalorder %s65, %s66
      %p77 = scmp.eq.s32.totalorder %s45, 0
      %p78 = por %p76, %p77
      %p79 = scmp.ne.s32.totalorder %s65, %s66
      %p80 = scmp.eq.s32.totalorder %s46, 3
      %p81 = por %p79, %p80
      %p83 = scmp.ne.s32.totalorder %s66, %s82
      %p84 = scmp.eq.s32.totalorder %s46, 0
      %p85 = por %p83, %p84
      %s86 = ssub.s32 %s47, %s59
      %p87 = scmp.eq.s32.totalorder %s86, 0
      %s89 = sadd.s32 %s88, 1
      %s90 = scalar_select %p87, %s88, %s89
      %p93 = pneg %p87
      %p94 = scmp.eq.s32.totalorder %s40, 3
      %p95 = por %p93, %p94
      %p96 = scmp.ne.s32.totalorder %s88, %s91
      %p97 = scmp.eq.s32.totalorder %s40, 0
      %p98 = por %p96, %p97
      %p99 = scmp.ne.s32.totalorder %s88, %s91
      %p100 = scmp.eq.s32.totalorder %s45, 3
      %p101 = por %p99, %p100
      %p102 = scmp.ne.s32.totalorder %s91, %s92
      %p103 = scmp.eq.s32.totalorder %s45, 0
      %p104 = por %p102, %p103
      %p105 = scmp.ne.s32.totalorder %s91, %s92
      %p106 = scmp.eq.s32.totalorder %s46, 3
      %p107 = por %p105, %p106
      %p109 = scmp.ne.s32.totalorder %s92, %s108
      %p110 = scmp.eq.s32.totalorder %s46, 0
      %p111 = por %p109, %p110
      %s112 = ssub.s32 %s48, %s55
      %p113 = scmp.eq.s32.totalorder %s112, 0
      %s115 = sadd.s32 %s114, 1
      %s116 = scalar_select %p113, %s114, %s115
      %p119 = pneg %p113
      %p120 = scmp.eq.s32.totalorder %s40, 3
      %p121 = por %p119, %p120
      %p122 = scmp.ne.s32.totalorder %s114, %s117
      %p123 = scmp.eq.s32.totalorder %s40, 0
      %p124 = por %p122, %p123
      %p125 = scmp.ne.s32.totalorder %s114, %s117
      %p126 = scmp.eq.s32.totalorder %s45, 3
      %p127 = por %p125, %p126
      %p128 = scmp.ne.s32.totalorder %s117, %s118
      %p129 = scmp.eq.s32.totalorder %s45, 0
      %p130 = por %p128, %p129
      %p131 = scmp.ne.s32.totalorder %s117, %s118
      %p132 = scmp.eq.s32.totalorder %s46, 3
      %p133 = por %p131, %p132
      %p135 = scmp.ne.s32.totalorder %s118, %s134
      %p136 = scmp.eq.s32.totalorder %s46, 0
      %p137 = por %p135, %p136
      %s138 = ssub.s32 %s48, %s55
      %p139 = scmp.eq.s32.totalorder %s138, 0
      %s141 = sadd.s32 %s140, 1
      %s142 = scalar_select %p139, %s140, %s141
      %p145 = pneg %p139
      %p146 = scmp.eq.s32.totalorder %s40, 3
      %p147 = por %p145, %p146
      %p148 = scmp.ne.s32.totalorder %s140, %s143
      %p149 = scmp.eq.s32.totalorder %s40, 0
      %p150 = por %p148, %p149
      %p151 = scmp.ne.s32.totalorder %s140, %s143
      %p152 = scmp.eq.s32.totalorder %s45, 3
      %p153 = por %p151, %p152
      %p154 = scmp.ne.s32.totalorder %s143, %s144
      %p155 = scmp.eq.s32.totalorder %s45, 0
      %p156 = por %p154, %p155
      %p157 = scmp.ne.s32.totalorder %s143, %s144
      %p158 = scmp.eq.s32.totalorder %s46, 3
      %p159 = por %p157, %p158
      %p161 = scmp.ne.s32.totalorder %s144, %s160
      %p162 = scmp.eq.s32.totalorder %s46, 0
      %p163 = por %p161, %p162
      %s164 = ssub.s32 %s48, %s55
      %p165 = scmp.eq.s32.totalorder %s164, 0
      %s167 = sadd.s32 %s166, 1
      %s168 = scalar_select %p165, %s166, %s167
      %p171 = pneg %p165
      %p172 = scmp.eq.s32.totalorder %s40, 3
      %p173 = por %p171, %p172
      %p174 = scmp.ne.s32.totalorder %s166, %s169
      %p175 = scmp.eq.s32.totalorder %s40, 0
      %p176 = por %p174, %p175
      %p177 = scmp.ne.s32.totalorder %s166, %s169
      %p178 = scmp.eq.s32.totalorder %s45, 3
      %p179 = por %p177, %p178
      %p180 = scmp.ne.s32.totalorder %s169, %s170
      %p181 = scmp.eq.s32.totalorder %s45, 0
      %p182 = por %p180, %p181
      %p183 = scmp.ne.s32.totalorder %s169, %s170
      %p184 = scmp.eq.s32.totalorder %s46, 3
      %p185 = por %p183, %p184
      %p187 = scmp.ne.s32.totalorder %s170, %s186
      %p188 = scmp.eq.s32.totalorder %s46, 0
      %p189 = por %p187, %p188
      %s190 = ssub.s32 %s48, %s55
      %p191 = scmp.eq.s32.totalorder %s190, 0
      %s193 = sadd.s32 %s192, 1
      %s194 = scalar_select %p191, %s192, %s193
      %p197 = pneg %p191
      %p198 = scmp.eq.s32.totalorder %s40, 3
      %p199 = por %p197, %p198
      %p200 = scmp.ne.s32.totalorder %s192, %s195
      %p201 = scmp.eq.s32.totalorder %s40, 0
      %p202 = por %p200, %p201
      %p203 = scmp.ne.s32.totalorder %s192, %s195
      %p204 = scmp.eq.s32.totalorder %s45, 3
      %p205 = por %p203, %p204
      %p206 = scmp.ne.s32.totalorder %s195, %s196
      %p207 = scmp.eq.s32.totalorder %s45, 0
      %p208 = por %p206, %p207
      %p209 = scmp.ne.s32.totalorder %s195, %s196
      %p210 = scmp.eq.s32.totalorder %s46, 3
      %p211 = por %p209, %p210
      %p213 = scmp.ne.s32.totalorder %s196, %s212
      %p214 = scmp.eq.s32.totalorder %s46, 0
      %p215 = por %p213, %p214
      %s216 = ssub.s32 %s48, %s55
      %p217 = scmp.eq.s32.totalorder %s216, 0
      %s219 = sadd.s32 %s218, 1
      %s220 = scalar_select %p217, %s218, %s219
      %p223 = pneg %p217
      %p224 = scmp.eq.s32.totalorder %s40, 3
      %p225 = por %p223, %p224
      %p226 = scmp.ne.s32.totalorder %s218, %s221
      %p227 = scmp.eq.s32.totalorder %s40, 0
      %p228 = por %p226, %p227
      %p229 = scmp.ne.s32.totalorder %s218, %s221
      %p230 = scmp.eq.s32.totalorder %s45, 3
      %p231 = por %p229, %p230
      %p232 = scmp.ne.s32.totalorder %s221, %s222
      %p233 = scmp.eq.s32.totalorder %s45, 0
      %p234 = por %p232, %p233
      %p235 = scmp.ne.s32.totalorder %s221, %s222
      %p236 = scmp.eq.s32.totalorder %s46, 3
      %p237 = por %p235, %p236
      %p239 = scmp.ne.s32.totalorder %s222, %s238
      %p240 = scmp.eq.s32.totalorder %s46, 0
      %p241 = por %p239, %p240
      %s242 = ssub.s32 %s48, %s55
      %p243 = scmp.eq.s32.totalorder %s242, 0
      %s245 = sadd.s32 %s244, 1
      %s246 = scalar_select %p243, %s244, %s245
      %p249 = pneg %p243
      %p250 = scmp.eq.s32.totalorder %s40, 3
      %p251 = por %p249, %p250
      %p252 = scmp.ne.s32.totalorder %s244, %s247
      %p253 = scmp.eq.s32.totalorder %s40, 0
      %p254 = por %p252, %p253
      %p255 = scmp.ne.s32.totalorder %s244, %s247
      %p256 = scmp.eq.s32.totalorder %s45, 3
      %p257 = por %p255, %p256
      %p258 = scmp.ne.s32.totalorder %s247, %s248
      %p259 = scmp.eq.s32.totalorder %s45, 0
      %p260 = por %p258, %p259
      %p261 = scmp.ne.s32.totalorder %s247, %s248
      %p262 = scmp.eq.s32.totalorder %s46, 3
      %p263 = por %p261, %p262
      %p265 = scmp.ne.s32.totalorder %s248, %s264
      %p266 = scmp.eq.s32.totalorder %s46, 0
      %p267 = por %p265, %p266
      %s268 = ssub.s32 %s48, %s55
      %p269 = scmp.eq.s32.totalorder %s268, 0
      %s271 = sadd.s32 %s270, 1
      %s272 = scalar_select %p269, %s270, %s271
      %p275 = pneg %p269
      %p276 = scmp.eq.s32.totalorder %s40, 3
      %p277 = por %p275, %p276
      %p278 = scmp.ne.s32.totalorder %s270, %s273
      %p279 = scmp.eq.s32.totalorder %s40, 0
      %p280 = por %p278, %p279
      %p281 = scmp.ne.s32.totalorder %s270, %s273
      %p282 = scmp.eq.s32.totalorder %s45, 3
      %p283 = por %p281, %p282
      %p284 = scmp.ne.s32.totalorder %s273, %s274
      %p285 = scmp.eq.s32.totalorder %s45, 0
      %p286 = por %p284, %p285
      %p287 = scmp.ne.s32.totalorder %s273, %s274
      %p288 = scmp.eq.s32.totalorder %s46, 3
      %p289 = por %p287, %p288
      %p291 = scmp.ne.s32.totalorder %s274, %s290
      %p292 = scmp.eq.s32.totalorder %s46, 0
      %p293 = por %p291, %p292
      %s294 = ssub.s32 %s48, %s55
      %p295 = scmp.eq.s32.totalorder %s294, 0
      %s297 = sadd.s32 %s296, 1
      %s298 = scalar_select %p295, %s296, %s297
      %p301 = pneg %p295
      %p302 = scmp.eq.s32.totalorder %s40, 3
      %p303 = por %p301, %p302
      %p304 = scmp.ne.s32.totalorder %s296, %s299
      %p305 = scmp.eq.s32.totalorder %s40, 0
      %p306 = por %p304, %p305
      %p307 = scmp.ne.s32.totalorder %s296, %s299
      %p308 = scmp.eq.s32.totalorder %s45, 3
      %p309 = por %p307, %p308
      %p310 = scmp.ne.s32.totalorder %s299, %s300
      %p311 = scmp.eq.s32.totalorder %s45, 0
      %p312 = por %p310, %p311
      %p313 = scmp.ne.s32.totalorder %s299, %s300
      %p314 = scmp.eq.s32.totalorder %s46, 3
      %p315 = por %p313, %p314
      %p317 = scmp.ne.s32.totalorder %s300, %s316
      %p318 = scmp.eq.s32.totalorder %s46, 0
      %p319 = por %p317, %p318
      %s320 = ssub.s32 %s48, %s55
      %p321 = scmp.eq.s32.totalorder %s320, 0
      %s323 = sadd.s32 %s322, 1
      %s324 = scalar_select %p321, %s322, %s323
      %p327 = pneg %p321
      %p328 = scmp.eq.s32.totalorder %s40, 3
      %p329 = por %p327, %p328
      %p330 = scmp.ne.s32.totalorder %s322, %s325
      %p331 = scmp.eq.s32.totalorder %s40, 0
      %p332 = por %p330, %p331
      %p333 = scmp.ne.s32.totalorder %s322, %s325
      %p334 = scmp.eq.s32.totalorder %s45, 3
      %p335 = por %p333, %p334
      %p336 = scmp.ne.s32.totalorder %s325, %s326
      %p337 = scmp.eq.s32.totalorder %s45, 0
      %p338 = por %p336, %p337
      %p339 = scmp.ne.s32.totalorder %s325, %s326
      %p340 = scmp.eq.s32.totalorder %s46, 3
      %p341 = por %p339, %p340
      %p343 = scmp.ne.s32.totalorder %s326, %s342
      %p344 = scmp.eq.s32.totalorder %s46, 0
      %p345 = por %p343, %p344
      %s346 = ssub.s32 %s48, %s55
      %p347 = scmp.eq.s32.totalorder %s346, 0
      %s349 = sadd.s32 %s348, 1
      %s350 = scalar_select %p347, %s348, %s349
      %p353 = pneg %p347
      %p354 = scmp.eq.s32.totalorder %s40, 3
      %p355 = por %p353, %p354
      %p356 = scmp.ne.s32.totalorder %s348, %s351
      %p357 = scmp.eq.s32.totalorder %s40, 0
      %p358 = por %p356, %p357
      %p359 = scmp.ne.s32.totalorder %s348, %s351
      %p360 = scmp.eq.s32.totalorder %s45, 3
      %p361 = por %p359, %p360
      %p362 = scmp.ne.s32.totalorder %s351, %s352
      %p363 = scmp.eq.s32.totalorder %s45, 0
      %p364 = por %p362, %p363
      %p365 = scmp.ne.s32.totalorder %s351, %s352
      %p366 = scmp.eq.s32.totalorder %s46, 3
      %p367 = por %p365, %p366
      %p369 = scmp.ne.s32.totalorder %s352, %s368
      %p370 = scmp.eq.s32.totalorder %s46, 0
      %p371 = por %p369, %p370
      %s372 = ssub.s32 %s48, %s55
      %p373 = scmp.eq.s32.totalorder %s372, 0
      %s375 = sadd.s32 %s374, 1
      %s376 = scalar_select %p373, %s374, %s375
      %p379 = pneg %p373
      %p380 = scmp.eq.s32.totalorder %s40, 3
      %p381 = por %p379, %p380
      %p382 = scmp.ne.s32.totalorder %s374, %s377
      %p383 = scmp.eq.s32.totalorder %s40, 0
      %p384 = por %p382, %p383
      %p385 = scmp.ne.s32.totalorder %s374, %s377
      %p386 = scmp.eq.s32.totalorder %s45, 3
      %p387 = por %p385, %p386
      %p388 = scmp.ne.s32.totalorder %s377, %s378
      %p389 = scmp.eq.s32.totalorder %s45, 0
      %p390 = por %p388, %p389
      %p391 = scmp.ne.s32.totalorder %s377, %s378
      %p392 = scmp.eq.s32.totalorder %s46, 3
      %p393 = por %p391, %p392
      %p395 = scmp.ne.s32.totalorder %s378, %s394
      %p396 = scmp.eq.s32.totalorder %s46, 0
      %p397 = por %p395, %p396
      %s398 = ssub.s32 %s48, %s55
      %p399 = scmp.eq.s32.totalorder %s398, 0
      %s401 = sadd.s32 %s400, 1
      %s402 = scalar_select %p399, %s400, %s401
      %p405 = pneg %p399
      %p406 = scmp.eq.s32.totalorder %s40, 3
      %p407 = por %p405, %p406
      %p408 = scmp.ne.s32.totalorder %s400, %s403
      %p409 = scmp.eq.s32.totalorder %s40, 0
      %p410 = por %p408, %p409
      %p411 = scmp.ne.s32.totalorder %s400, %s403
      %p412 = scmp.eq.s32.totalorder %s45, 3
      %p413 = por %p411, %p412
      %p414 = scmp.ne.s32.totalorder %s403, %s404
      %p415 = scmp.eq.s32.totalorder %s45, 0
      %p416 = por %p414, %p415
      %p417 = scmp.ne.s32.totalorder %s403, %s404
      %p418 = scmp.eq.s32.totalorder %s46, 3
      %p419 = por %p417, %p418
      %p421 = scmp.ne.s32.totalorder %s404, %s420
      %p422 = scmp.eq.s32.totalorder %s46, 0
      %p423 = por %p421, %p422
      %s424 = ssub.s32 %s48, %s55
      %p425 = scmp.eq.s32.totalorder %s424, 0
      %s427 = sadd.s32 %s426, 1
      %s428 = scalar_select %p425, %s426, %s427
      %p431 = pneg %p425
      %p432 = scmp.eq.s32.totalorder %s40, 3
      %p433 = por %p431, %p432
      %p434 = scmp.ne.s32.totalorder %s426, %s429
      %p435 = scmp.eq.s32.totalorder %s40, 0
      %p436 = por %p434, %p435
      %p437 = scmp.ne.s32.totalorder %s426, %s429
      %p438 = scmp.eq.s32.totalorder %s45, 3
      %p439 = por %p437, %p438
      %p440 = scmp.ne.s32.totalorder %s429, %s430
      %p441 = scmp.eq.s32.totalorder %s45, 0
      %p442 = por %p440, %p441
      %p443 = scmp.ne.s32.totalorder %s429, %s430
      %p444 = scmp.eq.s32.totalorder %s46, 3
      %p445 = por %p443, %p444
      %p447 = scmp.ne.s32.totalorder %s430, %s446
      %p448 = scmp.eq.s32.totalorder %s46, 0
      %p449 = por %p447, %p448
      %s450 = ssub.s32 %s48, %s55
      %p451 = scmp.eq.s32.totalorder %s450, 0
      %s453 = sadd.s32 %s452, 1
      %s454 = scalar_select %p451, %s452, %s453
      %p457 = pneg %p451
      %p458 = scmp.eq.s32.totalorder %s40, 3
      %p459 = por %p457, %p458
      %p460 = scmp.ne.s32.totalorder %s452, %s455
      %p461 = scmp.eq.s32.totalorder %s40, 0
      %p462 = por %p460, %p461
      %p463 = scmp.ne.s32.totalorder %s452, %s455
      %p464 = scmp.eq.s32.totalorder %s45, 3
      %p465 = por %p463, %p464
      %p466 = scmp.ne.s32.totalorder %s455, %s456
      %p467 = scmp.eq.s32.totalorder %s45, 0
      %p468 = por %p466, %p467
      %p469 = scmp.ne.s32.totalorder %s455, %s456
      %p470 = scmp.eq.s32.totalorder %s46, 3
      %p471 = por %p469, %p470
      %p473 = scmp.ne.s32.totalorder %s456, %s472
      %p474 = scmp.eq.s32.totalorder %s46, 0
      %p475 = por %p473, %p474
      %s476 = ssub.s32 %s47, %s59
      %p477 = scmp.eq.s32.totalorder %s476, 0
      %s479 = sadd.s32 %s478, 1
      %s480 = scalar_select %p477, %s478, %s479
      %p483 = pneg %p477
      %p484 = scmp.eq.s32.totalorder %s40, 3
      %p485 = por %p483, %p484
      %p486 = scmp.ne.s32.totalorder %s478, %s481
      %p487 = scmp.eq.s32.totalorder %s40, 0
      %p488 = por %p486, %p487
      %p489 = scmp.ne.s32.totalorder %s478, %s481
      %p490 = scmp.eq.s32.totalorder %s45, 3
      %p491 = por %p489, %p490
      %p492 = scmp.ne.s32.totalorder %s481, %s482
      %p493 = scmp.eq.s32.totalorder %s45, 0
      %p494 = por %p492, %p493
      %p495 = scmp.ne.s32.totalorder %s481, %s482
      %p496 = scmp.eq.s32.totalorder %s46, 3
      %p497 = por %p495, %p496
      %p499 = scmp.ne.s32.totalorder %s482, %s498
      %p500 = scmp.eq.s32.totalorder %s46, 0
      %p501 = por %p499, %p500
      %p502 = scmp.le.s32.totalorder 1, %s40
      %p503 = scmp.lt.s32.totalorder %s40, 5
      %p504 = pnand %p502, %p503
      %p505 = pneg %p504
      // Predicated region
      $region9: #{tpu_custom_call.1} parent=5 // pred_check
        _
      $region10: #{tpu_custom_call.1} parent=5 // pred_check_branch
        %507 = sbr.rel (%p504) target = $region12
      $region11: #{tpu_custom_call.1} parent=5 // pred_region
        %s508 = ssub.s32 %s40, 1
      $region12: #{tpu_custom_call.1} parent=5 // pred_fallthru
        _
      %p509 = scmp.lt.s32.totalorder %s40, 4
      // Predicated region
      $region13: #{tpu_custom_call.1} parent=5 // pred_check
        %p510 = pneg %p509
      $region14: #{tpu_custom_call.1} parent=5 // pred_check_branch
        %512 = sbr.rel (%p510) target = $region16
      $region15: #{tpu_custom_call.1} parent=5 // pred_region
        // Predicated region
        $region17: #{tpu_custom_call.1} parent=15 // pred_check
          %p513 = pneg %p72
        $region18: #{tpu_custom_call.1} parent=15 // pred_check_branch
          %515 = sbr.rel (%p513) target = $region20
        $region19: #{tpu_custom_call.1} parent=15 // pred_region
          %s516 = sand.u32 %s62, 1
          %s517 = scalar_lea.sflag [#allocation4], %s516
          %s518 = sand.u32 %s62, 1
          %s519 = smul.addr %s518, 32
          %s520 = scalar_lea.vmem [#allocation3], %s519
          %s522 = ssub.s32 512, 512
          %523 = vsyncadd %s517, %s522
          %s524 = smul.addr %s47, 4
          %s525 = smul.addr %s524, 128
          %s526 = scalar_lea.hbm %s0, %s525
          %s527 = sshll.u32 %s520, 4
          %s528 = int_to_ptr.vmem [resolvable:$true] %s527
          %533 = dma.hbm_to_vmem [thread:$0]  %s526, 512, %s528, %s517, 256, 256, 16
        $region20: #{tpu_custom_call.1} parent=15 // pred_fallthru
          _
        // Predicated region
        $region21: #{tpu_custom_call.1} parent=15 // pred_check
          %p534 = pneg %p98
        $region22: #{tpu_custom_call.1} parent=15 // pred_check_branch
          %536 = sbr.rel (%p534) target = $region24
        $region23: #{tpu_custom_call.1} parent=15 // pred_region
          %s537 = sand.u32 %s40, 1
          %s538 = scalar_lea.sflag [#allocation7], %s537
          %s539 = sand.u32 %s88, 1
          %s540 = scalar_lea.vmem [#allocation6], %s539
          %s542 = ssub.s32 16, 16
          %543 = vsyncadd %s538, %s542
          %s544 = smul.addr %s47, 16
          %s545 = scalar_lea.hbm %s1, %s544
          %s547 = sshll.u32 %s540, 4
          %s548 = int_to_ptr.vmem [resolvable:$true] %s547
          %550 = dma.hbm_to_vmem [thread:$0]  %s545, 16, %s548, %s538
        $region24: #{tpu_custom_call.1} parent=15 // pred_fallthru
          _
        // Predicated region
        $region25: #{tpu_custom_call.1} parent=15 // pred_check
          %p551 = pneg %p124
        $region26: #{tpu_custom_call.1} parent=15 // pred_check_branch
          %553 = sbr.rel (%p551) target = $region28
        $region27: #{tpu_custom_call.1} parent=15 // pred_region
          %s554 = sand.u32 %s40, 1
          %s555 = scalar_lea.sflag [#allocation7], %s554
          %s556 = sand.u32 %s114, 1
          %s557 = smul.addr %s556, 256
          %s558 = scalar_lea.vmem [#allocation8], %s557
          %s560 = ssub.s32 4096, 4096
          %561 = vsyncadd %s555, %s560
          %s562 = smul.addr %s48, 64
          %s563 = smul.addr %s562, 64
          %s564 = scalar_lea.hbm %s2, %s563
          %s565 = sshll.u32 %s558, 4
          %s566 = int_to_ptr.vmem [resolvable:$true] %s565
          %571 = dma.hbm_to_vmem [thread:$0]  %s564, 4096, %s566, %s555, 128, 128, 8
        $region28: #{tpu_custom_call.1} parent=15 // pred_fallthru
          _
        // Predicated region
        $region29: #{tpu_custom_call.1} parent=15 // pred_check
          %p572 = pneg %p150
        $region30: #{tpu_custom_call.1} parent=15 // pred_check_branch
          %574 = sbr.rel (%p572) target = $region32
        $region31: #{tpu_custom_call.1} parent=15 // pred_region
          %s575 = sand.u32 %s40, 1
          %s576 = scalar_lea.sflag [#allocation10], %s575
          %s577 = sand.u32 %s140, 1
          %s578 = smul.addr %s577, 2
          %s579 = scalar_lea.vmem [#allocation9], %s578
          %s581 = ssub.s32 32, 32
          %582 = vsyncadd %s576, %s581
          %s583 = smul.addr %s48, 2
          %s584 = smul.addr %s583, 16
          %s585 = scalar_lea.hbm %s3, %s584
          %s587 = sshll.u32 %s579, 4
          %s588 = int_to_ptr.vmem [resolvable:$true] %s587
          %590 = dma.hbm_to_vmem [thread:$0]  %s585, 32, %s588, %s576
        $region32: #{tpu_custom_call.1} parent=15 // pred_fallthru
          _
        // Predicated region
        $region33: #{tpu_custom_call.1} parent=15 // pred_check
          %p591 = pneg %p176
        $region34: #{tpu_custom_call.1} parent=15 // pred_check_branch
          %593 = sbr.rel (%p591) target = $region36
        $region35: #{tpu_custom_call.1} parent=15 // pred_region
          %s594 = sand.u32 %s40, 1
          %s595 = scalar_lea.sflag [#allocation10], %s594
          %s596 = sand.u32 %s166, 1
          %s597 = smul.addr %s596, 512
          %s598 = scalar_lea.vmem [#allocation11], %s597
          %s600 = ssub.s32 8192, 8192
          %601 = vsyncadd %s595, %s600
          %s602 = smul.addr %s48, 128
          %s603 = smul.addr %s602, 64
          %s604 = scalar_lea.hbm %s4, %s603
          %s605 = sshll.u32 %s598, 4
          %s606 = int_to_ptr.vmem [resolvable:$true] %s605
          %611 = dma.hbm_to_vmem [thread:$0]  %s604, 8192, %s606, %s595, 256, 256, 16
        $region36: #{tpu_custom_call.1} parent=15 // pred_fallthru
          _
        // Predicated region
        $region37: #{tpu_custom_call.1} parent=15 // pred_check
          %p612 = pneg %p202
        $region38: #{tpu_custom_call.1} parent=15 // pred_check_branch
          %614 = sbr.rel (%p612) target = $region40
        $region39: #{tpu_custom_call.1} parent=15 // pred_region
          %p615 = scmp.lt.s32.totalorder %s48, 1
          %s616 = scalar_select %p615, %s48, 1
          %s617 = smul.addr %s616, 4
          %s618 = scalar_lea.vmem %s5, %s617
        $region40: #{tpu_custom_call.1} parent=15 // pred_fallthru
          _
        // Predicated region
        $region41: #{tpu_custom_call.1} parent=15 // pred_check
          %p619 = pneg %p228
        $region42: #{tpu_custom_call.1} parent=15 // pred_check_branch
          %621 = sbr.rel (%p619) target = $region44
        $region43: #{tpu_custom_call.1} parent=15 // pred_region
          %s622 = sand.u32 %s40, 1
          %s623 = scalar_lea.sflag [#allocation13], %s622
          %s624 = sand.u32 %s218, 1
          %s625 = smul.addr %s624, 256
          %s626 = scalar_lea.vmem [#allocation12], %s625
          %s628 = ssub.s32 4096, 4096
          %629 = vsyncadd %s623, %s628
          %s630 = smul.addr %s48, 64
          %s631 = smul.addr %s630, 64
          %s632 = scalar_lea.hbm %s6, %s631
          %s633 = sshll.u32 %s626, 4
          %s634 = int_to_ptr.vmem [resolvable:$true] %s633
          %639 = dma.hbm_to_vmem [thread:$0]  %s632, 4096, %s634, %s623, 128, 128, 8
        $region44: #{tpu_custom_call.1} parent=15 // pred_fallthru
          _
        // Predicated region
        $region45: #{tpu_custom_call.1} parent=15 // pred_check
          %p640 = pneg %p254
        $region46: #{tpu_custom_call.1} parent=15 // pred_check_branch
          %642 = sbr.rel (%p640) target = $region48
        $region47: #{tpu_custom_call.1} parent=15 // pred_region
          %p643 = scmp.lt.s32.totalorder %s48, 1
          %s644 = scalar_select %p643, %s48, 1
          %s645 = smul.addr %s644, 2
          %s646 = scalar_lea.vmem %s7, %s645
        $region48: #{tpu_custom_call.1} parent=15 // pred_fallthru
          _
        // Predicated region
        $region49: #{tpu_custom_call.1} parent=15 // pred_check
          %p647 = pneg %p280
        $region50: #{tpu_custom_call.1} parent=15 // pred_check_branch
          %649 = sbr.rel (%p647) target = $region52
        $region51: #{tpu_custom_call.1} parent=15 // pred_region
          %p650 = scmp.lt.s32.totalorder %s48, 1
          %s651 = scalar_select %p650, %s48, 1
          %s652 = smul.addr %s651, 2
          %s653 = scalar_lea.vmem %s8, %s652
        $region52: #{tpu_custom_call.1} parent=15 // pred_fallthru
          _
        // Predicated region
        $region53: #{tpu_custom_call.1} parent=15 // pred_check
          %p654 = pneg %p306
        $region54: #{tpu_custom_call.1} parent=15 // pred_check_branch
          %656 = sbr.rel (%p654) target = $region56
        $region55: #{tpu_custom_call.1} parent=15 // pred_region
          %p657 = scmp.lt.s32.totalorder %s48, 1
          %s658 = scalar_select %p657, %s48, 1
          %s659 = smul.addr %s658, 2
          %s660 = scalar_lea.vmem %s9, %s659
        $region56: #{tpu_custom_call.1} parent=15 // pred_fallthru
          _
        // Predicated region
        $region57: #{tpu_custom_call.1} parent=15 // pred_check
          %p661 = pneg %p332
        $region58: #{tpu_custom_call.1} parent=15 // pred_check_branch
          %663 = sbr.rel (%p661) target = $region60
        $region59: #{tpu_custom_call.1} parent=15 // pred_region
          %s664 = sand.u32 %s40, 1
          %s665 = scalar_lea.sflag [#allocation13], %s664
          %s666 = sand.u32 %s322, 1
          %s667 = smul.addr %s666, 512
          %s668 = scalar_lea.vmem [#allocation14], %s667
          %s670 = ssub.s32 8192, 8192
          %671 = vsyncadd %s665, %s670
          %s672 = smul.addr %s48, 128
          %s673 = smul.addr %s672, 64
          %s674 = scalar_lea.hbm %s10, %s673
          %s675 = sshll.u32 %s668, 4
          %s676 = int_to_ptr.vmem [resolvable:$true] %s675
          %681 = dma.hbm_to_vmem [thread:$0]  %s674, 8192, %s676, %s665, 256, 256, 16
        $region60: #{tpu_custom_call.1} parent=15 // pred_fallthru
          _
        // Predicated region
        $region61: #{tpu_custom_call.1} parent=15 // pred_check
          %p682 = pneg %p358
        $region62: #{tpu_custom_call.1} parent=15 // pred_check_branch
          %684 = sbr.rel (%p682) target = $region64
        $region63: #{tpu_custom_call.1} parent=15 // pred_region
          %p685 = scmp.lt.s32.totalorder %s48, 1
          %s686 = scalar_select %p685, %s48, 1
          %s687 = smul.addr %s686, 4
          %s688 = scalar_lea.vmem %s11, %s687
        $region64: #{tpu_custom_call.1} parent=15 // pred_fallthru
          _
        // Predicated region
        $region65: #{tpu_custom_call.1} parent=15 // pred_check
          %p689 = pneg %p384
        $region66: #{tpu_custom_call.1} parent=15 // pred_check_branch
          %691 = sbr.rel (%p689) target = $region68
        $region67: #{tpu_custom_call.1} parent=15 // pred_region
          %s692 = sand.u32 %s374, 1
          %s693 = scalar_lea.sflag [#allocation16], %s692
          %s694 = sand.u32 %s374, 1
          %s695 = smul.addr %s694, 512
          %s696 = scalar_lea.vmem [#allocation15], %s695
          %s698 = ssub.s32 8192, 8192
          %699 = vsyncadd %s693, %s698
          %s700 = smul.addr %s48, 128
          %s701 = smul.addr %s700, 64
          %s702 = scalar_lea.hbm %s12, %s701
          %s703 = sshll.u32 %s696, 4
          %s704 = int_to_ptr.vmem [resolvable:$true] %s703
          %709 = dma.hbm_to_vmem [thread:$0]  %s702, 8192, %s704, %s693, 128, 128, 8
        $region68: #{tpu_custom_call.1} parent=15 // pred_fallthru
          _
        // Predicated region
        $region69: #{tpu_custom_call.1} parent=15 // pred_check
          %p710 = pneg %p410
        $region70: #{tpu_custom_call.1} parent=15 // pred_check_branch
          %712 = sbr.rel (%p710) target = $region72
        $region71: #{tpu_custom_call.1} parent=15 // pred_region
          %p713 = scmp.lt.s32.totalorder %s48, 1
          %s714 = scalar_select %p713, %s48, 1
          %s715 = smul.addr %s714, 2
          %s716 = scalar_lea.vmem %s13, %s715
        $region72: #{tpu_custom_call.1} parent=15 // pred_fallthru
          _
        // Predicated region
        $region73: #{tpu_custom_call.1} parent=15 // pred_check
          %p717 = pneg %p436
        $region74: #{tpu_custom_call.1} parent=15 // pred_check_branch
          %719 = sbr.rel (%p717) target = $region76
        $region75: #{tpu_custom_call.1} parent=15 // pred_region
          %p720 = scmp.lt.s32.totalorder %s48, 1
          %s721 = scalar_select %p720, %s48, 1
          %s722 = smul.addr %s721, 2
          %s723 = scalar_lea.vmem %s14, %s722
        $region76: #{tpu_custom_call.1} parent=15 // pred_fallthru
          _
        // Predicated region
        $region77: #{tpu_custom_call.1} parent=15 // pred_check
          %p724 = pneg %p462
        $region78: #{tpu_custom_call.1} parent=15 // pred_check_branch
          %726 = sbr.rel (%p724) target = $region80
        $region79: #{tpu_custom_call.1} parent=15 // pred_region
          %p727 = scmp.lt.s32.totalorder %s48, 1
          %s728 = scalar_select %p727, %s48, 1
          %s729 = smul.addr %s728, 2
          %s730 = scalar_lea.vmem %s15, %s729
        $region80: #{tpu_custom_call.1} parent=15 // pred_fallthru
          _
      $region16: #{tpu_custom_call.1} parent=5 // pred_fallthru
        _
      %p731 = scmp.le.s32.totalorder 1, %s40
      %p732 = scmp.lt.s32.totalorder %s40, 5
      %p733 = pnand %p731, %p732
      %p734 = pneg %p733
      // Predicated region
      $region81: #{tpu_custom_call.1} parent=5 // pred_check
        _
      $region82: #{tpu_custom_call.1} parent=5 // pred_check_branch
        %736 = sbr.rel (%p733) target = $region84
      $region83: #{tpu_custom_call.1} parent=5 // pred_region
        %s737 = ssub.s32 %s40, 1
        %s738 = sand.u32 %s65, 1
        %s739 = scalar_lea.sflag [#allocation4], %s738
        %s740 = sand.u32 %s65, 1
        %s741 = smul.addr %s740, 32
        %s742 = scalar_lea.vmem [#allocation3], %s741
        // Predicated region
        $region85: #{tpu_custom_call.1} parent=83 // pred_check
          %p743 = pneg %p78
        $region86: #{tpu_custom_call.1} parent=83 // pred_check_branch
          %745 = sbr.rel (%p743) target = $region88
        $region87: #{tpu_custom_call.1} parent=83 // pred_region
          %746 = dma.done %s739, 512
        $region88: #{tpu_custom_call.1} parent=83 // pred_fallthru
          _
        %s747 = sand.u32 %s45, 1
        %s748 = scalar_lea.sflag [#allocation7], %s747
        %s749 = sand.u32 %s91, 1
        %s750 = scalar_lea.vmem [#allocation6], %s749
        // Predicated region
        $region89: #{tpu_custom_call.1} parent=83 // pred_check
          %p751 = pneg %p104
        $region90: #{tpu_custom_call.1} parent=83 // pred_check_branch
          %753 = sbr.rel (%p751) target = $region92
        $region91: #{tpu_custom_call.1} parent=83 // pred_region
          %754 = dma.done %s748, 16
        $region92: #{tpu_custom_call.1} parent=83 // pred_fallthru
          _
        %s755 = sand.u32 %s45, 1
        %s756 = scalar_lea.sflag [#allocation7], %s755
        %s757 = sand.u32 %s117, 1
        %s758 = smul.addr %s757, 256
        %s759 = scalar_lea.vmem [#allocation8], %s758
        // Predicated region
        $region93: #{tpu_custom_call.1} parent=83 // pred_check
          %p760 = pneg %p130
        $region94: #{tpu_custom_call.1} parent=83 // pred_check_branch
          %762 = sbr.rel (%p760) target = $region96
        $region95: #{tpu_custom_call.1} parent=83 // pred_region
          %763 = dma.done %s756, 4096
        $region96: #{tpu_custom_call.1} parent=83 // pred_fallthru
          _
        %s764 = sand.u32 %s45, 1
        %s765 = scalar_lea.sflag [#allocation10], %s764
        %s766 = sand.u32 %s143, 1
        %s767 = smul.addr %s766, 2
        %s768 = scalar_lea.vmem [#allocation9], %s767
        // Predicated region
        $region97: #{tpu_custom_call.1} parent=83 // pred_check
          %p769 = pneg %p156
        $region98: #{tpu_custom_call.1} parent=83 // pred_check_branch
          %771 = sbr.rel (%p769) target = $region100
        $region99: #{tpu_custom_call.1} parent=83 // pred_region
          %772 = dma.done %s765, 32
        $region100: #{tpu_custom_call.1} parent=83 // pred_fallthru
          _
        %s773 = sand.u32 %s45, 1
        %s774 = scalar_lea.sflag [#allocation10], %s773
        %s775 = sand.u32 %s169, 1
        %s776 = smul.addr %s775, 512
        %s777 = scalar_lea.vmem [#allocation11], %s776
        // Predicated region
        $region101: #{tpu_custom_call.1} parent=83 // pred_check
          %p778 = pneg %p182
        $region102: #{tpu_custom_call.1} parent=83 // pred_check_branch
          %780 = sbr.rel (%p778) target = $region104
        $region103: #{tpu_custom_call.1} parent=83 // pred_region
          %781 = dma.done %s774, 8192
        $region104: #{tpu_custom_call.1} parent=83 // pred_fallthru
          _
        %s782 = sand.u32 %s45, 1
        %s783 = scalar_lea.sflag [#allocation13], %s782
        %s784 = sand.u32 %s221, 1
        %s785 = smul.addr %s784, 256
        %s786 = scalar_lea.vmem [#allocation12], %s785
        // Predicated region
        $region105: #{tpu_custom_call.1} parent=83 // pred_check
          %p787 = pneg %p234
        $region106: #{tpu_custom_call.1} parent=83 // pred_check_branch
          %789 = sbr.rel (%p787) target = $region108
        $region107: #{tpu_custom_call.1} parent=83 // pred_region
          %790 = dma.done %s783, 4096
        $region108: #{tpu_custom_call.1} parent=83 // pred_fallthru
          _
        %s791 = sand.u32 %s45, 1
        %s792 = scalar_lea.sflag [#allocation13], %s791
        %s793 = sand.u32 %s325, 1
        %s794 = smul.addr %s793, 512
        %s795 = scalar_lea.vmem [#allocation14], %s794
        // Predicated region
        $region109: #{tpu_custom_call.1} parent=83 // pred_check
          %p796 = pneg %p338
        $region110: #{tpu_custom_call.1} parent=83 // pred_check_branch
          %798 = sbr.rel (%p796) target = $region112
        $region111: #{tpu_custom_call.1} parent=83 // pred_region
          %799 = dma.done %s792, 8192
        $region112: #{tpu_custom_call.1} parent=83 // pred_fallthru
          _
        %s800 = sand.u32 %s377, 1
        %s801 = scalar_lea.sflag [#allocation16], %s800
        %s802 = sand.u32 %s377, 1
        %s803 = smul.addr %s802, 512
        %s804 = scalar_lea.vmem [#allocation15], %s803
        // Predicated region
        $region113: #{tpu_custom_call.1} parent=83 // pred_check
          %p805 = pneg %p390
        $region114: #{tpu_custom_call.1} parent=83 // pred_check_branch
          %807 = sbr.rel (%p805) target = $region116
        $region115: #{tpu_custom_call.1} parent=83 // pred_region
          %808 = dma.done %s801, 8192
        $region116: #{tpu_custom_call.1} parent=83 // pred_fallthru
          _
        %s809 = sand.u32 %s65, 1
        %s810 = scalar_lea.sflag [#allocation4], %s809
        %s811 = sand.u32 %s65, 1
        %s812 = smul.addr %s811, 32
        %s813 = scalar_lea.vmem [#allocation3], %s812
        %p814 = pneg %p78
        %p815 = pneg %p75
        %s816 = sand.u32 %s45, 1
        %s817 = scalar_lea.sflag [#allocation7], %s816
        %s818 = sand.u32 %s91, 1
        %s819 = scalar_lea.vmem [#allocation6], %s818
        %p820 = pneg %p104
        %p821 = pneg %p101
        %s822 = sand.u32 %s45, 1
        %s823 = scalar_lea.sflag [#allocation7], %s822
        %s824 = sand.u32 %s117, 1
        %s825 = smul.addr %s824, 256
        %s826 = scalar_lea.vmem [#allocation8], %s825
        %p827 = pneg %p130
        %p828 = pneg %p127
        %s829 = sand.u32 %s45, 1
        %s830 = scalar_lea.sflag [#allocation10], %s829
        %s831 = sand.u32 %s143, 1
        %s832 = smul.addr %s831, 2
        %s833 = scalar_lea.vmem [#allocation9], %s832
        %p834 = pneg %p156
        %p835 = pneg %p153
        %s836 = sand.u32 %s45, 1
        %s837 = scalar_lea.sflag [#allocation10], %s836
        %s838 = sand.u32 %s169, 1
        %s839 = smul.addr %s838, 512
        %s840 = scalar_lea.vmem [#allocation11], %s839
        %p841 = pneg %p182
        %p842 = pneg %p179
        %p843 = scmp.lt.s32.totalorder %s50, 1
        %s844 = scalar_select %p843, %s50, 1
        %s845 = smul.addr %s844, 4
        %s846 = scalar_lea.vmem %s5, %s845
        %p847 = pneg %p208
        %p848 = pneg %p205
        %s849 = sand.u32 %s45, 1
        %s850 = scalar_lea.sflag [#allocation13], %s849
        %s851 = sand.u32 %s221, 1
        %s852 = smul.addr %s851, 256
        %s853 = scalar_lea.vmem [#allocation12], %s852
        %p854 = pneg %p234
        %p855 = pneg %p231
        %p856 = scmp.lt.s32.totalorder %s50, 1
        %s857 = scalar_select %p856, %s50, 1
        %s858 = smul.addr %s857, 2
        %s859 = scalar_lea.vmem %s7, %s858
        %p860 = pneg %p260
        %p861 = pneg %p257
        %p862 = scmp.lt.s32.totalorder %s50, 1
        %s863 = scalar_select %p862, %s50, 1
        %s864 = smul.addr %s863, 2
        %s865 = scalar_lea.vmem %s8, %s864
        %p866 = pneg %p286
        %p867 = pneg %p283
        %p868 = scmp.lt.s32.totalorder %s50, 1
        %s869 = scalar_select %p868, %s50, 1
        %s870 = smul.addr %s869, 2
        %s871 = scalar_lea.vmem %s9, %s870
        %p872 = pneg %p312
        %p873 = pneg %p309
        %s874 = sand.u32 %s45, 1
        %s875 = scalar_lea.sflag [#allocation13], %s874
        %s876 = sand.u32 %s325, 1
        %s877 = smul.addr %s876, 512
        %s878 = scalar_lea.vmem [#allocation14], %s877
        %p879 = pneg %p338
        %p880 = pneg %p335
        %p881 = scmp.lt.s32.totalorder %s50, 1
        %s882 = scalar_select %p881, %s50, 1
        %s883 = smul.addr %s882, 4
        %s884 = scalar_lea.vmem %s11, %s883
        %p885 = pneg %p364
        %p886 = pneg %p361
        %s887 = sand.u32 %s377, 1
        %s888 = scalar_lea.sflag [#allocation16], %s887
        %s889 = sand.u32 %s377, 1
        %s890 = smul.addr %s889, 512
        %s891 = scalar_lea.vmem [#allocation15], %s890
        %p892 = pneg %p390
        %p893 = pneg %p387
        %p894 = scmp.lt.s32.totalorder %s50, 1
        %s895 = scalar_select %p894, %s50, 1
        %s896 = smul.addr %s895, 2
        %s897 = scalar_lea.vmem %s13, %s896
        %p898 = pneg %p416
        %p899 = pneg %p413
        %p900 = scmp.lt.s32.totalorder %s50, 1
        %s901 = scalar_select %p900, %s50, 1
        %s902 = smul.addr %s901, 2
        %s903 = scalar_lea.vmem %s14, %s902
        %p904 = pneg %p442
        %p905 = pneg %p439
        %p906 = scmp.lt.s32.totalorder %s50, 1
        %s907 = scalar_select %p906, %s50, 1
        %s908 = smul.addr %s907, 2
        %s909 = scalar_lea.vmem %s15, %s908
        %p910 = pneg %p468
        %p911 = pneg %p465
        %p912 = pneg %p494
        %p913 = pneg %p491
        %s914 = sand.u32 %s481, 1
        %s915 = scalar_lea.sflag [#allocation5], %s914
        %s916 = sand.u32 %s481, 1
        %s917 = smul.addr %s916, 16
        %s918 = scalar_lea.vmem [#allocation17], %s917
        %p919 = scmp.lt.s32.totalorder %s50, 1
        %s920 = scalar_select %p919, %s50, 1
        %s921 = smul.addr %s920, 4
        %s922 = scalar_lea.vmem %s5, %s921
        %p923 = scmp.lt.s32.totalorder %s50, 1
        %s924 = scalar_select %p923, %s50, 1
        %s925 = smul.addr %s924, 2
        %s926 = scalar_lea.vmem %s7, %s925
        %p927 = scmp.lt.s32.totalorder %s50, 1
        %s928 = scalar_select %p927, %s50, 1
        %s929 = smul.addr %s928, 2
        %s930 = scalar_lea.vmem %s8, %s929
        %p931 = scmp.lt.s32.totalorder %s50, 1
        %s932 = scalar_select %p931, %s50, 1
        %s933 = smul.addr %s932, 2
        %s934 = scalar_lea.vmem %s9, %s933
        %p935 = scmp.lt.s32.totalorder %s50, 1
        %s936 = scalar_select %p935, %s50, 1
        %s937 = smul.addr %s936, 4
        %s938 = scalar_lea.vmem %s11, %s937
        %p939 = scmp.lt.s32.totalorder %s50, 1
        %s940 = scalar_select %p939, %s50, 1
        %s941 = smul.addr %s940, 2
        %s942 = scalar_lea.vmem %s13, %s941
        %p943 = scmp.lt.s32.totalorder %s50, 1
        %s944 = scalar_select %p943, %s50, 1
        %s945 = smul.addr %s944, 2
        %s946 = scalar_lea.vmem %s14, %s945
        %p947 = scmp.lt.s32.totalorder %s50, 1
        %s948 = scalar_select %p947, %s50, 1
        %s949 = smul.addr %s948, 2
        %s950 = scalar_lea.vmem %s15, %s949
        %p952 = scmp.eq.s32.totalorder %s50, 0
        // Predicated region
        $region117: #{tpu_custom_call.1} parent=83 // pred_check
          %p953 = pneg %p952
        $region118: #{tpu_custom_call.1} parent=83 // pred_check_branch
          %955 = sbr.rel (%p953) target = $region120
        $region119: #{tpu_custom_call.1} parent=83 // pred_region
          %v956 = vld [vmem:[%s742] sm:$0xff]
          %v957 = vld [vmem:[%s742 + $0x8] sm:$0xff]
          %v958 = vld [vmem:[%s742 + $0x10] sm:$0xff]
          %v959 = vld [vmem:[%s742 + $0x18] sm:$0xff]
          %960 = vst [vmem:[#allocation2] sm:$0xff] %v956
          %961 = vst [vmem:[#allocation2 + $0x8] sm:$0xff] %v957
          %962 = vst [vmem:[#allocation2 + $0x10] sm:$0xff] %v958
          %963 = vst [vmem:[#allocation2 + $0x18] sm:$0xff] %v959
        $region120: #{tpu_custom_call.1} parent=83 // pred_fallthru
          _
        %v964 = vld [vmem:[#allocation2] sm:$0xff]
        %v965 = vld [vmem:[#allocation2 + $0x8] sm:$0xff]
        %v966 = vld [vmem:[#allocation2 + $0x10] sm:$0xff]
        %v967 = vld [vmem:[#allocation2 + $0x18] sm:$0xff]
        %v968 = vld [vmem:[%s750] sm:$0x1]
        %v969 = vld [vmem:[%s759] sm:$0xff]
        %v970 = vld [vmem:[%s759 + $0x8] sm:$0xff]
        %v971 = vld [vmem:[%s759 + $0x10] sm:$0xff]
        %v972 = vld [vmem:[%s759 + $0x18] sm:$0xff]
        %v973 = vld [vmem:[%s759 + $0x20] sm:$0xff]
        %v974 = vld [vmem:[%s759 + $0x28] sm:$0xff]
        %v975 = vld [vmem:[%s759 + $0x30] sm:$0xff]
        %v976 = vld [vmem:[%s759 + $0x38] sm:$0xff]
        %v977 = vld [vmem:[%s759 + $0x40] sm:$0xff]
        %v978 = vld [vmem:[%s759 + $0x48] sm:$0xff]
        %v979 = vld [vmem:[%s759 + $0x50] sm:$0xff]
        %v980 = vld [vmem:[%s759 + $0x58] sm:$0xff]
        %v981 = vld [vmem:[%s759 + $0x60] sm:$0xff]
        %v982 = vld [vmem:[%s759 + $0x68] sm:$0xff]
        %v983 = vld [vmem:[%s759 + $0x70] sm:$0xff]
        %v984 = vld [vmem:[%s759 + $0x78] sm:$0xff]
        %v985 = vld [vmem:[%s759 + $0x80] sm:$0xff]
        %v986 = vld [vmem:[%s759 + $0x88] sm:$0xff]
        %v987 = vld [vmem:[%s759 + $0x90] sm:$0xff]
        %v988 = vld [vmem:[%s759 + $0x98] sm:$0xff]
        %v989 = vld [vmem:[%s759 + $0xa0] sm:$0xff]
        %v990 = vld [vmem:[%s759 + $0xa8] sm:$0xff]
        %v991 = vld [vmem:[%s759 + $0xb0] sm:$0xff]
        %v992 = vld [vmem:[%s759 + $0xb8] sm:$0xff]
        %v993 = vld [vmem:[%s759 + $0xc0] sm:$0xff]
        %v994 = vld [vmem:[%s759 + $0xc8] sm:$0xff]
        %v995 = vld [vmem:[%s759 + $0xd0] sm:$0xff]
        %v996 = vld [vmem:[%s759 + $0xd8] sm:$0xff]
        %v997 = vld [vmem:[%s759 + $0xe0] sm:$0xff]
        %v998 = vld [vmem:[%s759 + $0xe8] sm:$0xff]
        %v999 = vld [vmem:[%s759 + $0xf0] sm:$0xff]
        %v1000 = vld [vmem:[%s759 + $0xf8] sm:$0xff]
        %v1001 = vld [vmem:[%s768] sm:$0x3]
        %v1002 = vld [vmem:[%s777] sm:$0xff]
        %v1003 = vld [vmem:[%s777 + $0x8] sm:$0xff]
        %v1004 = vld [vmem:[%s777 + $0x10] sm:$0xff]
        %v1005 = vld [vmem:[%s777 + $0x18] sm:$0xff]
        %v1006 = vld [vmem:[%s777 + $0x20] sm:$0xff]
        %v1007 = vld [vmem:[%s777 + $0x28] sm:$0xff]
        %v1008 = vld [vmem:[%s777 + $0x30] sm:$0xff]
        %v1009 = vld [vmem:[%s777 + $0x38] sm:$0xff]
        %v1010 = vld [vmem:[%s777 + $0x40] sm:$0xff]
        %v1011 = vld [vmem:[%s777 + $0x48] sm:$0xff]
        %v1012 = vld [vmem:[%s777 + $0x50] sm:$0xff]
        %v1013 = vld [vmem:[%s777 + $0x58] sm:$0xff]
        %v1014 = vld [vmem:[%s777 + $0x60] sm:$0xff]
        %v1015 = vld [vmem:[%s777 + $0x68] sm:$0xff]
        %v1016 = vld [vmem:[%s777 + $0x70] sm:$0xff]
        %v1017 = vld [vmem:[%s777 + $0x78] sm:$0xff]
        %v1018 = vld [vmem:[%s777 + $0x80] sm:$0xff]
        %v1019 = vld [vmem:[%s777 + $0x88] sm:$0xff]
        %v1020 = vld [vmem:[%s777 + $0x90] sm:$0xff]
        %v1021 = vld [vmem:[%s777 + $0x98] sm:$0xff]
        %v1022 = vld [vmem:[%s777 + $0xa0] sm:$0xff]
        %v1023 = vld [vmem:[%s777 + $0xa8] sm:$0xff]
        %v1024 = vld [vmem:[%s777 + $0xb0] sm:$0xff]
        %v1025 = vld [vmem:[%s777 + $0xb8] sm:$0xff]
        %v1026 = vld [vmem:[%s777 + $0xc0] sm:$0xff]
        %v1027 = vld [vmem:[%s777 + $0xc8] sm:$0xff]
        %v1028 = vld [vmem:[%s777 + $0xd0] sm:$0xff]
        %v1029 = vld [vmem:[%s777 + $0xd8] sm:$0xff]
        %v1030 = vld [vmem:[%s777 + $0xe0] sm:$0xff]
        %v1031 = vld [vmem:[%s777 + $0xe8] sm:$0xff]
        %v1032 = vld [vmem:[%s777 + $0xf0] sm:$0xff]
        %v1033 = vld [vmem:[%s777 + $0xf8] sm:$0xff]
        %v1034 = vld [vmem:[%s777 + $0x100] sm:$0xff]
        %v1035 = vld [vmem:[%s777 + $0x108] sm:$0xff]
        %v1036 = vld [vmem:[%s777 + $0x110] sm:$0xff]
        %v1037 = vld [vmem:[%s777 + $0x118] sm:$0xff]
        %v1038 = vld [vmem:[%s777 + $0x120] sm:$0xff]
        %v1039 = vld [vmem:[%s777 + $0x128] sm:$0xff]
        %v1040 = vld [vmem:[%s777 + $0x130] sm:$0xff]
        %v1041 = vld [vmem:[%s777 + $0x138] sm:$0xff]
        %v1042 = vld [vmem:[%s777 + $0x140] sm:$0xff]
        %v1043 = vld [vmem:[%s777 + $0x148] sm:$0xff]
        %v1044 = vld [vmem:[%s777 + $0x150] sm:$0xff]
        %v1045 = vld [vmem:[%s777 + $0x158] sm:$0xff]
        %v1046 = vld [vmem:[%s777 + $0x160] sm:$0xff]
        %v1047 = vld [vmem:[%s777 + $0x168] sm:$0xff]
        %v1048 = vld [vmem:[%s777 + $0x170] sm:$0xff]
        %v1049 = vld [vmem:[%s777 + $0x178] sm:$0xff]
        %v1050 = vld [vmem:[%s777 + $0x180] sm:$0xff]
        %v1051 = vld [vmem:[%s777 + $0x188] sm:$0xff]
        %v1052 = vld [vmem:[%s777 + $0x190] sm:$0xff]
        %v1053 = vld [vmem:[%s777 + $0x198] sm:$0xff]
        %v1054 = vld [vmem:[%s777 + $0x1a0] sm:$0xff]
        %v1055 = vld [vmem:[%s777 + $0x1a8] sm:$0xff]
        %v1056 = vld [vmem:[%s777 + $0x1b0] sm:$0xff]
        %v1057 = vld [vmem:[%s777 + $0x1b8] sm:$0xff]
        %v1058 = vld [vmem:[%s777 + $0x1c0] sm:$0xff]
        %v1059 = vld [vmem:[%s777 + $0x1c8] sm:$0xff]
        %v1060 = vld [vmem:[%s777 + $0x1d0] sm:$0xff]
        %v1061 = vld [vmem:[%s777 + $0x1d8] sm:$0xff]
        %v1062 = vld [vmem:[%s777 + $0x1e0] sm:$0xff]
        %v1063 = vld [vmem:[%s777 + $0x1e8] sm:$0xff]
        %v1064 = vld [vmem:[%s777 + $0x1f0] sm:$0xff]
        %v1065 = vld [vmem:[%s777 + $0x1f8] sm:$0xff]
        %v1066 = vld [vmem:[%s922] sm:$0xf]
        %v1067 = vld [vmem:[%s786] sm:$0xff]
        %v1068 = vld [vmem:[%s786 + $0x8] sm:$0xff]
        %v1069 = vld [vmem:[%s786 + $0x10] sm:$0xff]
        %v1070 = vld [vmem:[%s786 + $0x18] sm:$0xff]
        %v1071 = vld [vmem:[%s786 + $0x20] sm:$0xff]
        %v1072 = vld [vmem:[%s786 + $0x28] sm:$0xff]
        %v1073 = vld [vmem:[%s786 + $0x30] sm:$0xff]
        %v1074 = vld [vmem:[%s786 + $0x38] sm:$0xff]
        %v1075 = vld [vmem:[%s786 + $0x40] sm:$0xff]
        %v1076 = vld [vmem:[%s786 + $0x48] sm:$0xff]
        %v1077 = vld [vmem:[%s786 + $0x50] sm:$0xff]
        %v1078 = vld [vmem:[%s786 + $0x58] sm:$0xff]
        %v1079 = vld [vmem:[%s786 + $0x60] sm:$0xff]
        %v1080 = vld [vmem:[%s786 + $0x68] sm:$0xff]
        %v1081 = vld [vmem:[%s786 + $0x70] sm:$0xff]
        %v1082 = vld [vmem:[%s786 + $0x78] sm:$0xff]
        %v1083 = vld [vmem:[%s786 + $0x80] sm:$0xff]
        %v1084 = vld [vmem:[%s786 + $0x88] sm:$0xff]
        %v1085 = vld [vmem:[%s786 + $0x90] sm:$0xff]
        %v1086 = vld [vmem:[%s786 + $0x98] sm:$0xff]
        %v1087 = vld [vmem:[%s786 + $0xa0] sm:$0xff]
        %v1088 = vld [vmem:[%s786 + $0xa8] sm:$0xff]
        %v1089 = vld [vmem:[%s786 + $0xb0] sm:$0xff]
        %v1090 = vld [vmem:[%s786 + $0xb8] sm:$0xff]
        %v1091 = vld [vmem:[%s786 + $0xc0] sm:$0xff]
        %v1092 = vld [vmem:[%s786 + $0xc8] sm:$0xff]
        %v1093 = vld [vmem:[%s786 + $0xd0] sm:$0xff]
        %v1094 = vld [vmem:[%s786 + $0xd8] sm:$0xff]
        %v1095 = vld [vmem:[%s786 + $0xe0] sm:$0xff]
        %v1096 = vld [vmem:[%s786 + $0xe8] sm:$0xff]
        %v1097 = vld [vmem:[%s786 + $0xf0] sm:$0xff]
        %v1098 = vld [vmem:[%s786 + $0xf8] sm:$0xff]
        %v1099 = vld [vmem:[%s926] sm:$0x3]
        %v1100 = vpack.c.bf16 %v966, %v964
        %v1101 = vpack.c.bf16 %v967, %v965
        %v1103 = vlaneseq
        %v1104 = vshrl.u32 %v1103, 7
        %v1105 = vsub.s32 0, %v1104
        %v1106 = vrot.slane %v1001, %v1105
        %v1107 = vlaneseq
        %v1108 = vshrl.u32 %v1107, 7
        %v1109 = vsub.s32 1, %v1108
        %v1110 = vrot.slane %v1001, %v1109
        %v1145 = vunpack.c.l.b16 %v969
        %v1146 = vunpack.c.h.b16 %v969
        %v1147 = vunpack.c.l.b16 %v970
        %v1148 = vunpack.c.h.b16 %v970
        %v1149 = vunpack.c.l.b16 %v971
        %v1150 = vunpack.c.h.b16 %v971
        %v1151 = vunpack.c.l.b16 %v972
        %v1152 = vunpack.c.h.b16 %v972
        %v1153 = vunpack.c.l.b16 %v973
        %v1154 = vunpack.c.h.b16 %v973
        %v1155 = vunpack.c.l.b16 %v974
        %v1156 = vunpack.c.h.b16 %v974
        %v1157 = vunpack.c.l.b16 %v975
        %v1158 = vunpack.c.h.b16 %v975
        %v1159 = vunpack.c.l.b16 %v976
        %v1160 = vunpack.c.h.b16 %v976
        %v1161 = vunpack.c.l.b16 %v977
        %v1162 = vunpack.c.h.b16 %v977
        %v1163 = vunpack.c.l.b16 %v978
        %v1164 = vunpack.c.h.b16 %v978
        %v1165 = vunpack.c.l.b16 %v979
        %v1166 = vunpack.c.h.b16 %v979
        %v1167 = vunpack.c.l.b16 %v980
        %v1168 = vunpack.c.h.b16 %v980
        %v1169 = vunpack.c.l.b16 %v981
        %v1170 = vunpack.c.h.b16 %v981
        %v1171 = vunpack.c.l.b16 %v982
        %v1172 = vunpack.c.h.b16 %v982
        %v1173 = vunpack.c.l.b16 %v983
        %v1174 = vunpack.c.h.b16 %v983
        %v1175 = vunpack.c.l.b16 %v984
        %v1176 = vunpack.c.h.b16 %v984
        %v1177 = vunpack.c.l.b16 %v985
        %v1178 = vunpack.c.h.b16 %v985
        %v1179 = vunpack.c.l.b16 %v986
        %v1180 = vunpack.c.h.b16 %v986
        %v1181 = vunpack.c.l.b16 %v987
        %v1182 = vunpack.c.h.b16 %v987
        %v1183 = vunpack.c.l.b16 %v988
        %v1184 = vunpack.c.h.b16 %v988
        %v1185 = vunpack.c.l.b16 %v989
        %v1186 = vunpack.c.h.b16 %v989
        %v1187 = vunpack.c.l.b16 %v990
        %v1188 = vunpack.c.h.b16 %v990
        %v1189 = vunpack.c.l.b16 %v991
        %v1190 = vunpack.c.h.b16 %v991
        %v1191 = vunpack.c.l.b16 %v992
        %v1192 = vunpack.c.h.b16 %v992
        %v1193 = vunpack.c.l.b16 %v993
        %v1194 = vunpack.c.h.b16 %v993
        %v1195 = vunpack.c.l.b16 %v994
        %v1196 = vunpack.c.h.b16 %v994
        %v1197 = vunpack.c.l.b16 %v995
        %v1198 = vunpack.c.h.b16 %v995
        %v1199 = vunpack.c.l.b16 %v996
        %v1200 = vunpack.c.h.b16 %v996
        %v1201 = vunpack.c.l.b16 %v997
        %v1202 = vunpack.c.h.b16 %v997
        %v1203 = vunpack.c.l.b16 %v998
        %v1204 = vunpack.c.h.b16 %v998
        %v1205 = vunpack.c.l.b16 %v999
        %v1206 = vunpack.c.h.b16 %v999
        %v1207 = vunpack.c.l.b16 %v1000
        %v1208 = vunpack.c.h.b16 %v1000
        %v1209 = vpack.c.b16 %v1147, %v1145
        %v1210 = vpack.c.b16 %v1148, %v1146
        %v1211 = vpack.c.b16 %v1151, %v1149
        %v1212 = vpack.c.b16 %v1152, %v1150
        %v1213 = vpack.c.b16 %v1155, %v1153
        %v1214 = vpack.c.b16 %v1156, %v1154
        %v1215 = vpack.c.b16 %v1159, %v1157
        %v1216 = vpack.c.b16 %v1160, %v1158
        %v1217 = vpack.c.b16 %v1163, %v1161
        %v1218 = vpack.c.b16 %v1164, %v1162
        %v1219 = vpack.c.b16 %v1167, %v1165
        %v1220 = vpack.c.b16 %v1168, %v1166
        %v1221 = vpack.c.b16 %v1171, %v1169
        %v1222 = vpack.c.b16 %v1172, %v1170
        %v1223 = vpack.c.b16 %v1175, %v1173
        %v1224 = vpack.c.b16 %v1176, %v1174
        %v1225 = vpack.c.b16 %v1179, %v1177
        %v1226 = vpack.c.b16 %v1180, %v1178
        %v1227 = vpack.c.b16 %v1183, %v1181
        %v1228 = vpack.c.b16 %v1184, %v1182
        %v1229 = vpack.c.b16 %v1187, %v1185
        %v1230 = vpack.c.b16 %v1188, %v1186
        %v1231 = vpack.c.b16 %v1191, %v1189
        %v1232 = vpack.c.b16 %v1192, %v1190
        %v1233 = vpack.c.b16 %v1195, %v1193
        %v1234 = vpack.c.b16 %v1196, %v1194
        %v1235 = vpack.c.b16 %v1199, %v1197
        %v1236 = vpack.c.b16 %v1200, %v1198
        %v1237 = vpack.c.b16 %v1203, %v1201
        %v1238 = vpack.c.b16 %v1204, %v1202
        %v1239 = vpack.c.b16 %v1207, %v1205
        %v1240 = vpack.c.b16 %v1208, %v1206
        %1273 = vmatprep.subr.bf16.mxu0 %v1210
        %1274 = vmatpush1.bf16.msra.mxu0 %v1209
        %1275 = vmatprep.subr.bf16.mxu0 %v1212
        %1276 = vmatpush1.bf16.msra.mxu0 %v1211
        %1277 = vmatprep.subr.bf16.mxu0 %v1214
        %1278 = vmatpush1.bf16.msra.mxu0 %v1213
        %1279 = vmatprep.subr.bf16.mxu0 %v1216
        %1280 = vmatpush1.bf16.msra.mxu0 %v1215
        %1281 = vmatprep.subr.bf16.mxu0 %v1218
        %1282 = vmatpush1.bf16.msra.mxu0 %v1217
        %1283 = vmatprep.subr.bf16.mxu0 %v1220
        %1284 = vmatpush1.bf16.msra.mxu0 %v1219
        %1285 = vmatprep.subr.bf16.mxu0 %v1222
        %1286 = vmatpush1.bf16.msra.mxu0 %v1221
        %1287 = vmatprep.subr.bf16.mxu0 %v1224
        %1288 = vmatpush1.bf16.msra.mxu0 %v1223
        %1289 = vmatprep.subr.bf16.mxu0 %v1226
        %1290 = vmatpush1.bf16.msra.mxu0 %v1225
        %1291 = vmatprep.subr.bf16.mxu0 %v1228
        %1292 = vmatpush1.bf16.msra.mxu0 %v1227
        %1293 = vmatprep.subr.bf16.mxu0 %v1230
        %1294 = vmatpush1.bf16.msra.mxu0 %v1229
        %1295 = vmatprep.subr.bf16.mxu0 %v1232
        %1296 = vmatpush1.bf16.msra.mxu0 %v1231
        %1297 = vmatprep.subr.bf16.mxu0 %v1234
        %1298 = vmatpush1.bf16.msra.mxu0 %v1233
        %1299 = vmatprep.subr.bf16.mxu0 %v1236
        %1300 = vmatpush1.bf16.msra.mxu0 %v1235
        %1301 = vmatprep.subr.bf16.mxu0 %v1238
        %1302 = vmatpush1.bf16.msra.mxu0 %v1237
        %1303 = vmatprep.subr.bf16.mxu0 %v1240
        %1304 = vmatpush1.bf16.msra.mxu0 %v1239
        %1305 = vmatprep.mubr.bf16.mxu0 %v1101
        %1306 = vmatmul.mubr.bf16.gmra.mrb[0].mxu0 %v1100
        %v1307 = vpop.f32.mrb[0].mxu0
        %v1308 = vadd.f32 %v1106, %v1307
        %v1309 = vpop.f32.mrb[0].mxu0
        %v1310 = vadd.f32 %v1110, %v1309
        %v1311 = vpop.f32.mrb[0].mxu0
        %v1312 = vadd.f32 %v1106, %v1311
        %v1313 = vpop.f32.mrb[0].mxu0
        %v1314 = vadd.f32 %v1110, %v1313
        %1315 = vdwg.mxu0
        %v1316 = vmul.f32 %v1308, 0.088388346
        %v1317 = vmul.f32 %v1310, 0.088388346
        %v1318 = vmul.f32 %v1312, 0.088388346
        %v1319 = vmul.f32 %v1314, 0.088388346
        %v1321 = vlaneseq
        %v1322 = vshrl.u32 %v1321, 7
        %v1323 = vsub.s32 0, %v1322
        %v1324 = vrot.slane %v1066, %v1323
        %v1325 = vlaneseq
        %v1326 = vshrl.u32 %v1325, 7
        %v1327 = vsub.s32 1, %v1326
        %v1328 = vrot.slane %v1066, %v1327
        %v1329 = vlaneseq
        %v1330 = vshrl.u32 %v1329, 7
        %v1331 = vsub.s32 2, %v1330
        %v1332 = vrot.slane %v1066, %v1331
        %v1333 = vlaneseq
        %v1334 = vshrl.u32 %v1333, 7
        %v1335 = vsub.s32 3, %v1334
        %v1336 = vrot.slane %v1066, %v1335
        %v1405 = vunpack.c.l.b16 %v1002
        %v1406 = vunpack.c.h.b16 %v1002
        %v1407 = vunpack.c.l.b16 %v1003
        %v1408 = vunpack.c.h.b16 %v1003
        %v1409 = vunpack.c.l.b16 %v1004
        %v1410 = vunpack.c.h.b16 %v1004
        %v1411 = vunpack.c.l.b16 %v1005
        %v1412 = vunpack.c.h.b16 %v1005
        %v1413 = vunpack.c.l.b16 %v1006
        %v1414 = vunpack.c.h.b16 %v1006
        %v1415 = vunpack.c.l.b16 %v1007
        %v1416 = vunpack.c.h.b16 %v1007
        %v1417 = vunpack.c.l.b16 %v1008
        %v1418 = vunpack.c.h.b16 %v1008
        %v1419 = vunpack.c.l.b16 %v1009
        %v1420 = vunpack.c.h.b16 %v1009
        %v1421 = vunpack.c.l.b16 %v1010
        %v1422 = vunpack.c.h.b16 %v1010
        %v1423 = vunpack.c.l.b16 %v1011
        %v1424 = vunpack.c.h.b16 %v1011
        %v1425 = vunpack.c.l.b16 %v1012
        %v1426 = vunpack.c.h.b16 %v1012
        %v1427 = vunpack.c.l.b16 %v1013
        %v1428 = vunpack.c.h.b16 %v1013
        %v1429 = vunpack.c.l.b16 %v1014
        %v1430 = vunpack.c.h.b16 %v1014
        %v1431 = vunpack.c.l.b16 %v1015
        %v1432 = vunpack.c.h.b16 %v1015
        %v1433 = vunpack.c.l.b16 %v1016
        %v1434 = vunpack.c.h.b16 %v1016
        %v1435 = vunpack.c.l.b16 %v1017
        %v1436 = vunpack.c.h.b16 %v1017
        %v1437 = vunpack.c.l.b16 %v1018
        %v1438 = vunpack.c.h.b16 %v1018
        %v1439 = vunpack.c.l.b16 %v1019
        %v1440 = vunpack.c.h.b16 %v1019
        %v1441 = vunpack.c.l.b16 %v1020
        %v1442 = vunpack.c.h.b16 %v1020
        %v1443 = vunpack.c.l.b16 %v1021
        %v1444 = vunpack.c.h.b16 %v1021
        %v1445 = vunpack.c.l.b16 %v1022
        %v1446 = vunpack.c.h.b16 %v1022
        %v1447 = vunpack.c.l.b16 %v1023
        %v1448 = vunpack.c.h.b16 %v1023
        %v1449 = vunpack.c.l.b16 %v1024
        %v1450 = vunpack.c.h.b16 %v1024
        %v1451 = vunpack.c.l.b16 %v1025
        %v1452 = vunpack.c.h.b16 %v1025
        %v1453 = vunpack.c.l.b16 %v1026
        %v1454 = vunpack.c.h.b16 %v1026
        %v1455 = vunpack.c.l.b16 %v1027
        %v1456 = vunpack.c.h.b16 %v1027
        %v1457 = vunpack.c.l.b16 %v1028
        %v1458 = vunpack.c.h.b16 %v1028
        %v1459 = vunpack.c.l.b16 %v1029
        %v1460 = vunpack.c.h.b16 %v1029
        %v1461 = vunpack.c.l.b16 %v1030
        %v1462 = vunpack.c.h.b16 %v1030
        %v1463 = vunpack.c.l.b16 %v1031
        %v1464 = vunpack.c.h.b16 %v1031
        %v1465 = vunpack.c.l.b16 %v1032
        %v1466 = vunpack.c.h.b16 %v1032
        %v1467 = vunpack.c.l.b16 %v1033
        %v1468 = vunpack.c.h.b16 %v1033
        %v1469 = vunpack.c.l.b16 %v1034
        %v1470 = vunpack.c.h.b16 %v1034
        %v1471 = vunpack.c.l.b16 %v1035
        %v1472 = vunpack.c.h.b16 %v1035
        %v1473 = vunpack.c.l.b16 %v1036
        %v1474 = vunpack.c.h.b16 %v1036
        %v1475 = vunpack.c.l.b16 %v1037
        %v1476 = vunpack.c.h.b16 %v1037
        %v1477 = vunpack.c.l.b16 %v1038
        %v1478 = vunpack.c.h.b16 %v1038
        %v1479 = vunpack.c.l.b16 %v1039
        %v1480 = vunpack.c.h.b16 %v1039
        %v1481 = vunpack.c.l.b16 %v1040
        %v1482 = vunpack.c.h.b16 %v1040
        %v1483 = vunpack.c.l.b16 %v1041
        %v1484 = vunpack.c.h.b16 %v1041
        %v1485 = vunpack.c.l.b16 %v1042
        %v1486 = vunpack.c.h.b16 %v1042
        %v1487 = vunpack.c.l.b16 %v1043
        %v1488 = vunpack.c.h.b16 %v1043
        %v1489 = vunpack.c.l.b16 %v1044
        %v1490 = vunpack.c.h.b16 %v1044
        %v1491 = vunpack.c.l.b16 %v1045
        %v1492 = vunpack.c.h.b16 %v1045
        %v1493 = vunpack.c.l.b16 %v1046
        %v1494 = vunpack.c.h.b16 %v1046
        %v1495 = vunpack.c.l.b16 %v1047
        %v1496 = vunpack.c.h.b16 %v1047
        %v1497 = vunpack.c.l.b16 %v1048
        %v1498 = vunpack.c.h.b16 %v1048
        %v1499 = vunpack.c.l.b16 %v1049
        %v1500 = vunpack.c.h.b16 %v1049
        %v1501 = vunpack.c.l.b16 %v1050
        %v1502 = vunpack.c.h.b16 %v1050
        %v1503 = vunpack.c.l.b16 %v1051
        %v1504 = vunpack.c.h.b16 %v1051
        %v1505 = vunpack.c.l.b16 %v1052
        %v1506 = vunpack.c.h.b16 %v1052
        %v1507 = vunpack.c.l.b16 %v1053
        %v1508 = vunpack.c.h.b16 %v1053
        %v1509 = vunpack.c.l.b16 %v1054
        %v1510 = vunpack.c.h.b16 %v1054
        %v1511 = vunpack.c.l.b16 %v1055
        %v1512 = vunpack.c.h.b16 %v1055
        %v1513 = vunpack.c.l.b16 %v1056
        %v1514 = vunpack.c.h.b16 %v1056
        %v1515 = vunpack.c.l.b16 %v1057
        %v1516 = vunpack.c.h.b16 %v1057
        %v1517 = vunpack.c.l.b16 %v1058
        %v1518 = vunpack.c.h.b16 %v1058
        %v1519 = vunpack.c.l.b16 %v1059
        %v1520 = vunpack.c.h.b16 %v1059
        %v1521 = vunpack.c.l.b16 %v1060
        %v1522 = vunpack.c.h.b16 %v1060
        %v1523 = vunpack.c.l.b16 %v1061
        %v1524 = vunpack.c.h.b16 %v1061
        %v1525 = vunpack.c.l.b16 %v1062
        %v1526 = vunpack.c.h.b16 %v1062
        %v1527 = vunpack.c.l.b16 %v1063
        %v1528 = vunpack.c.h.b16 %v1063
        %v1529 = vunpack.c.l.b16 %v1064
        %v1530 = vunpack.c.h.b16 %v1064
        %v1531 = vunpack.c.l.b16 %v1065
        %v1532 = vunpack.c.h.b16 %v1065
        %v1533 = vpack.c.b16 %v1409, %v1405
        %v1534 = vpack.c.b16 %v1410, %v1406
        %v1535 = vpack.c.b16 %v1411, %v1407
        %v1536 = vpack.c.b16 %v1412, %v1408
        %v1537 = vpack.c.b16 %v1417, %v1413
        %v1538 = vpack.c.b16 %v1418, %v1414
        %v1539 = vpack.c.b16 %v1419, %v1415
        %v1540 = vpack.c.b16 %v1420, %v1416
        %v1541 = vpack.c.b16 %v1425, %v1421
        %v1542 = vpack.c.b16 %v1426, %v1422
        %v1543 = vpack.c.b16 %v1427, %v1423
        %v1544 = vpack.c.b16 %v1428, %v1424
        %v1545 = vpack.c.b16 %v1433, %v1429
        %v1546 = vpack.c.b16 %v1434, %v1430
        %v1547 = vpack.c.b16 %v1435, %v1431
        %v1548 = vpack.c.b16 %v1436, %v1432
        %v1549 = vpack.c.b16 %v1441, %v1437
        %v1550 = vpack.c.b16 %v1442, %v1438
        %v1551 = vpack.c.b16 %v1443, %v1439
        %v1552 = vpack.c.b16 %v1444, %v1440
        %v1553 = vpack.c.b16 %v1449, %v1445
        %v1554 = vpack.c.b16 %v1450, %v1446
        %v1555 = vpack.c.b16 %v1451, %v1447
        %v1556 = vpack.c.b16 %v1452, %v1448
        %v1557 = vpack.c.b16 %v1457, %v1453
        %v1558 = vpack.c.b16 %v1458, %v1454
        %v1559 = vpack.c.b16 %v1459, %v1455
        %v1560 = vpack.c.b16 %v1460, %v1456
        %v1561 = vpack.c.b16 %v1465, %v1461
        %v1562 = vpack.c.b16 %v1466, %v1462
        %v1563 = vpack.c.b16 %v1467, %v1463
        %v1564 = vpack.c.b16 %v1468, %v1464
        %v1565 = vpack.c.b16 %v1473, %v1469
        %v1566 = vpack.c.b16 %v1474, %v1470
        %v1567 = vpack.c.b16 %v1475, %v1471
        %v1568 = vpack.c.b16 %v1476, %v1472
        %v1569 = vpack.c.b16 %v1481, %v1477
        %v1570 = vpack.c.b16 %v1482, %v1478
        %v1571 = vpack.c.b16 %v1483, %v1479
        %v1572 = vpack.c.b16 %v1484, %v1480
        %v1573 = vpack.c.b16 %v1489, %v1485
        %v1574 = vpack.c.b16 %v1490, %v1486
        %v1575 = vpack.c.b16 %v1491, %v1487
        %v1576 = vpack.c.b16 %v1492, %v1488
        %v1577 = vpack.c.b16 %v1497, %v1493
        %v1578 = vpack.c.b16 %v1498, %v1494
        %v1579 = vpack.c.b16 %v1499, %v1495
        %v1580 = vpack.c.b16 %v1500, %v1496
        %v1581 = vpack.c.b16 %v1505, %v1501
        %v1582 = vpack.c.b16 %v1506, %v1502
        %v1583 = vpack.c.b16 %v1507, %v1503
        %v1584 = vpack.c.b16 %v1508, %v1504
        %v1585 = vpack.c.b16 %v1513, %v1509
        %v1586 = vpack.c.b16 %v1514, %v1510
        %v1587 = vpack.c.b16 %v1515, %v1511
        %v1588 = vpack.c.b16 %v1516, %v1512
        %v1589 = vpack.c.b16 %v1521, %v1517
        %v1590 = vpack.c.b16 %v1522, %v1518
        %v1591 = vpack.c.b16 %v1523, %v1519
        %v1592 = vpack.c.b16 %v1524, %v1520
        %v1593 = vpack.c.b16 %v1529, %v1525
        %v1594 = vpack.c.b16 %v1530, %v1526
        %v1595 = vpack.c.b16 %v1531, %v1527
        %v1596 = vpack.c.b16 %v1532, %v1528
        %1661 = vmatprep.subr.bf16.mxu0 %v1534
        %1662 = vmatpush1.bf16.msra.mxu0 %v1533
        %1663 = vmatprep.subr.bf16.mxu0 %v1538
        %1664 = vmatpush1.bf16.msra.mxu0 %v1537
        %1665 = vmatprep.subr.bf16.mxu0 %v1542
        %1666 = vmatpush1.bf16.msra.mxu0 %v1541
        %1667 = vmatprep.subr.bf16.mxu0 %v1546
        %1668 = vmatpush1.bf16.msra.mxu0 %v1545
        %1669 = vmatprep.subr.bf16.mxu0 %v1550
        %1670 = vmatpush1.bf16.msra.mxu0 %v1549
        %1671 = vmatprep.subr.bf16.mxu0 %v1554
        %1672 = vmatpush1.bf16.msra.mxu0 %v1553
        %1673 = vmatprep.subr.bf16.mxu0 %v1558
        %1674 = vmatpush1.bf16.msra.mxu0 %v1557
        %1675 = vmatprep.subr.bf16.mxu0 %v1562
        %1676 = vmatpush1.bf16.msra.mxu0 %v1561
        %1677 = vmatprep.subr.bf16.mxu0 %v1566
        %1678 = vmatpush1.bf16.msra.mxu0 %v1565
        %1679 = vmatprep.subr.bf16.mxu0 %v1570
        %1680 = vmatpush1.bf16.msra.mxu0 %v1569
        %1681 = vmatprep.subr.bf16.mxu0 %v1574
        %1682 = vmatpush1.bf16.msra.mxu0 %v1573
        %1683 = vmatprep.subr.bf16.mxu0 %v1578
        %1684 = vmatpush1.bf16.msra.mxu0 %v1577
        %1685 = vmatprep.subr.bf16.mxu0 %v1582
        %1686 = vmatpush1.bf16.msra.mxu0 %v1581
        %1687 = vmatprep.subr.bf16.mxu0 %v1586
        %1688 = vmatpush1.bf16.msra.mxu0 %v1585
        %1689 = vmatprep.subr.bf16.mxu0 %v1590
        %1690 = vmatpush1.bf16.msra.mxu0 %v1589
        %1691 = vmatprep.subr.bf16.mxu0 %v1594
        %1692 = vmatpush1.bf16.msra.mxu0 %v1593
        %1693 = vmatprep.mubr.bf16.mxu0 %v1101
        %1694 = vmatmul.mubr.bf16.gmra.mrb[0].mxu0 %v1100
        %v1695 = vpop.f32.mrb[0].mxu0
        %v1696 = vadd.f32 %v1324, %v1695
        %v1697 = vpop.f32.mrb[0].mxu0
        %v1698 = vadd.f32 %v1328, %v1697
        %v1699 = vpop.f32.mrb[0].mxu0
        %v1700 = vadd.f32 %v1324, %v1699
        %v1701 = vpop.f32.mrb[0].mxu0
        %v1702 = vadd.f32 %v1328, %v1701
        %1703 = vdwg.mxu0
        %1704 = vmatprep.subr.bf16.mxu0 %v1536
        %1705 = vmatpush1.bf16.msra.mxu0 %v1535
        %1706 = vmatprep.subr.bf16.mxu0 %v1540
        %1707 = vmatpush1.bf16.msra.mxu0 %v1539
        %1708 = vmatprep.subr.bf16.mxu0 %v1544
        %1709 = vmatpush1.bf16.msra.mxu0 %v1543
        %1710 = vmatprep.subr.bf16.mxu0 %v1548
        %1711 = vmatpush1.bf16.msra.mxu0 %v1547
        %1712 = vmatprep.subr.bf16.mxu0 %v1552
        %1713 = vmatpush1.bf16.msra.mxu0 %v1551
        %1714 = vmatprep.subr.bf16.mxu0 %v1556
        %1715 = vmatpush1.bf16.msra.mxu0 %v1555
        %1716 = vmatprep.subr.bf16.mxu0 %v1560
        %1717 = vmatpush1.bf16.msra.mxu0 %v1559
        %1718 = vmatprep.subr.bf16.mxu0 %v1564
        %1719 = vmatpush1.bf16.msra.mxu0 %v1563
        %1720 = vmatprep.subr.bf16.mxu0 %v1568
        %1721 = vmatpush1.bf16.msra.mxu0 %v1567
        %1722 = vmatprep.subr.bf16.mxu0 %v1572
        %1723 = vmatpush1.bf16.msra.mxu0 %v1571
        %1724 = vmatprep.subr.bf16.mxu0 %v1576
        %1725 = vmatpush1.bf16.msra.mxu0 %v1575
        %1726 = vmatprep.subr.bf16.mxu0 %v1580
        %1727 = vmatpush1.bf16.msra.mxu0 %v1579
        %1728 = vmatprep.subr.bf16.mxu0 %v1584
        %1729 = vmatpush1.bf16.msra.mxu0 %v1583
        %1730 = vmatprep.subr.bf16.mxu0 %v1588
        %1731 = vmatpush1.bf16.msra.mxu0 %v1587
        %1732 = vmatprep.subr.bf16.mxu0 %v1592
        %1733 = vmatpush1.bf16.msra.mxu0 %v1591
        %1734 = vmatprep.subr.bf16.mxu0 %v1596
        %1735 = vmatpush1.bf16.msra.mxu0 %v1595
        %1736 = vmatprep.mubr.bf16.mxu0 %v1101
        %1737 = vmatmul.mubr.bf16.gmra.mrb[0].mxu0 %v1100
        %v1738 = vpop.f32.mrb[0].mxu0
        %v1739 = vadd.f32 %v1332, %v1738
        %v1740 = vpop.f32.mrb[0].mxu0
        %v1741 = vadd.f32 %v1336, %v1740
        %v1742 = vpop.f32.mrb[0].mxu0
        %v1743 = vadd.f32 %v1332, %v1742
        %v1744 = vpop.f32.mrb[0].mxu0
        %v1745 = vadd.f32 %v1336, %v1744
        %1746 = vdwg.mxu0
        %v1747 = vpack.c.bf16 %v1318, %v1316
        %v1748 = vpack.c.bf16 %v1319, %v1317
        %v1749 = vpack.c.bf16 %v1700, %v1696
        %v1750 = vpack.c.bf16 %v1702, %v1698
        %v1751 = vpack.c.bf16 %v1743, %v1739
        %v1752 = vpack.c.bf16 %v1745, %v1741
        %v1754 = vlaneseq
        %v1755 = vshrl.u32 %v1754, 7
        %v1756 = vsub.s32 0, %v1755
        %v1757 = vrot.slane %v968, %v1756
        %1759 = vmatprep.subr.bf16.mxu0 0
        %1760 = vmatpush1.bf16.xpose.msra.mxu0 %v1749
        %1761 = vmatprep.subr.bf16.mxu0 0
        %1762 = vmatpush1.bf16.xpose.msra.mxu0 0
        %1763 = vmatprep.subr.bf16.mxu0 0
        %1764 = vmatpush1.bf16.xpose.msra.mxu0 0
        %1765 = vmatprep.subr.bf16.mxu0 0
        %1766 = vmatpush1.bf16.xpose.msra.mxu0 0
        %1767 = vmatprep.subr.bf16.mxu0 0
        %1768 = vmatpush1.bf16.xpose.msra.mxu0 0
        %1769 = vmatprep.subr.bf16.mxu0 0
        %1770 = vmatpush1.bf16.xpose.msra.mxu0 0
        %1771 = vmatprep.subr.bf16.mxu0 0
        %1772 = vmatpush1.bf16.xpose.msra.mxu0 0
        %1773 = vmatprep.subr.bf16.mxu0 0
        %1774 = vmatpush1.bf16.xpose.msra.mxu0 0
        %1775 = vmatprep.subr.bf16.mxu0 0
        %1776 = vmatpush1.bf16.xpose.msra.mxu0 0
        %1777 = vmatprep.subr.bf16.mxu0 0
        %1778 = vmatpush1.bf16.xpose.msra.mxu0 0
        %1779 = vmatprep.subr.bf16.mxu0 0
        %1780 = vmatpush1.bf16.xpose.msra.mxu0 0
        %1781 = vmatprep.subr.bf16.mxu0 0
        %1782 = vmatpush1.bf16.xpose.msra.mxu0 0
        %1783 = vmatprep.subr.bf16.mxu0 0
        %1784 = vmatpush1.bf16.xpose.msra.mxu0 0
        %1785 = vmatprep.subr.bf16.mxu0 0
        %1786 = vmatpush1.bf16.xpose.msra.mxu0 0
        %1787 = vmatprep.subr.bf16.mxu0 0
        %1788 = vmatpush1.bf16.xpose.msra.mxu0 0
        %1789 = vmatprep.subr.bf16.mxu0 0
        %1790 = vmatpush1.bf16.xpose.msra.mxu0 0
        %1791 = vmatprep.mubr.bf16.mxu0 0
        %1792 = vmatmul.mubr.bf16.gmra.mrb[0].mxu0 %v1747
        %v1793 = vpop.f32.mrb[0].mxu0
        %v1794 = vadd.f32 %v1757, %v1793
        %v1795 = vpop.f32.mrb[0].mxu0
        %v1796 = vpop.f32.mrb[0].mxu0
        %v1797 = vadd.f32 %v1757, %v1796
        %v1798 = vpop.f32.mrb[0].mxu0
        %1799 = vdwg.mxu0
        %vm1800 = vcmask 130048
        %v1801 = vsel %vm1800, %v1794, -inf
        %1802 = vmax.xlane.f32.xlu0 %v1801
        %v1803 = vpop.xlane.xlu0 %1802
        %v1804 = vsel %vm1800, %v1797, -inf
        %1805 = vmax.xlane.f32.xlu0 %v1804
        %v1806 = vpop.xlane.xlu0 %1805
        %v1807 = vsub.f32 %v1794, %v1803
        %v1808 = vsub.f32 %v1797, %v1806
        %v1809 = vmul.f32 %v1807, 1.442695
        %v1810 = vpow.pop %v1809
        %v1811 = vmul.f32 %v1808, 1.442695
        %v1812 = vpow.pop %v1811
        %v1813 = vsel %vm1800, %v1810, 0.0
        %1814 = vadd.xlane.f32.xlu0 %v1813
        %v1815 = vpop.xlane.xlu0 %1814
        %v1816 = vsel %vm1800, %v1812, 0.0
        %1817 = vadd.xlane.f32.xlu0 %v1816
        %v1818 = vpop.xlane.xlu0 %1817
        %v1819 = vrcp.pop %v1815
        %v1820 = vrcp.pop %v1818
        %v1821 = vmul.f32 %v1810, %v1819
        %v1822 = vmul.f32 %v1812, %v1820
        %v1823 = vpack.c.bf16 %v1822, %v1821
        %v1825 = vsel %vm1800, %v1823, 0
        %1827 = vmatprep.subr.bf16.mxu0 0
        %1828 = vmatpush1.bf16.msra.mxu0 %v1751
        %1829 = vmatprep.subr.bf16.mxu0 0
        %1830 = vmatpush1.bf16.msra.mxu0 0
        %1831 = vmatprep.subr.bf16.mxu0 0
        %1832 = vmatpush1.bf16.msra.mxu0 0
        %1833 = vmatprep.subr.bf16.mxu0 0
        %1834 = vmatpush1.bf16.msra.mxu0 0
        %1835 = vmatprep.subr.bf16.mxu0 0
        %1836 = vmatpush1.bf16.msra.mxu0 0
        %1837 = vmatprep.subr.bf16.mxu0 0
        %1838 = vmatpush1.bf16.msra.mxu0 0
        %1839 = vmatprep.subr.bf16.mxu0 0
        %1840 = vmatpush1.bf16.msra.mxu0 0
        %1841 = vmatprep.subr.bf16.mxu0 0
        %1842 = vmatpush1.bf16.msra.mxu0 0
        %1843 = vmatprep.subr.bf16.mxu0 0
        %1844 = vmatpush1.bf16.msra.mxu0 0
        %1845 = vmatprep.subr.bf16.mxu0 0
        %1846 = vmatpush1.bf16.msra.mxu0 0
        %1847 = vmatprep.subr.bf16.mxu0 0
        %1848 = vmatpush1.bf16.msra.mxu0 0
        %1849 = vmatprep.subr.bf16.mxu0 0
        %1850 = vmatpush1.bf16.msra.mxu0 0
        %1851 = vmatprep.subr.bf16.mxu0 0
        %1852 = vmatpush1.bf16.msra.mxu0 0
        %1853 = vmatprep.subr.bf16.mxu0 0
        %1854 = vmatpush1.bf16.msra.mxu0 0
        %1855 = vmatprep.subr.bf16.mxu0 0
        %1856 = vmatpush1.bf16.msra.mxu0 0
        %1857 = vmatprep.subr.bf16.mxu0 0
        %1858 = vmatpush1.bf16.msra.mxu0 0
        %1859 = vmatprep.mubr.bf16.mxu0 0
        %1860 = vmatmul.mubr.bf16.gmra.mrb[0].mxu0 %v1825
        %v1861 = vpop.f32.mrb[0].mxu0
        %v1862 = vadd.f32 0.0, %v1861
        %v1863 = vpop.f32.mrb[0].mxu0
        %v1864 = vpop.f32.mrb[0].mxu0
        %v1865 = vadd.f32 0.0, %v1864
        %v1866 = vpop.f32.mrb[0].mxu0
        %1867 = vdwg.mxu0
        %1868 = vmatprep.subr.bf16.mxu0 0
        %1869 = vmatpush1.bf16.xpose.msra.mxu0 %v1750
        %1870 = vmatprep.subr.bf16.mxu0 0
        %1871 = vmatpush1.bf16.xpose.msra.mxu0 0
        %1872 = vmatprep.subr.bf16.mxu0 0
        %1873 = vmatpush1.bf16.xpose.msra.mxu0 0
        %1874 = vmatprep.subr.bf16.mxu0 0
        %1875 = vmatpush1.bf16.xpose.msra.mxu0 0
        %1876 = vmatprep.subr.bf16.mxu0 0
        %1877 = vmatpush1.bf16.xpose.msra.mxu0 0
        %1878 = vmatprep.subr.bf16.mxu0 0
        %1879 = vmatpush1.bf16.xpose.msra.mxu0 0
        %1880 = vmatprep.subr.bf16.mxu0 0
        %1881 = vmatpush1.bf16.xpose.msra.mxu0 0
        %1882 = vmatprep.subr.bf16.mxu0 0
        %1883 = vmatpush1.bf16.xpose.msra.mxu0 0
        %1884 = vmatprep.subr.bf16.mxu0 0
        %1885 = vmatpush1.bf16.xpose.msra.mxu0 0
        %1886 = vmatprep.subr.bf16.mxu0 0
        %1887 = vmatpush1.bf16.xpose.msra.mxu0 0
        %1888 = vmatprep.subr.bf16.mxu0 0
        %1889 = vmatpush1.bf16.xpose.msra.mxu0 0
        %1890 = vmatprep.subr.bf16.mxu0 0
        %1891 = vmatpush1.bf16.xpose.msra.mxu0 0
        %1892 = vmatprep.subr.bf16.mxu0 0
        %1893 = vmatpush1.bf16.xpose.msra.mxu0 0
        %1894 = vmatprep.subr.bf16.mxu0 0
        %1895 = vmatpush1.bf16.xpose.msra.mxu0 0
        %1896 = vmatprep.subr.bf16.mxu0 0
        %1897 = vmatpush1.bf16.xpose.msra.mxu0 0
        %1898 = vmatprep.subr.bf16.mxu0 0
        %1899 = vmatpush1.bf16.xpose.msra.mxu0 0
        %1900 = vmatprep.mubr.bf16.mxu0 0
        %1901 = vmatmul.mubr.bf16.gmra.mrb[0].mxu0 %v1748
        %v1902 = vpop.f32.mrb[0].mxu0
        %v1903 = vadd.f32 %v1757, %v1902
        %v1904 = vpop.f32.mrb[0].mxu0
        %v1905 = vpop.f32.mrb[0].mxu0
        %v1906 = vadd.f32 %v1757, %v1905
        %v1907 = vpop.f32.mrb[0].mxu0
        %1908 = vdwg.mxu0
        %v1909 = vsel %vm1800, %v1903, -inf
        %1910 = vmax.xlane.f32.xlu0 %v1909
        %v1911 = vpop.xlane.xlu0 %1910
        %v1912 = vsel %vm1800, %v1906, -inf
        %1913 = vmax.xlane.f32.xlu0 %v1912
        %v1914 = vpop.xlane.xlu0 %1913
        %v1915 = vsub.f32 %v1903, %v1911
        %v1916 = vsub.f32 %v1906, %v1914
        %v1917 = vmul.f32 %v1915, 1.442695
        %v1918 = vpow.pop %v1917
        %v1919 = vmul.f32 %v1916, 1.442695
        %v1920 = vpow.pop %v1919
        %v1921 = vsel %vm1800, %v1918, 0.0
        %1922 = vadd.xlane.f32.xlu0 %v1921
        %v1923 = vpop.xlane.xlu0 %1922
        %v1924 = vsel %vm1800, %v1920, 0.0
        %1925 = vadd.xlane.f32.xlu0 %v1924
        %v1926 = vpop.xlane.xlu0 %1925
        %v1927 = vrcp.pop %v1923
        %v1928 = vrcp.pop %v1926
        %v1929 = vmul.f32 %v1918, %v1927
        %v1930 = vmul.f32 %v1920, %v1928
        %v1931 = vpack.c.bf16 %v1930, %v1929
        %v1933 = vsel %vm1800, %v1931, 0
        %1935 = vmatprep.subr.bf16.mxu0 0
        %1936 = vmatpush1.bf16.msra.mxu0 %v1752
        %1937 = vmatprep.subr.bf16.mxu0 0
        %1938 = vmatpush1.bf16.msra.mxu0 0
        %1939 = vmatprep.subr.bf16.mxu0 0
        %1940 = vmatpush1.bf16.msra.mxu0 0
        %1941 = vmatprep.subr.bf16.mxu0 0
        %1942 = vmatpush1.bf16.msra.mxu0 0
        %1943 = vmatprep.subr.bf16.mxu0 0
        %1944 = vmatpush1.bf16.msra.mxu0 0
        %1945 = vmatprep.subr.bf16.mxu0 0
        %1946 = vmatpush1.bf16.msra.mxu0 0
        %1947 = vmatprep.subr.bf16.mxu0 0
        %1948 = vmatpush1.bf16.msra.mxu0 0
        %1949 = vmatprep.subr.bf16.mxu0 0
        %1950 = vmatpush1.bf16.msra.mxu0 0
        %1951 = vmatprep.subr.bf16.mxu0 0
        %1952 = vmatpush1.bf16.msra.mxu0 0
        %1953 = vmatprep.subr.bf16.mxu0 0
        %1954 = vmatpush1.bf16.msra.mxu0 0
        %1955 = vmatprep.subr.bf16.mxu0 0
        %1956 = vmatpush1.bf16.msra.mxu0 0
        %1957 = vmatprep.subr.bf16.mxu0 0
        %1958 = vmatpush1.bf16.msra.mxu0 0
        %1959 = vmatprep.subr.bf16.mxu0 0
        %1960 = vmatpush1.bf16.msra.mxu0 0
        %1961 = vmatprep.subr.bf16.mxu0 0
        %1962 = vmatpush1.bf16.msra.mxu0 0
        %1963 = vmatprep.subr.bf16.mxu0 0
        %1964 = vmatpush1.bf16.msra.mxu0 0
        %1965 = vmatprep.subr.bf16.mxu0 0
        %1966 = vmatpush1.bf16.msra.mxu0 0
        %1967 = vmatprep.mubr.bf16.mxu0 0
        %1968 = vmatmul.mubr.bf16.gmra.mrb[0].mxu0 %v1933
        %v1969 = vpop.f32.mrb[0].mxu0
        %v1970 = vadd.f32 0.0, %v1969
        %v1971 = vpop.f32.mrb[0].mxu0
        %v1972 = vpop.f32.mrb[0].mxu0
        %v1973 = vadd.f32 0.0, %v1972
        %v1974 = vpop.f32.mrb[0].mxu0
        %1975 = vdwg.mxu0
        %v1976 = vpack.c.bf16 %v1865, %v1862
        %v1977 = vpack.c.bf16 %v1973, %v1970
        %v1979 = vlaneseq
        %v1980 = vshrl.u32 %v1979, 7
        %v1981 = vsub.s32 0, %v1980
        %v1982 = vrot.slane %v1099, %v1981
        %v1983 = vlaneseq
        %v1984 = vshrl.u32 %v1983, 7
        %v1985 = vsub.s32 1, %v1984
        %v1986 = vrot.slane %v1099, %v1985
        %v2021 = vunpack.c.l.b16 %v1067
        %v2022 = vunpack.c.h.b16 %v1067
        %v2023 = vunpack.c.l.b16 %v1068
        %v2024 = vunpack.c.h.b16 %v1068
        %v2025 = vunpack.c.l.b16 %v1069
        %v2026 = vunpack.c.h.b16 %v1069
        %v2027 = vunpack.c.l.b16 %v1070
        %v2028 = vunpack.c.h.b16 %v1070
        %v2029 = vunpack.c.l.b16 %v1071
        %v2030 = vunpack.c.h.b16 %v1071
        %v2031 = vunpack.c.l.b16 %v1072
        %v2032 = vunpack.c.h.b16 %v1072
        %v2033 = vunpack.c.l.b16 %v1073
        %v2034 = vunpack.c.h.b16 %v1073
        %v2035 = vunpack.c.l.b16 %v1074
        %v2036 = vunpack.c.h.b16 %v1074
        %v2037 = vunpack.c.l.b16 %v1075
        %v2038 = vunpack.c.h.b16 %v1075
        %v2039 = vunpack.c.l.b16 %v1076
        %v2040 = vunpack.c.h.b16 %v1076
        %v2041 = vunpack.c.l.b16 %v1077
        %v2042 = vunpack.c.h.b16 %v1077
        %v2043 = vunpack.c.l.b16 %v1078
        %v2044 = vunpack.c.h.b16 %v1078
        %v2045 = vunpack.c.l.b16 %v1079
        %v2046 = vunpack.c.h.b16 %v1079
        %v2047 = vunpack.c.l.b16 %v1080
        %v2048 = vunpack.c.h.b16 %v1080
        %v2049 = vunpack.c.l.b16 %v1081
        %v2050 = vunpack.c.h.b16 %v1081
        %v2051 = vunpack.c.l.b16 %v1082
        %v2052 = vunpack.c.h.b16 %v1082
        %v2053 = vunpack.c.l.b16 %v1083
        %v2054 = vunpack.c.h.b16 %v1083
        %v2055 = vunpack.c.l.b16 %v1084
        %v2056 = vunpack.c.h.b16 %v1084
        %v2057 = vunpack.c.l.b16 %v1085
        %v2058 = vunpack.c.h.b16 %v1085
        %v2059 = vunpack.c.l.b16 %v1086
        %v2060 = vunpack.c.h.b16 %v1086
        %v2061 = vunpack.c.l.b16 %v1087
        %v2062 = vunpack.c.h.b16 %v1087
        %v2063 = vunpack.c.l.b16 %v1088
        %v2064 = vunpack.c.h.b16 %v1088
        %v2065 = vunpack.c.l.b16 %v1089
        %v2066 = vunpack.c.h.b16 %v1089
        %v2067 = vunpack.c.l.b16 %v1090
        %v2068 = vunpack.c.h.b16 %v1090
        %v2069 = vunpack.c.l.b16 %v1091
        %v2070 = vunpack.c.h.b16 %v1091
        %v2071 = vunpack.c.l.b16 %v1092
        %v2072 = vunpack.c.h.b16 %v1092
        %v2073 = vunpack.c.l.b16 %v1093
        %v2074 = vunpack.c.h.b16 %v1093
        %v2075 = vunpack.c.l.b16 %v1094
        %v2076 = vunpack.c.h.b16 %v1094
        %v2077 = vunpack.c.l.b16 %v1095
        %v2078 = vunpack.c.h.b16 %v1095
        %v2079 = vunpack.c.l.b16 %v1096
        %v2080 = vunpack.c.h.b16 %v1096
        %v2081 = vunpack.c.l.b16 %v1097
        %v2082 = vunpack.c.h.b16 %v1097
        %v2083 = vunpack.c.l.b16 %v1098
        %v2084 = vunpack.c.h.b16 %v1098
        %v2085 = vpack.c.b16 %v2023, %v2021
        %v2086 = vpack.c.b16 %v2024, %v2022
        %v2087 = vpack.c.b16 %v2027, %v2025
        %v2088 = vpack.c.b16 %v2028, %v2026
        %v2089 = vpack.c.b16 %v2031, %v2029
        %v2090 = vpack.c.b16 %v2032, %v2030
        %v2091 = vpack.c.b16 %v2035, %v2033
        %v2092 = vpack.c.b16 %v2036, %v2034
        %v2093 = vpack.c.b16 %v2039, %v2037
        %v2094 = vpack.c.b16 %v2040, %v2038
        %v2095 = vpack.c.b16 %v2043, %v2041
        %v2096 = vpack.c.b16 %v2044, %v2042
        %v2097 = vpack.c.b16 %v2047, %v2045
        %v2098 = vpack.c.b16 %v2048, %v2046
        %v2099 = vpack.c.b16 %v2051, %v2049
        %v2100 = vpack.c.b16 %v2052, %v2050
        %v2101 = vpack.c.b16 %v2055, %v2053
        %v2102 = vpack.c.b16 %v2056, %v2054
        %v2103 = vpack.c.b16 %v2059, %v2057
        %v2104 = vpack.c.b16 %v2060, %v2058
        %v2105 = vpack.c.b16 %v2063, %v2061
        %v2106 = vpack.c.b16 %v2064, %v2062
        %v2107 = vpack.c.b16 %v2067, %v2065
        %v2108 = vpack.c.b16 %v2068, %v2066
        %v2109 = vpack.c.b16 %v2071, %v2069
        %v2110 = vpack.c.b16 %v2072, %v2070
        %v2111 = vpack.c.b16 %v2075, %v2073
        %v2112 = vpack.c.b16 %v2076, %v2074
        %v2113 = vpack.c.b16 %v2079, %v2077
        %v2114 = vpack.c.b16 %v2080, %v2078
        %v2115 = vpack.c.b16 %v2083, %v2081
        %v2116 = vpack.c.b16 %v2084, %v2082
        %2149 = vmatprep.subr.bf16.mxu0 %v2086
        %2150 = vmatpush1.bf16.msra.mxu0 %v2085
        %2151 = vmatprep.subr.bf16.mxu0 %v2088
        %2152 = vmatpush1.bf16.msra.mxu0 %v2087
        %2153 = vmatprep.subr.bf16.mxu0 %v2090
        %2154 = vmatpush1.bf16.msra.mxu0 %v2089
        %2155 = vmatprep.subr.bf16.mxu0 %v2092
        %2156 = vmatpush1.bf16.msra.mxu0 %v2091
        %2157 = vmatprep.subr.bf16.mxu0 %v2094
        %2158 = vmatpush1.bf16.msra.mxu0 %v2093
        %2159 = vmatprep.subr.bf16.mxu0 %v2096
        %2160 = vmatpush1.bf16.msra.mxu0 %v2095
        %2161 = vmatprep.subr.bf16.mxu0 %v2098
        %2162 = vmatpush1.bf16.msra.mxu0 %v2097
        %2163 = vmatprep.subr.bf16.mxu0 %v2100
        %2164 = vmatpush1.bf16.msra.mxu0 %v2099
        %2165 = vmatprep.subr.bf16.mxu0 %v2102
        %2166 = vmatpush1.bf16.msra.mxu0 %v2101
        %2167 = vmatprep.subr.bf16.mxu0 %v2104
        %2168 = vmatpush1.bf16.msra.mxu0 %v2103
        %2169 = vmatprep.subr.bf16.mxu0 %v2106
        %2170 = vmatpush1.bf16.msra.mxu0 %v2105
        %2171 = vmatprep.subr.bf16.mxu0 %v2108
        %2172 = vmatpush1.bf16.msra.mxu0 %v2107
        %2173 = vmatprep.subr.bf16.mxu0 %v2110
        %2174 = vmatpush1.bf16.msra.mxu0 %v2109
        %2175 = vmatprep.subr.bf16.mxu0 %v2112
        %2176 = vmatpush1.bf16.msra.mxu0 %v2111
        %2177 = vmatprep.subr.bf16.mxu0 %v2114
        %2178 = vmatpush1.bf16.msra.mxu0 %v2113
        %2179 = vmatprep.subr.bf16.mxu0 %v2116
        %2180 = vmatpush1.bf16.msra.mxu0 %v2115
        %2181 = vmatprep.mubr.bf16.mxu0 %v1977
        %2182 = vmatmul.mubr.bf16.gmra.mrb[0].mxu0 %v1976
        %v2183 = vpop.f32.mrb[0].mxu0
        %v2184 = vadd.f32 %v1982, %v2183
        %v2185 = vpop.f32.mrb[0].mxu0
        %v2186 = vadd.f32 %v1986, %v2185
        %v2187 = vpop.f32.mrb[0].mxu0
        %v2188 = vadd.f32 %v1982, %v2187
        %v2189 = vpop.f32.mrb[0].mxu0
        %v2190 = vadd.f32 %v1986, %v2189
        %2191 = vdwg.mxu0
        %v2192 = vadd.f32 %v964, %v2184
        %v2193 = vadd.f32 %v965, %v2186
        %v2194 = vadd.f32 %v966, %v2188
        %v2195 = vadd.f32 %v967, %v2190
        %v2196 = vld [vmem:[%s930] sm:$0x3]
        %v2197 = vld [vmem:[%s934] sm:$0x3]
        %v2198 = vadd.f32 %v2192, %v2193
        %2199 = vadd.xlane.f32.xlu0 %v2198
        %v2200 = vpop.xlane.xlu0 %2199
        %v2201 = vadd.f32 %v2194, %v2195
        %2202 = vadd.xlane.f32.xlu0 %v2201
        %v2203 = vpop.xlane.xlu0 %2202
        %v2204 = vrcp.pop 256.0
        %v2205 = vmul.f32 %v2200, %v2204
        %v2206 = vmul.f32 %v2203, %v2204
        %v2207 = vsub.f32 %v2192, %v2205
        %v2208 = vsub.f32 %v2193, %v2205
        %v2209 = vsub.f32 %v2194, %v2206
        %v2210 = vsub.f32 %v2195, %v2206
        %v2211 = vmul.f32 %v2207, %v2207
        %v2212 = vmul.f32 %v2208, %v2208
        %v2213 = vmul.f32 %v2209, %v2209
        %v2214 = vmul.f32 %v2210, %v2210
        %v2215 = vadd.f32 %v2211, %v2212
        %2216 = vadd.xlane.f32.xlu0 %v2215
        %v2217 = vpop.xlane.xlu0 %2216
        %v2218 = vadd.f32 %v2213, %v2214
        %2219 = vadd.xlane.f32.xlu0 %v2218
        %v2220 = vpop.xlane.xlu0 %2219
        %v2221 = vmul.f32 %v2217, %v2204
        %v2222 = vmul.f32 %v2220, %v2204
        %v2223 = vadd.f32 %v2221, 1e-12
        %v2224 = vadd.f32 %v2222, 1e-12
        %v2225 = vrsqrt.pop %v2223
        %v2226 = vrsqrt.pop %v2224
        %v2227 = vmul.f32 %v2207, %v2225
        %v2228 = vmul.f32 %v2208, %v2225
        %v2229 = vmul.f32 %v2209, %v2226
        %v2230 = vmul.f32 %v2210, %v2226
        %v2232 = vlaneseq
        %v2233 = vshrl.u32 %v2232, 7
        %v2234 = vsub.s32 0, %v2233
        %v2235 = vrot.slane %v2196, %v2234
        %v2236 = vlaneseq
        %v2237 = vshrl.u32 %v2236, 7
        %v2238 = vsub.s32 1, %v2237
        %v2239 = vrot.slane %v2196, %v2238
        %v2242 = vmul.f32 %v2227, %v2235
        %v2243 = vmul.f32 %v2228, %v2239
        %v2244 = vmul.f32 %v2229, %v2235
        %v2245 = vmul.f32 %v2230, %v2239
        %v2247 = vlaneseq
        %v2248 = vshrl.u32 %v2247, 7
        %v2249 = vsub.s32 0, %v2248
        %v2250 = vrot.slane %v2197, %v2249
        %v2251 = vlaneseq
        %v2252 = vshrl.u32 %v2251, 7
        %v2253 = vsub.s32 1, %v2252
        %v2254 = vrot.slane %v2197, %v2253
        %v2257 = vadd.f32 %v2242, %v2250
        %v2258 = vadd.f32 %v2243, %v2254
        %v2259 = vadd.f32 %v2244, %v2250
        %v2260 = vadd.f32 %v2245, %v2254
        %v2261 = vld [vmem:[%s795] sm:$0xff]
        %v2262 = vld [vmem:[%s795 + $0x8] sm:$0xff]
        %v2263 = vld [vmem:[%s795 + $0x10] sm:$0xff]
        %v2264 = vld [vmem:[%s795 + $0x18] sm:$0xff]
        %v2265 = vld [vmem:[%s795 + $0x20] sm:$0xff]
        %v2266 = vld [vmem:[%s795 + $0x28] sm:$0xff]
        %v2267 = vld [vmem:[%s795 + $0x30] sm:$0xff]
        %v2268 = vld [vmem:[%s795 + $0x38] sm:$0xff]
        %v2269 = vld [vmem:[%s795 + $0x40] sm:$0xff]
        %v2270 = vld [vmem:[%s795 + $0x48] sm:$0xff]
        %v2271 = vld [vmem:[%s795 + $0x50] sm:$0xff]
        %v2272 = vld [vmem:[%s795 + $0x58] sm:$0xff]
        %v2273 = vld [vmem:[%s795 + $0x60] sm:$0xff]
        %v2274 = vld [vmem:[%s795 + $0x68] sm:$0xff]
        %v2275 = vld [vmem:[%s795 + $0x70] sm:$0xff]
        %v2276 = vld [vmem:[%s795 + $0x78] sm:$0xff]
        %v2277 = vld [vmem:[%s795 + $0x80] sm:$0xff]
        %v2278 = vld [vmem:[%s795 + $0x88] sm:$0xff]
        %v2279 = vld [vmem:[%s795 + $0x90] sm:$0xff]
        %v2280 = vld [vmem:[%s795 + $0x98] sm:$0xff]
        %v2281 = vld [vmem:[%s795 + $0xa0] sm:$0xff]
        %v2282 = vld [vmem:[%s795 + $0xa8] sm:$0xff]
        %v2283 = vld [vmem:[%s795 + $0xb0] sm:$0xff]
        %v2284 = vld [vmem:[%s795 + $0xb8] sm:$0xff]
        %v2285 = vld [vmem:[%s795 + $0xc0] sm:$0xff]
        %v2286 = vld [vmem:[%s795 + $0xc8] sm:$0xff]
        %v2287 = vld [vmem:[%s795 + $0xd0] sm:$0xff]
        %v2288 = vld [vmem:[%s795 + $0xd8] sm:$0xff]
        %v2289 = vld [vmem:[%s795 + $0xe0] sm:$0xff]
        %v2290 = vld [vmem:[%s795 + $0xe8] sm:$0xff]
        %v2291 = vld [vmem:[%s795 + $0xf0] sm:$0xff]
        %v2292 = vld [vmem:[%s795 + $0xf8] sm:$0xff]
        %v2293 = vld [vmem:[%s795 + $0x100] sm:$0xff]
        %v2294 = vld [vmem:[%s795 + $0x108] sm:$0xff]
        %v2295 = vld [vmem:[%s795 + $0x110] sm:$0xff]
        %v2296 = vld [vmem:[%s795 + $0x118] sm:$0xff]
        %v2297 = vld [vmem:[%s795 + $0x120] sm:$0xff]
        %v2298 = vld [vmem:[%s795 + $0x128] sm:$0xff]
        %v2299 = vld [vmem:[%s795 + $0x130] sm:$0xff]
        %v2300 = vld [vmem:[%s795 + $0x138] sm:$0xff]
        %v2301 = vld [vmem:[%s795 + $0x140] sm:$0xff]
        %v2302 = vld [vmem:[%s795 + $0x148] sm:$0xff]
        %v2303 = vld [vmem:[%s795 + $0x150] sm:$0xff]
        %v2304 = vld [vmem:[%s795 + $0x158] sm:$0xff]
        %v2305 = vld [vmem:[%s795 + $0x160] sm:$0xff]
        %v2306 = vld [vmem:[%s795 + $0x168] sm:$0xff]
        %v2307 = vld [vmem:[%s795 + $0x170] sm:$0xff]
        %v2308 = vld [vmem:[%s795 + $0x178] sm:$0xff]
        %v2309 = vld [vmem:[%s795 + $0x180] sm:$0xff]
        %v2310 = vld [vmem:[%s795 + $0x188] sm:$0xff]
        %v2311 = vld [vmem:[%s795 + $0x190] sm:$0xff]
        %v2312 = vld [vmem:[%s795 + $0x198] sm:$0xff]
        %v2313 = vld [vmem:[%s795 + $0x1a0] sm:$0xff]
        %v2314 = vld [vmem:[%s795 + $0x1a8] sm:$0xff]
        %v2315 = vld [vmem:[%s795 + $0x1b0] sm:$0xff]
        %v2316 = vld [vmem:[%s795 + $0x1b8] sm:$0xff]
        %v2317 = vld [vmem:[%s795 + $0x1c0] sm:$0xff]
        %v2318 = vld [vmem:[%s795 + $0x1c8] sm:$0xff]
        %v2319 = vld [vmem:[%s795 + $0x1d0] sm:$0xff]
        %v2320 = vld [vmem:[%s795 + $0x1d8] sm:$0xff]
        %v2321 = vld [vmem:[%s795 + $0x1e0] sm:$0xff]
        %v2322 = vld [vmem:[%s795 + $0x1e8] sm:$0xff]
        %v2323 = vld [vmem:[%s795 + $0x1f0] sm:$0xff]
        %v2324 = vld [vmem:[%s795 + $0x1f8] sm:$0xff]
        %v2325 = vld [vmem:[%s938] sm:$0xf]
        %v2326 = vld [vmem:[%s804] sm:$0xff]
        %v2327 = vld [vmem:[%s804 + $0x8] sm:$0xff]
        %v2328 = vld [vmem:[%s804 + $0x10] sm:$0xff]
        %v2329 = vld [vmem:[%s804 + $0x18] sm:$0xff]
        %v2330 = vld [vmem:[%s804 + $0x20] sm:$0xff]
        %v2331 = vld [vmem:[%s804 + $0x28] sm:$0xff]
        %v2332 = vld [vmem:[%s804 + $0x30] sm:$0xff]
        %v2333 = vld [vmem:[%s804 + $0x38] sm:$0xff]
        %v2334 = vld [vmem:[%s804 + $0x40] sm:$0xff]
        %v2335 = vld [vmem:[%s804 + $0x48] sm:$0xff]
        %v2336 = vld [vmem:[%s804 + $0x50] sm:$0xff]
        %v2337 = vld [vmem:[%s804 + $0x58] sm:$0xff]
        %v2338 = vld [vmem:[%s804 + $0x60] sm:$0xff]
        %v2339 = vld [vmem:[%s804 + $0x68] sm:$0xff]
        %v2340 = vld [vmem:[%s804 + $0x70] sm:$0xff]
        %v2341 = vld [vmem:[%s804 + $0x78] sm:$0xff]
        %v2342 = vld [vmem:[%s804 + $0x80] sm:$0xff]
        %v2343 = vld [vmem:[%s804 + $0x88] sm:$0xff]
        %v2344 = vld [vmem:[%s804 + $0x90] sm:$0xff]
        %v2345 = vld [vmem:[%s804 + $0x98] sm:$0xff]
        %v2346 = vld [vmem:[%s804 + $0xa0] sm:$0xff]
        %v2347 = vld [vmem:[%s804 + $0xa8] sm:$0xff]
        %v2348 = vld [vmem:[%s804 + $0xb0] sm:$0xff]
        %v2349 = vld [vmem:[%s804 + $0xb8] sm:$0xff]
        %v2350 = vld [vmem:[%s804 + $0xc0] sm:$0xff]
        %v2351 = vld [vmem:[%s804 + $0xc8] sm:$0xff]
        %v2352 = vld [vmem:[%s804 + $0xd0] sm:$0xff]
        %v2353 = vld [vmem:[%s804 + $0xd8] sm:$0xff]
        %v2354 = vld [vmem:[%s804 + $0xe0] sm:$0xff]
        %v2355 = vld [vmem:[%s804 + $0xe8] sm:$0xff]
        %v2356 = vld [vmem:[%s804 + $0xf0] sm:$0xff]
        %v2357 = vld [vmem:[%s804 + $0xf8] sm:$0xff]
        %v2358 = vld [vmem:[%s804 + $0x100] sm:$0xff]
        %v2359 = vld [vmem:[%s804 + $0x108] sm:$0xff]
        %v2360 = vld [vmem:[%s804 + $0x110] sm:$0xff]
        %v2361 = vld [vmem:[%s804 + $0x118] sm:$0xff]
        %v2362 = vld [vmem:[%s804 + $0x120] sm:$0xff]
        %v2363 = vld [vmem:[%s804 + $0x128] sm:$0xff]
        %v2364 = vld [vmem:[%s804 + $0x130] sm:$0xff]
        %v2365 = vld [vmem:[%s804 + $0x138] sm:$0xff]
        %v2366 = vld [vmem:[%s804 + $0x140] sm:$0xff]
        %v2367 = vld [vmem:[%s804 + $0x148] sm:$0xff]
        %v2368 = vld [vmem:[%s804 + $0x150] sm:$0xff]
        %v2369 = vld [vmem:[%s804 + $0x158] sm:$0xff]
        %v2370 = vld [vmem:[%s804 + $0x160] sm:$0xff]
        %v2371 = vld [vmem:[%s804 + $0x168] sm:$0xff]
        %v2372 = vld [vmem:[%s804 + $0x170] sm:$0xff]
        %v2373 = vld [vmem:[%s804 + $0x178] sm:$0xff]
        %v2374 = vld [vmem:[%s804 + $0x180] sm:$0xff]
        %v2375 = vld [vmem:[%s804 + $0x188] sm:$0xff]
        %v2376 = vld [vmem:[%s804 + $0x190] sm:$0xff]
        %v2377 = vld [vmem:[%s804 + $0x198] sm:$0xff]
        %v2378 = vld [vmem:[%s804 + $0x1a0] sm:$0xff]
        %v2379 = vld [vmem:[%s804 + $0x1a8] sm:$0xff]
        %v2380 = vld [vmem:[%s804 + $0x1b0] sm:$0xff]
        %v2381 = vld [vmem:[%s804 + $0x1b8] sm:$0xff]
        %v2382 = vld [vmem:[%s804 + $0x1c0] sm:$0xff]
        %v2383 = vld [vmem:[%s804 + $0x1c8] sm:$0xff]
        %v2384 = vld [vmem:[%s804 + $0x1d0] sm:$0xff]
        %v2385 = vld [vmem:[%s804 + $0x1d8] sm:$0xff]
        %v2386 = vld [vmem:[%s804 + $0x1e0] sm:$0xff]
        %v2387 = vld [vmem:[%s804 + $0x1e8] sm:$0xff]
        %v2388 = vld [vmem:[%s804 + $0x1f0] sm:$0xff]
        %v2389 = vld [vmem:[%s804 + $0x1f8] sm:$0xff]
        %v2390 = vld [vmem:[%s942] sm:$0x3]
        %v2391 = vpack.c.bf16 %v2259, %v2257
        %v2392 = vpack.c.bf16 %v2260, %v2258
        %v2394 = vlaneseq
        %v2395 = vshrl.u32 %v2394, 7
        %v2396 = vsub.s32 0, %v2395
        %v2397 = vrot.slane %v2325, %v2396
        %v2398 = vlaneseq
        %v2399 = vshrl.u32 %v2398, 7
        %v2400 = vsub.s32 1, %v2399
        %v2401 = vrot.slane %v2325, %v2400
        %v2402 = vlaneseq
        %v2403 = vshrl.u32 %v2402, 7
        %v2404 = vsub.s32 2, %v2403
        %v2405 = vrot.slane %v2325, %v2404
        %v2406 = vlaneseq
        %v2407 = vshrl.u32 %v2406, 7
        %v2408 = vsub.s32 3, %v2407
        %v2409 = vrot.slane %v2325, %v2408
        %v2478 = vunpack.c.l.b16 %v2261
        %v2479 = vunpack.c.h.b16 %v2261
        %v2480 = vunpack.c.l.b16 %v2262
        %v2481 = vunpack.c.h.b16 %v2262
        %v2482 = vunpack.c.l.b16 %v2263
        %v2483 = vunpack.c.h.b16 %v2263
        %v2484 = vunpack.c.l.b16 %v2264
        %v2485 = vunpack.c.h.b16 %v2264
        %v2486 = vunpack.c.l.b16 %v2265
        %v2487 = vunpack.c.h.b16 %v2265
        %v2488 = vunpack.c.l.b16 %v2266
        %v2489 = vunpack.c.h.b16 %v2266
        %v2490 = vunpack.c.l.b16 %v2267
        %v2491 = vunpack.c.h.b16 %v2267
        %v2492 = vunpack.c.l.b16 %v2268
        %v2493 = vunpack.c.h.b16 %v2268
        %v2494 = vunpack.c.l.b16 %v2269
        %v2495 = vunpack.c.h.b16 %v2269
        %v2496 = vunpack.c.l.b16 %v2270
        %v2497 = vunpack.c.h.b16 %v2270
        %v2498 = vunpack.c.l.b16 %v2271
        %v2499 = vunpack.c.h.b16 %v2271
        %v2500 = vunpack.c.l.b16 %v2272
        %v2501 = vunpack.c.h.b16 %v2272
        %v2502 = vunpack.c.l.b16 %v2273
        %v2503 = vunpack.c.h.b16 %v2273
        %v2504 = vunpack.c.l.b16 %v2274
        %v2505 = vunpack.c.h.b16 %v2274
        %v2506 = vunpack.c.l.b16 %v2275
        %v2507 = vunpack.c.h.b16 %v2275
        %v2508 = vunpack.c.l.b16 %v2276
        %v2509 = vunpack.c.h.b16 %v2276
        %v2510 = vunpack.c.l.b16 %v2277
        %v2511 = vunpack.c.h.b16 %v2277
        %v2512 = vunpack.c.l.b16 %v2278
        %v2513 = vunpack.c.h.b16 %v2278
        %v2514 = vunpack.c.l.b16 %v2279
        %v2515 = vunpack.c.h.b16 %v2279
        %v2516 = vunpack.c.l.b16 %v2280
        %v2517 = vunpack.c.h.b16 %v2280
        %v2518 = vunpack.c.l.b16 %v2281
        %v2519 = vunpack.c.h.b16 %v2281
        %v2520 = vunpack.c.l.b16 %v2282
        %v2521 = vunpack.c.h.b16 %v2282
        %v2522 = vunpack.c.l.b16 %v2283
        %v2523 = vunpack.c.h.b16 %v2283
        %v2524 = vunpack.c.l.b16 %v2284
        %v2525 = vunpack.c.h.b16 %v2284
        %v2526 = vunpack.c.l.b16 %v2285
        %v2527 = vunpack.c.h.b16 %v2285
        %v2528 = vunpack.c.l.b16 %v2286
        %v2529 = vunpack.c.h.b16 %v2286
        %v2530 = vunpack.c.l.b16 %v2287
        %v2531 = vunpack.c.h.b16 %v2287
        %v2532 = vunpack.c.l.b16 %v2288
        %v2533 = vunpack.c.h.b16 %v2288
        %v2534 = vunpack.c.l.b16 %v2289
        %v2535 = vunpack.c.h.b16 %v2289
        %v2536 = vunpack.c.l.b16 %v2290
        %v2537 = vunpack.c.h.b16 %v2290
        %v2538 = vunpack.c.l.b16 %v2291
        %v2539 = vunpack.c.h.b16 %v2291
        %v2540 = vunpack.c.l.b16 %v2292
        %v2541 = vunpack.c.h.b16 %v2292
        %v2542 = vunpack.c.l.b16 %v2293
        %v2543 = vunpack.c.h.b16 %v2293
        %v2544 = vunpack.c.l.b16 %v2294
        %v2545 = vunpack.c.h.b16 %v2294
        %v2546 = vunpack.c.l.b16 %v2295
        %v2547 = vunpack.c.h.b16 %v2295
        %v2548 = vunpack.c.l.b16 %v2296
        %v2549 = vunpack.c.h.b16 %v2296
        %v2550 = vunpack.c.l.b16 %v2297
        %v2551 = vunpack.c.h.b16 %v2297
        %v2552 = vunpack.c.l.b16 %v2298
        %v2553 = vunpack.c.h.b16 %v2298
        %v2554 = vunpack.c.l.b16 %v2299
        %v2555 = vunpack.c.h.b16 %v2299
        %v2556 = vunpack.c.l.b16 %v2300
        %v2557 = vunpack.c.h.b16 %v2300
        %v2558 = vunpack.c.l.b16 %v2301
        %v2559 = vunpack.c.h.b16 %v2301
        %v2560 = vunpack.c.l.b16 %v2302
        %v2561 = vunpack.c.h.b16 %v2302
        %v2562 = vunpack.c.l.b16 %v2303
        %v2563 = vunpack.c.h.b16 %v2303
        %v2564 = vunpack.c.l.b16 %v2304
        %v2565 = vunpack.c.h.b16 %v2304
        %v2566 = vunpack.c.l.b16 %v2305
        %v2567 = vunpack.c.h.b16 %v2305
        %v2568 = vunpack.c.l.b16 %v2306
        %v2569 = vunpack.c.h.b16 %v2306
        %v2570 = vunpack.c.l.b16 %v2307
        %v2571 = vunpack.c.h.b16 %v2307
        %v2572 = vunpack.c.l.b16 %v2308
        %v2573 = vunpack.c.h.b16 %v2308
        %v2574 = vunpack.c.l.b16 %v2309
        %v2575 = vunpack.c.h.b16 %v2309
        %v2576 = vunpack.c.l.b16 %v2310
        %v2577 = vunpack.c.h.b16 %v2310
        %v2578 = vunpack.c.l.b16 %v2311
        %v2579 = vunpack.c.h.b16 %v2311
        %v2580 = vunpack.c.l.b16 %v2312
        %v2581 = vunpack.c.h.b16 %v2312
        %v2582 = vunpack.c.l.b16 %v2313
        %v2583 = vunpack.c.h.b16 %v2313
        %v2584 = vunpack.c.l.b16 %v2314
        %v2585 = vunpack.c.h.b16 %v2314
        %v2586 = vunpack.c.l.b16 %v2315
        %v2587 = vunpack.c.h.b16 %v2315
        %v2588 = vunpack.c.l.b16 %v2316
        %v2589 = vunpack.c.h.b16 %v2316
        %v2590 = vunpack.c.l.b16 %v2317
        %v2591 = vunpack.c.h.b16 %v2317
        %v2592 = vunpack.c.l.b16 %v2318
        %v2593 = vunpack.c.h.b16 %v2318
        %v2594 = vunpack.c.l.b16 %v2319
        %v2595 = vunpack.c.h.b16 %v2319
        %v2596 = vunpack.c.l.b16 %v2320
        %v2597 = vunpack.c.h.b16 %v2320
        %v2598 = vunpack.c.l.b16 %v2321
        %v2599 = vunpack.c.h.b16 %v2321
        %v2600 = vunpack.c.l.b16 %v2322
        %v2601 = vunpack.c.h.b16 %v2322
        %v2602 = vunpack.c.l.b16 %v2323
        %v2603 = vunpack.c.h.b16 %v2323
        %v2604 = vunpack.c.l.b16 %v2324
        %v2605 = vunpack.c.h.b16 %v2324
        %v2606 = vpack.c.b16 %v2482, %v2478
        %v2607 = vpack.c.b16 %v2483, %v2479
        %v2608 = vpack.c.b16 %v2484, %v2480
        %v2609 = vpack.c.b16 %v2485, %v2481
        %v2610 = vpack.c.b16 %v2490, %v2486
        %v2611 = vpack.c.b16 %v2491, %v2487
        %v2612 = vpack.c.b16 %v2492, %v2488
        %v2613 = vpack.c.b16 %v2493, %v2489
        %v2614 = vpack.c.b16 %v2498, %v2494
        %v2615 = vpack.c.b16 %v2499, %v2495
        %v2616 = vpack.c.b16 %v2500, %v2496
        %v2617 = vpack.c.b16 %v2501, %v2497
        %v2618 = vpack.c.b16 %v2506, %v2502
        %v2619 = vpack.c.b16 %v2507, %v2503
        %v2620 = vpack.c.b16 %v2508, %v2504
        %v2621 = vpack.c.b16 %v2509, %v2505
        %v2622 = vpack.c.b16 %v2514, %v2510
        %v2623 = vpack.c.b16 %v2515, %v2511
        %v2624 = vpack.c.b16 %v2516, %v2512
        %v2625 = vpack.c.b16 %v2517, %v2513
        %v2626 = vpack.c.b16 %v2522, %v2518
        %v2627 = vpack.c.b16 %v2523, %v2519
        %v2628 = vpack.c.b16 %v2524, %v2520
        %v2629 = vpack.c.b16 %v2525, %v2521
        %v2630 = vpack.c.b16 %v2530, %v2526
        %v2631 = vpack.c.b16 %v2531, %v2527
        %v2632 = vpack.c.b16 %v2532, %v2528
        %v2633 = vpack.c.b16 %v2533, %v2529
        %v2634 = vpack.c.b16 %v2538, %v2534
        %v2635 = vpack.c.b16 %v2539, %v2535
        %v2636 = vpack.c.b16 %v2540, %v2536
        %v2637 = vpack.c.b16 %v2541, %v2537
        %v2638 = vpack.c.b16 %v2546, %v2542
        %v2639 = vpack.c.b16 %v2547, %v2543
        %v2640 = vpack.c.b16 %v2548, %v2544
        %v2641 = vpack.c.b16 %v2549, %v2545
        %v2642 = vpack.c.b16 %v2554, %v2550
        %v2643 = vpack.c.b16 %v2555, %v2551
        %v2644 = vpack.c.b16 %v2556, %v2552
        %v2645 = vpack.c.b16 %v2557, %v2553
        %v2646 = vpack.c.b16 %v2562, %v2558
        %v2647 = vpack.c.b16 %v2563, %v2559
        %v2648 = vpack.c.b16 %v2564, %v2560
        %v2649 = vpack.c.b16 %v2565, %v2561
        %v2650 = vpack.c.b16 %v2570, %v2566
        %v2651 = vpack.c.b16 %v2571, %v2567
        %v2652 = vpack.c.b16 %v2572, %v2568
        %v2653 = vpack.c.b16 %v2573, %v2569
        %v2654 = vpack.c.b16 %v2578, %v2574
        %v2655 = vpack.c.b16 %v2579, %v2575
        %v2656 = vpack.c.b16 %v2580, %v2576
        %v2657 = vpack.c.b16 %v2581, %v2577
        %v2658 = vpack.c.b16 %v2586, %v2582
        %v2659 = vpack.c.b16 %v2587, %v2583
        %v2660 = vpack.c.b16 %v2588, %v2584
        %v2661 = vpack.c.b16 %v2589, %v2585
        %v2662 = vpack.c.b16 %v2594, %v2590
        %v2663 = vpack.c.b16 %v2595, %v2591
        %v2664 = vpack.c.b16 %v2596, %v2592
        %v2665 = vpack.c.b16 %v2597, %v2593
        %v2666 = vpack.c.b16 %v2602, %v2598
        %v2667 = vpack.c.b16 %v2603, %v2599
        %v2668 = vpack.c.b16 %v2604, %v2600
        %v2669 = vpack.c.b16 %v2605, %v2601
        %2734 = vmatprep.subr.bf16.mxu0 %v2607
        %2735 = vmatpush1.bf16.msra.mxu0 %v2606
        %2736 = vmatprep.subr.bf16.mxu0 %v2611
        %2737 = vmatpush1.bf16.msra.mxu0 %v2610
        %2738 = vmatprep.subr.bf16.mxu0 %v2615
        %2739 = vmatpush1.bf16.msra.mxu0 %v2614
        %2740 = vmatprep.subr.bf16.mxu0 %v2619
        %2741 = vmatpush1.bf16.msra.mxu0 %v2618
        %2742 = vmatprep.subr.bf16.mxu0 %v2623
        %2743 = vmatpush1.bf16.msra.mxu0 %v2622
        %2744 = vmatprep.subr.bf16.mxu0 %v2627
        %2745 = vmatpush1.bf16.msra.mxu0 %v2626
        %2746 = vmatprep.subr.bf16.mxu0 %v2631
        %2747 = vmatpush1.bf16.msra.mxu0 %v2630
        %2748 = vmatprep.subr.bf16.mxu0 %v2635
        %2749 = vmatpush1.bf16.msra.mxu0 %v2634
        %2750 = vmatprep.subr.bf16.mxu0 %v2639
        %2751 = vmatpush1.bf16.msra.mxu0 %v2638
        %2752 = vmatprep.subr.bf16.mxu0 %v2643
        %2753 = vmatpush1.bf16.msra.mxu0 %v2642
        %2754 = vmatprep.subr.bf16.mxu0 %v2647
        %2755 = vmatpush1.bf16.msra.mxu0 %v2646
        %2756 = vmatprep.subr.bf16.mxu0 %v2651
        %2757 = vmatpush1.bf16.msra.mxu0 %v2650
        %2758 = vmatprep.subr.bf16.mxu0 %v2655
        %2759 = vmatpush1.bf16.msra.mxu0 %v2654
        %2760 = vmatprep.subr.bf16.mxu0 %v2659
        %2761 = vmatpush1.bf16.msra.mxu0 %v2658
        %2762 = vmatprep.subr.bf16.mxu0 %v2663
        %2763 = vmatpush1.bf16.msra.mxu0 %v2662
        %2764 = vmatprep.subr.bf16.mxu0 %v2667
        %2765 = vmatpush1.bf16.msra.mxu0 %v2666
        %2766 = vmatprep.mubr.bf16.mxu0 %v2392
        %2767 = vmatmul.mubr.bf16.gmra.mrb[0].mxu0 %v2391
        %v2768 = vpop.f32.mrb[0].mxu0
        %v2769 = vadd.f32 %v2397, %v2768
        %v2770 = vpop.f32.mrb[0].mxu0
        %v2771 = vadd.f32 %v2401, %v2770
        %v2772 = vpop.f32.mrb[0].mxu0
        %v2773 = vadd.f32 %v2397, %v2772
        %v2774 = vpop.f32.mrb[0].mxu0
        %v2775 = vadd.f32 %v2401, %v2774
        %2776 = vdwg.mxu0
        %2777 = vmatprep.subr.bf16.mxu0 %v2609
        %2778 = vmatpush1.bf16.msra.mxu0 %v2608
        %2779 = vmatprep.subr.bf16.mxu0 %v2613
        %2780 = vmatpush1.bf16.msra.mxu0 %v2612
        %2781 = vmatprep.subr.bf16.mxu0 %v2617
        %2782 = vmatpush1.bf16.msra.mxu0 %v2616
        %2783 = vmatprep.subr.bf16.mxu0 %v2621
        %2784 = vmatpush1.bf16.msra.mxu0 %v2620
        %2785 = vmatprep.subr.bf16.mxu0 %v2625
        %2786 = vmatpush1.bf16.msra.mxu0 %v2624
        %2787 = vmatprep.subr.bf16.mxu0 %v2629
        %2788 = vmatpush1.bf16.msra.mxu0 %v2628
        %2789 = vmatprep.subr.bf16.mxu0 %v2633
        %2790 = vmatpush1.bf16.msra.mxu0 %v2632
        %2791 = vmatprep.subr.bf16.mxu0 %v2637
        %2792 = vmatpush1.bf16.msra.mxu0 %v2636
        %2793 = vmatprep.subr.bf16.mxu0 %v2641
        %2794 = vmatpush1.bf16.msra.mxu0 %v2640
        %2795 = vmatprep.subr.bf16.mxu0 %v2645
        %2796 = vmatpush1.bf16.msra.mxu0 %v2644
        %2797 = vmatprep.subr.bf16.mxu0 %v2649
        %2798 = vmatpush1.bf16.msra.mxu0 %v2648
        %2799 = vmatprep.subr.bf16.mxu0 %v2653
        %2800 = vmatpush1.bf16.msra.mxu0 %v2652
        %2801 = vmatprep.subr.bf16.mxu0 %v2657
        %2802 = vmatpush1.bf16.msra.mxu0 %v2656
        %2803 = vmatprep.subr.bf16.mxu0 %v2661
        %2804 = vmatpush1.bf16.msra.mxu0 %v2660
        %2805 = vmatprep.subr.bf16.mxu0 %v2665
        %2806 = vmatpush1.bf16.msra.mxu0 %v2664
        %2807 = vmatprep.subr.bf16.mxu0 %v2669
        %2808 = vmatpush1.bf16.msra.mxu0 %v2668
        %2809 = vmatprep.mubr.bf16.mxu0 %v2392
        %2810 = vmatmul.mubr.bf16.gmra.mrb[0].mxu0 %v2391
        %v2811 = vpop.f32.mrb[0].mxu0
        %v2812 = vadd.f32 %v2405, %v2811
        %v2813 = vpop.f32.mrb[0].mxu0
        %v2814 = vadd.f32 %v2409, %v2813
        %v2815 = vpop.f32.mrb[0].mxu0
        %v2816 = vadd.f32 %v2405, %v2815
        %v2817 = vpop.f32.mrb[0].mxu0
        %v2818 = vadd.f32 %v2409, %v2817
        %2819 = vdwg.mxu0
        %v2820 = vmul.f32 %v2769, %v2769
        %v2821 = vmul.f32 %v2771, %v2771
        %v2822 = vmul.f32 %v2812, %v2812
        %v2823 = vmul.f32 %v2814, %v2814
        %v2824 = vmul.f32 %v2773, %v2773
        %v2825 = vmul.f32 %v2775, %v2775
        %v2826 = vmul.f32 %v2816, %v2816
        %v2827 = vmul.f32 %v2818, %v2818
        %v2828 = vmul.f32 %v2769, %v2820
        %v2829 = vmul.f32 %v2771, %v2821
        %v2830 = vmul.f32 %v2812, %v2822
        %v2831 = vmul.f32 %v2814, %v2823
        %v2832 = vmul.f32 %v2773, %v2824
        %v2833 = vmul.f32 %v2775, %v2825
        %v2834 = vmul.f32 %v2816, %v2826
        %v2835 = vmul.f32 %v2818, %v2827
        %v2836 = vmul.f32 %v2828, 0.044715
        %v2837 = vmul.f32 %v2829, 0.044715
        %v2838 = vmul.f32 %v2830, 0.044715
        %v2839 = vmul.f32 %v2831, 0.044715
        %v2840 = vmul.f32 %v2832, 0.044715
        %v2841 = vmul.f32 %v2833, 0.044715
        %v2842 = vmul.f32 %v2834, 0.044715
        %v2843 = vmul.f32 %v2835, 0.044715
        %v2844 = vadd.f32 %v2769, %v2836
        %v2845 = vadd.f32 %v2771, %v2837
        %v2846 = vadd.f32 %v2812, %v2838
        %v2847 = vadd.f32 %v2814, %v2839
        %v2848 = vadd.f32 %v2773, %v2840
        %v2849 = vadd.f32 %v2775, %v2841
        %v2850 = vadd.f32 %v2816, %v2842
        %v2851 = vadd.f32 %v2818, %v2843
        %v2852 = vmul.f32 %v2844, 0.7978846
        %v2853 = vmul.f32 %v2845, 0.7978846
        %v2854 = vmul.f32 %v2846, 0.7978846
        %v2855 = vmul.f32 %v2847, 0.7978846
        %v2856 = vmul.f32 %v2848, 0.7978846
        %v2857 = vmul.f32 %v2849, 0.7978846
        %v2858 = vmul.f32 %v2850, 0.7978846
        %v2859 = vmul.f32 %v2851, 0.7978846
        %v2860 = vtanh.pop %v2852
        %v2861 = vtanh.pop %v2853
        %v2862 = vtanh.pop %v2854
        %v2863 = vtanh.pop %v2855
        %v2864 = vtanh.pop %v2856
        %v2865 = vtanh.pop %v2857
        %v2866 = vtanh.pop %v2858
        %v2867 = vtanh.pop %v2859
        %v2868 = vadd.f32 %v2860, 1.0
        %v2869 = vadd.f32 %v2861, 1.0
        %v2870 = vadd.f32 %v2862, 1.0
        %v2871 = vadd.f32 %v2863, 1.0
        %v2872 = vadd.f32 %v2864, 1.0
        %v2873 = vadd.f32 %v2865, 1.0
        %v2874 = vadd.f32 %v2866, 1.0
        %v2875 = vadd.f32 %v2867, 1.0
        %v2876 = vmul.f32 %v2868, 0.5
        %v2877 = vmul.f32 %v2869, 0.5
        %v2878 = vmul.f32 %v2870, 0.5
        %v2879 = vmul.f32 %v2871, 0.5
        %v2880 = vmul.f32 %v2872, 0.5
        %v2881 = vmul.f32 %v2873, 0.5
        %v2882 = vmul.f32 %v2874, 0.5
        %v2883 = vmul.f32 %v2875, 0.5
        %v2884 = vmul.f32 %v2769, %v2876
        %v2885 = vmul.f32 %v2771, %v2877
        %v2886 = vmul.f32 %v2812, %v2878
        %v2887 = vmul.f32 %v2814, %v2879
        %v2888 = vmul.f32 %v2773, %v2880
        %v2889 = vmul.f32 %v2775, %v2881
        %v2890 = vmul.f32 %v2816, %v2882
        %v2891 = vmul.f32 %v2818, %v2883
        %v2892 = vpack.c.bf16 %v2888, %v2884
        %v2893 = vpack.c.bf16 %v2889, %v2885
        %v2894 = vpack.c.bf16 %v2890, %v2886
        %v2895 = vpack.c.bf16 %v2891, %v2887
        %v2897 = vlaneseq
        %v2898 = vshrl.u32 %v2897, 7
        %v2899 = vsub.s32 0, %v2898
        %v2900 = vrot.slane %v2390, %v2899
        %v2901 = vlaneseq
        %v2902 = vshrl.u32 %v2901, 7
        %v2903 = vsub.s32 1, %v2902
        %v2904 = vrot.slane %v2390, %v2903
        %v2971 = vunpack.c.l.b16 %v2326
        %v2972 = vunpack.c.h.b16 %v2326
        %v2973 = vunpack.c.l.b16 %v2327
        %v2974 = vunpack.c.h.b16 %v2327
        %v2975 = vunpack.c.l.b16 %v2328
        %v2976 = vunpack.c.h.b16 %v2328
        %v2977 = vunpack.c.l.b16 %v2329
        %v2978 = vunpack.c.h.b16 %v2329
        %v2979 = vunpack.c.l.b16 %v2330
        %v2980 = vunpack.c.h.b16 %v2330
        %v2981 = vunpack.c.l.b16 %v2331
        %v2982 = vunpack.c.h.b16 %v2331
        %v2983 = vunpack.c.l.b16 %v2332
        %v2984 = vunpack.c.h.b16 %v2332
        %v2985 = vunpack.c.l.b16 %v2333
        %v2986 = vunpack.c.h.b16 %v2333
        %v2987 = vunpack.c.l.b16 %v2334
        %v2988 = vunpack.c.h.b16 %v2334
        %v2989 = vunpack.c.l.b16 %v2335
        %v2990 = vunpack.c.h.b16 %v2335
        %v2991 = vunpack.c.l.b16 %v2336
        %v2992 = vunpack.c.h.b16 %v2336
        %v2993 = vunpack.c.l.b16 %v2337
        %v2994 = vunpack.c.h.b16 %v2337
        %v2995 = vunpack.c.l.b16 %v2338
        %v2996 = vunpack.c.h.b16 %v2338
        %v2997 = vunpack.c.l.b16 %v2339
        %v2998 = vunpack.c.h.b16 %v2339
        %v2999 = vunpack.c.l.b16 %v2340
        %v3000 = vunpack.c.h.b16 %v2340
        %v3001 = vunpack.c.l.b16 %v2341
        %v3002 = vunpack.c.h.b16 %v2341
        %v3003 = vunpack.c.l.b16 %v2342
        %v3004 = vunpack.c.h.b16 %v2342
        %v3005 = vunpack.c.l.b16 %v2343
        %v3006 = vunpack.c.h.b16 %v2343
        %v3007 = vunpack.c.l.b16 %v2344
        %v3008 = vunpack.c.h.b16 %v2344
        %v3009 = vunpack.c.l.b16 %v2345
        %v3010 = vunpack.c.h.b16 %v2345
        %v3011 = vunpack.c.l.b16 %v2346
        %v3012 = vunpack.c.h.b16 %v2346
        %v3013 = vunpack.c.l.b16 %v2347
        %v3014 = vunpack.c.h.b16 %v2347
        %v3015 = vunpack.c.l.b16 %v2348
        %v3016 = vunpack.c.h.b16 %v2348
        %v3017 = vunpack.c.l.b16 %v2349
        %v3018 = vunpack.c.h.b16 %v2349
        %v3019 = vunpack.c.l.b16 %v2350
        %v3020 = vunpack.c.h.b16 %v2350
        %v3021 = vunpack.c.l.b16 %v2351
        %v3022 = vunpack.c.h.b16 %v2351
        %v3023 = vunpack.c.l.b16 %v2352
        %v3024 = vunpack.c.h.b16 %v2352
        %v3025 = vunpack.c.l.b16 %v2353
        %v3026 = vunpack.c.h.b16 %v2353
        %v3027 = vunpack.c.l.b16 %v2354
        %v3028 = vunpack.c.h.b16 %v2354
        %v3029 = vunpack.c.l.b16 %v2355
        %v3030 = vunpack.c.h.b16 %v2355
        %v3031 = vunpack.c.l.b16 %v2356
        %v3032 = vunpack.c.h.b16 %v2356
        %v3033 = vunpack.c.l.b16 %v2357
        %v3034 = vunpack.c.h.b16 %v2357
        %v3035 = vunpack.c.l.b16 %v2358
        %v3036 = vunpack.c.h.b16 %v2358
        %v3037 = vunpack.c.l.b16 %v2359
        %v3038 = vunpack.c.h.b16 %v2359
        %v3039 = vunpack.c.l.b16 %v2360
        %v3040 = vunpack.c.h.b16 %v2360
        %v3041 = vunpack.c.l.b16 %v2361
        %v3042 = vunpack.c.h.b16 %v2361
        %v3043 = vunpack.c.l.b16 %v2362
        %v3044 = vunpack.c.h.b16 %v2362
        %v3045 = vunpack.c.l.b16 %v2363
        %v3046 = vunpack.c.h.b16 %v2363
        %v3047 = vunpack.c.l.b16 %v2364
        %v3048 = vunpack.c.h.b16 %v2364
        %v3049 = vunpack.c.l.b16 %v2365
        %v3050 = vunpack.c.h.b16 %v2365
        %v3051 = vunpack.c.l.b16 %v2366
        %v3052 = vunpack.c.h.b16 %v2366
        %v3053 = vunpack.c.l.b16 %v2367
        %v3054 = vunpack.c.h.b16 %v2367
        %v3055 = vunpack.c.l.b16 %v2368
        %v3056 = vunpack.c.h.b16 %v2368
        %v3057 = vunpack.c.l.b16 %v2369
        %v3058 = vunpack.c.h.b16 %v2369
        %v3059 = vunpack.c.l.b16 %v2370
        %v3060 = vunpack.c.h.b16 %v2370
        %v3061 = vunpack.c.l.b16 %v2371
        %v3062 = vunpack.c.h.b16 %v2371
        %v3063 = vunpack.c.l.b16 %v2372
        %v3064 = vunpack.c.h.b16 %v2372
        %v3065 = vunpack.c.l.b16 %v2373
        %v3066 = vunpack.c.h.b16 %v2373
        %v3067 = vunpack.c.l.b16 %v2374
        %v3068 = vunpack.c.h.b16 %v2374
        %v3069 = vunpack.c.l.b16 %v2375
        %v3070 = vunpack.c.h.b16 %v2375
        %v3071 = vunpack.c.l.b16 %v2376
        %v3072 = vunpack.c.h.b16 %v2376
        %v3073 = vunpack.c.l.b16 %v2377
        %v3074 = vunpack.c.h.b16 %v2377
        %v3075 = vunpack.c.l.b16 %v2378
        %v3076 = vunpack.c.h.b16 %v2378
        %v3077 = vunpack.c.l.b16 %v2379
        %v3078 = vunpack.c.h.b16 %v2379
        %v3079 = vunpack.c.l.b16 %v2380
        %v3080 = vunpack.c.h.b16 %v2380
        %v3081 = vunpack.c.l.b16 %v2381
        %v3082 = vunpack.c.h.b16 %v2381
        %v3083 = vunpack.c.l.b16 %v2382
        %v3084 = vunpack.c.h.b16 %v2382
        %v3085 = vunpack.c.l.b16 %v2383
        %v3086 = vunpack.c.h.b16 %v2383
        %v3087 = vunpack.c.l.b16 %v2384
        %v3088 = vunpack.c.h.b16 %v2384
        %v3089 = vunpack.c.l.b16 %v2385
        %v3090 = vunpack.c.h.b16 %v2385
        %v3091 = vunpack.c.l.b16 %v2386
        %v3092 = vunpack.c.h.b16 %v2386
        %v3093 = vunpack.c.l.b16 %v2387
        %v3094 = vunpack.c.h.b16 %v2387
        %v3095 = vunpack.c.l.b16 %v2388
        %v3096 = vunpack.c.h.b16 %v2388
        %v3097 = vunpack.c.l.b16 %v2389
        %v3098 = vunpack.c.h.b16 %v2389
        %v3099 = vpack.c.b16 %v2973, %v2971
        %v3100 = vpack.c.b16 %v2974, %v2972
        %v3101 = vpack.c.b16 %v2977, %v2975
        %v3102 = vpack.c.b16 %v2978, %v2976
        %v3103 = vpack.c.b16 %v2981, %v2979
        %v3104 = vpack.c.b16 %v2982, %v2980
        %v3105 = vpack.c.b16 %v2985, %v2983
        %v3106 = vpack.c.b16 %v2986, %v2984
        %v3107 = vpack.c.b16 %v2989, %v2987
        %v3108 = vpack.c.b16 %v2990, %v2988
        %v3109 = vpack.c.b16 %v2993, %v2991
        %v3110 = vpack.c.b16 %v2994, %v2992
        %v3111 = vpack.c.b16 %v2997, %v2995
        %v3112 = vpack.c.b16 %v2998, %v2996
        %v3113 = vpack.c.b16 %v3001, %v2999
        %v3114 = vpack.c.b16 %v3002, %v3000
        %v3115 = vpack.c.b16 %v3005, %v3003
        %v3116 = vpack.c.b16 %v3006, %v3004
        %v3117 = vpack.c.b16 %v3009, %v3007
        %v3118 = vpack.c.b16 %v3010, %v3008
        %v3119 = vpack.c.b16 %v3013, %v3011
        %v3120 = vpack.c.b16 %v3014, %v3012
        %v3121 = vpack.c.b16 %v3017, %v3015
        %v3122 = vpack.c.b16 %v3018, %v3016
        %v3123 = vpack.c.b16 %v3021, %v3019
        %v3124 = vpack.c.b16 %v3022, %v3020
        %v3125 = vpack.c.b16 %v3025, %v3023
        %v3126 = vpack.c.b16 %v3026, %v3024
        %v3127 = vpack.c.b16 %v3029, %v3027
        %v3128 = vpack.c.b16 %v3030, %v3028
        %v3129 = vpack.c.b16 %v3033, %v3031
        %v3130 = vpack.c.b16 %v3034, %v3032
        %v3131 = vpack.c.b16 %v3037, %v3035
        %v3132 = vpack.c.b16 %v3038, %v3036
        %v3133 = vpack.c.b16 %v3041, %v3039
        %v3134 = vpack.c.b16 %v3042, %v3040
        %v3135 = vpack.c.b16 %v3045, %v3043
        %v3136 = vpack.c.b16 %v3046, %v3044
        %v3137 = vpack.c.b16 %v3049, %v3047
        %v3138 = vpack.c.b16 %v3050, %v3048
        %v3139 = vpack.c.b16 %v3053, %v3051
        %v3140 = vpack.c.b16 %v3054, %v3052
        %v3141 = vpack.c.b16 %v3057, %v3055
        %v3142 = vpack.c.b16 %v3058, %v3056
        %v3143 = vpack.c.b16 %v3061, %v3059
        %v3144 = vpack.c.b16 %v3062, %v3060
        %v3145 = vpack.c.b16 %v3065, %v3063
        %v3146 = vpack.c.b16 %v3066, %v3064
        %v3147 = vpack.c.b16 %v3069, %v3067
        %v3148 = vpack.c.b16 %v3070, %v3068
        %v3149 = vpack.c.b16 %v3073, %v3071
        %v3150 = vpack.c.b16 %v3074, %v3072
        %v3151 = vpack.c.b16 %v3077, %v3075
        %v3152 = vpack.c.b16 %v3078, %v3076
        %v3153 = vpack.c.b16 %v3081, %v3079
        %v3154 = vpack.c.b16 %v3082, %v3080
        %v3155 = vpack.c.b16 %v3085, %v3083
        %v3156 = vpack.c.b16 %v3086, %v3084
        %v3157 = vpack.c.b16 %v3089, %v3087
        %v3158 = vpack.c.b16 %v3090, %v3088
        %v3159 = vpack.c.b16 %v3093, %v3091
        %v3160 = vpack.c.b16 %v3094, %v3092
        %v3161 = vpack.c.b16 %v3097, %v3095
        %v3162 = vpack.c.b16 %v3098, %v3096
        %3227 = vmatprep.subr.bf16.mxu0 %v3100
        %3228 = vmatpush1.bf16.msra.mxu0 %v3099
        %3229 = vmatprep.subr.bf16.mxu0 %v3102
        %3230 = vmatpush1.bf16.msra.mxu0 %v3101
        %3231 = vmatprep.subr.bf16.mxu0 %v3104
        %3232 = vmatpush1.bf16.msra.mxu0 %v3103
        %3233 = vmatprep.subr.bf16.mxu0 %v3106
        %3234 = vmatpush1.bf16.msra.mxu0 %v3105
        %3235 = vmatprep.subr.bf16.mxu0 %v3108
        %3236 = vmatpush1.bf16.msra.mxu0 %v3107
        %3237 = vmatprep.subr.bf16.mxu0 %v3110
        %3238 = vmatpush1.bf16.msra.mxu0 %v3109
        %3239 = vmatprep.subr.bf16.mxu0 %v3112
        %3240 = vmatpush1.bf16.msra.mxu0 %v3111
        %3241 = vmatprep.subr.bf16.mxu0 %v3114
        %3242 = vmatpush1.bf16.msra.mxu0 %v3113
        %3243 = vmatprep.subr.bf16.mxu0 %v3116
        %3244 = vmatpush1.bf16.msra.mxu0 %v3115
        %3245 = vmatprep.subr.bf16.mxu0 %v3118
        %3246 = vmatpush1.bf16.msra.mxu0 %v3117
        %3247 = vmatprep.subr.bf16.mxu0 %v3120
        %3248 = vmatpush1.bf16.msra.mxu0 %v3119
        %3249 = vmatprep.subr.bf16.mxu0 %v3122
        %3250 = vmatpush1.bf16.msra.mxu0 %v3121
        %3251 = vmatprep.subr.bf16.mxu0 %v3124
        %3252 = vmatpush1.bf16.msra.mxu0 %v3123
        %3253 = vmatprep.subr.bf16.mxu0 %v3126
        %3254 = vmatpush1.bf16.msra.mxu0 %v3125
        %3255 = vmatprep.subr.bf16.mxu0 %v3128
        %3256 = vmatpush1.bf16.msra.mxu0 %v3127
        %3257 = vmatprep.subr.bf16.mxu0 %v3130
        %3258 = vmatpush1.bf16.msra.mxu0 %v3129
        %3259 = vmatprep.mubr.bf16.mxu0 %v2893
        %3260 = vmatmul.mubr.bf16.gmra.mrb[0].mxu0 %v2892
        %v3261 = vpop.f32.mrb[0].mxu0
        %v3262 = vadd.f32 %v2900, %v3261
        %v3263 = vpop.f32.mrb[0].mxu0
        %v3264 = vadd.f32 %v2904, %v3263
        %v3265 = vpop.f32.mrb[0].mxu0
        %v3266 = vadd.f32 %v2900, %v3265
        %v3267 = vpop.f32.mrb[0].mxu0
        %v3268 = vadd.f32 %v2904, %v3267
        %3269 = vdwg.mxu0
        %3270 = vmatprep.subr.bf16.mxu0 %v3132
        %3271 = vmatpush1.bf16.msra.mxu0 %v3131
        %3272 = vmatprep.subr.bf16.mxu0 %v3134
        %3273 = vmatpush1.bf16.msra.mxu0 %v3133
        %3274 = vmatprep.subr.bf16.mxu0 %v3136
        %3275 = vmatpush1.bf16.msra.mxu0 %v3135
        %3276 = vmatprep.subr.bf16.mxu0 %v3138
        %3277 = vmatpush1.bf16.msra.mxu0 %v3137
        %3278 = vmatprep.subr.bf16.mxu0 %v3140
        %3279 = vmatpush1.bf16.msra.mxu0 %v3139
        %3280 = vmatprep.subr.bf16.mxu0 %v3142
        %3281 = vmatpush1.bf16.msra.mxu0 %v3141
        %3282 = vmatprep.subr.bf16.mxu0 %v3144
        %3283 = vmatpush1.bf16.msra.mxu0 %v3143
        %3284 = vmatprep.subr.bf16.mxu0 %v3146
        %3285 = vmatpush1.bf16.msra.mxu0 %v3145
        %3286 = vmatprep.subr.bf16.mxu0 %v3148
        %3287 = vmatpush1.bf16.msra.mxu0 %v3147
        %3288 = vmatprep.subr.bf16.mxu0 %v3150
        %3289 = vmatpush1.bf16.msra.mxu0 %v3149
        %3290 = vmatprep.subr.bf16.mxu0 %v3152
        %3291 = vmatpush1.bf16.msra.mxu0 %v3151
        %3292 = vmatprep.subr.bf16.mxu0 %v3154
        %3293 = vmatpush1.bf16.msra.mxu0 %v3153
        %3294 = vmatprep.subr.bf16.mxu0 %v3156
        %3295 = vmatpush1.bf16.msra.mxu0 %v3155
        %3296 = vmatprep.subr.bf16.mxu0 %v3158
        %3297 = vmatpush1.bf16.msra.mxu0 %v3157
        %3298 = vmatprep.subr.bf16.mxu0 %v3160
        %3299 = vmatpush1.bf16.msra.mxu0 %v3159
        %3300 = vmatprep.subr.bf16.mxu0 %v3162
        %3301 = vmatpush1.bf16.msra.mxu0 %v3161
        %3302 = vmatprep.mubr.bf16.mxu0 %v2895
        %3303 = vmatmul.mubr.bf16.gmra.mrb[0].mxu0 %v2894
        %v3304 = vpop.f32.mrb[0].mxu0
        %v3305 = vadd.f32 %v3262, %v3304
        %v3306 = vpop.f32.mrb[0].mxu0
        %v3307 = vadd.f32 %v3264, %v3306
        %v3308 = vpop.f32.mrb[0].mxu0
        %v3309 = vadd.f32 %v3266, %v3308
        %v3310 = vpop.f32.mrb[0].mxu0
        %v3311 = vadd.f32 %v3268, %v3310
        %3312 = vdwg.mxu0
        %v3313 = vadd.f32 %v2257, %v3305
        %v3314 = vadd.f32 %v2258, %v3307
        %v3315 = vadd.f32 %v2259, %v3309
        %v3316 = vadd.f32 %v2260, %v3311
        %v3317 = vld [vmem:[%s946] sm:$0x3]
        %v3318 = vld [vmem:[%s950] sm:$0x3]
        %v3319 = vadd.f32 %v3313, %v3314
        %3320 = vadd.xlane.f32.xlu0 %v3319
        %v3321 = vpop.xlane.xlu0 %3320
        %v3322 = vadd.f32 %v3315, %v3316
        %3323 = vadd.xlane.f32.xlu0 %v3322
        %v3324 = vpop.xlane.xlu0 %3323
        %v3325 = vmul.f32 %v3321, %v2204
        %v3326 = vmul.f32 %v3324, %v2204
        %v3327 = vsub.f32 %v3313, %v3325
        %v3328 = vsub.f32 %v3314, %v3325
        %v3329 = vsub.f32 %v3315, %v3326
        %v3330 = vsub.f32 %v3316, %v3326
        %v3331 = vmul.f32 %v3327, %v3327
        %v3332 = vmul.f32 %v3328, %v3328
        %v3333 = vmul.f32 %v3329, %v3329
        %v3334 = vmul.f32 %v3330, %v3330
        %v3335 = vadd.f32 %v3331, %v3332
        %3336 = vadd.xlane.f32.xlu0 %v3335
        %v3337 = vpop.xlane.xlu0 %3336
        %v3338 = vadd.f32 %v3333, %v3334
        %3339 = vadd.xlane.f32.xlu0 %v3338
        %v3340 = vpop.xlane.xlu0 %3339
        %v3341 = vmul.f32 %v3337, %v2204
        %v3342 = vmul.f32 %v3340, %v2204
        %v3343 = vadd.f32 %v3341, 1e-12
        %v3344 = vadd.f32 %v3342, 1e-12
        %v3345 = vrsqrt.pop %v3343
        %v3346 = vrsqrt.pop %v3344
        %v3347 = vmul.f32 %v3327, %v3345
        %v3348 = vmul.f32 %v3328, %v3345
        %v3349 = vmul.f32 %v3329, %v3346
        %v3350 = vmul.f32 %v3330, %v3346
        %v3352 = vlaneseq
        %v3353 = vshrl.u32 %v3352, 7
        %v3354 = vsub.s32 0, %v3353
        %v3355 = vrot.slane %v3317, %v3354
        %v3356 = vlaneseq
        %v3357 = vshrl.u32 %v3356, 7
        %v3358 = vsub.s32 1, %v3357
        %v3359 = vrot.slane %v3317, %v3358
        %v3362 = vmul.f32 %v3347, %v3355
        %v3363 = vmul.f32 %v3348, %v3359
        %v3364 = vmul.f32 %v3349, %v3355
        %v3365 = vmul.f32 %v3350, %v3359
        %v3367 = vlaneseq
        %v3368 = vshrl.u32 %v3367, 7
        %v3369 = vsub.s32 0, %v3368
        %v3370 = vrot.slane %v3318, %v3369
        %v3371 = vlaneseq
        %v3372 = vshrl.u32 %v3371, 7
        %v3373 = vsub.s32 1, %v3372
        %v3374 = vrot.slane %v3318, %v3373
        %v3377 = vadd.f32 %v3362, %v3370
        %v3378 = vadd.f32 %v3363, %v3374
        %v3379 = vadd.f32 %v3364, %v3370
        %v3380 = vadd.f32 %v3365, %v3374
        %3381 = vst [vmem:[#allocation2] sm:$0xff] %v3377
        %3382 = vst [vmem:[#allocation2 + $0x8] sm:$0xff] %v3378
        %3383 = vst [vmem:[#allocation2 + $0x10] sm:$0xff] %v3379
        %3384 = vst [vmem:[#allocation2 + $0x18] sm:$0xff] %v3380
        %p3385 = scmp.eq.s32.totalorder %s50, 1
        // Predicated region
        $region121: #{tpu_custom_call.1} parent=83 // pred_check
          %p3386 = pneg %p3385
        $region122: #{tpu_custom_call.1} parent=83 // pred_check_branch
          %3388 = sbr.rel (%p3386) target = $region124
        $region123: #{tpu_custom_call.1} parent=83 // pred_region
          %v3389 = vpack.c.bf16 %v3379, %v3377
          %v3390 = vpack.c.bf16 %v3380, %v3378
          %v3393 = vunpack.c.l.b16 %v3389
          %v3394 = vunpack.c.l.b16 %v3390
          %v3395 = vunpack.c.h.b16 %v3389
          %v3396 = vunpack.c.h.b16 %v3390
          %v3397 = vpack.c.b16 %v3394, %v3393
          %v3398 = vpack.c.b16 %v3396, %v3395
          %3401 = vst [vmem:[%s918] sm:$0xff] %v3397
          %3402 = vst [vmem:[%s918 + $0x8] sm:$0xff] %v3398
        $region124: #{tpu_custom_call.1} parent=83 // pred_fallthru
          _
        %s3403 = sand.u32 %s481, 1
        %s3404 = scalar_lea.sflag [#allocation5], %s3403
        %s3405 = sand.u32 %s481, 1
        %s3406 = smul.addr %s3405, 16
        %s3407 = scalar_lea.vmem [#allocation17], %s3406
        // Predicated region
        $region125: #{tpu_custom_call.1} parent=83 // pred_check
          %p3408 = pneg %p491
        $region126: #{tpu_custom_call.1} parent=83 // pred_check_branch
          %3410 = sbr.rel (%p3408) target = $region128
        $region127: #{tpu_custom_call.1} parent=83 // pred_region
          %s3412 = ssub.s32 256, 256
          %3413 = vsyncadd %s3404, %s3412
          %s3414 = smul.addr %s49, 4
          %s3415 = smul.addr %s3414, 64
          %s3416 = scalar_lea.hbm %s16, %s3415
          %s3417 = sshll.u32 %s3407, 4
          %s3418 = int_to_ptr.vmem [resolvable:$true] %s3417
          %3423 = dma.vmem_to_hbm [thread:$0]  %s3418, 256, %s3416, %s3404, 128, 128, 8
        $region128: #{tpu_custom_call.1} parent=83 // pred_fallthru
          _
      $region84: #{tpu_custom_call.1} parent=5 // pred_fallthru
        _
      %p3424 = scmp.le.s32.totalorder 2, %s40
      // Predicated region
      $region129: #{tpu_custom_call.1} parent=5 // pred_check
        %p3425 = pneg %p3424
      $region130: #{tpu_custom_call.1} parent=5 // pred_check_branch
        %3427 = sbr.rel (%p3425) target = $region132
      $region131: #{tpu_custom_call.1} parent=5 // pred_region
        %s3428 = ssub.s32 %s40, 2
        // Predicated region
        $region133: #{tpu_custom_call.1} parent=131 // pred_check
          %p3429 = pneg %p497
        $region134: #{tpu_custom_call.1} parent=131 // pred_check_branch
          %3431 = sbr.rel (%p3429) target = $region136
        $region135: #{tpu_custom_call.1} parent=131 // pred_region
          %s3432 = sand.u32 %s482, 1
          %s3433 = scalar_lea.sflag [#allocation5], %s3432
          %s3434 = sand.u32 %s482, 1
          %s3435 = smul.addr %s3434, 16
          %s3436 = scalar_lea.vmem [#allocation17], %s3435
          %3437 = dma.done %s3433, 256
        $region136: #{tpu_custom_call.1} parent=131 // pred_fallthru
          _
      $region132: #{tpu_custom_call.1} parent=5 // pred_fallthru
        _
    $region6: #{tpu_custom_call.1} parent=1 // loop_footer
      %s44 = sadd.s32 1, %s40
    $region7: #{tpu_custom_call.1} parent=1 // loop_footer_branch
      %39 = sbr.rel target = $region3
    $region8: #{tpu_custom_call.1} parent=1 // loop_exit
      _
    %3438 = vsyncpa [#allocation4], 1
    %s3439 = scalar_lea.sflag [#allocation4], 1
    %3440 = vsyncpa %s3439, 1
    %3441 = vsyncpa [#allocation7], 1
    %s3442 = scalar_lea.sflag [#allocation7], 1
    %3443 = vsyncpa %s3442, 1
    %3444 = vsyncpa [#allocation10], 1
    %s3445 = scalar_lea.sflag [#allocation10], 1
    %3446 = vsyncpa %s3445, 1
    %3447 = vsyncpa [#allocation13], 1
    %s3448 = scalar_lea.sflag [#allocation13], 1
    %3449 = vsyncpa %s3448, 1
    %3450 = vsyncpa [#allocation16], 1
    %s3451 = scalar_lea.sflag [#allocation16], 1
    %3452 = vsyncpa %s3451, 1
    %3453 = vsyncpa [#allocation5], 1
    %s3454 = scalar_lea.sflag [#allocation5], 1
    %3455 = vsyncpa %s3454, 1

</llo_original>
